<compile_context>
chip_gen: v7x
topology: tpu7x:2x2x1
jax: 0.10.0
libtpu: 0.0.40
codegen_flags: <defaults>
</compile_context>

<pallas_src>
import numpy as np
import jax
import jax.numpy as jnp
from jax.experimental import pallas as pl
from jax.experimental.pallas import tpu as pltpu

EPS = 1e-5


# ----------------------------- bilinear helper -------------------------------

def bilinear_matrix(n_out, n_in):
    """PyTorch F.interpolate(mode='bilinear', align_corners=True) as a matrix."""
    M = np.zeros((n_out, n_in), np.float32)
    if n_out == 1 or n_in == 1:
        M[:, 0] = 1.0
        return M
    for i in range(n_out):
        s = i * (n_in - 1) / (n_out - 1)
        i0 = min(int(np.floor(s)), n_in - 1)
        i1 = min(i0 + 1, n_in - 1)
        f = s - i0
        M[i, i0] += 1.0 - f
        M[i, i1] += f
    return M


# ----------------------------- fused Pallas kernel ---------------------------

def make_decoder_kernel(H, W, Cin, Cout, has_dec, has_down):
    """Fused DecoderBlock forward for one batch element (everything in VMEM)."""
    HW = H * W
    TAPS = [(dy, dx) for dy in range(3) for dx in range(3)]

    def conv3x3(pad_ref, col_ref, x_hwc, w, b, cc, pre_relu, post_relu,
                extra=None, ce=0):
        # x_hwc: [H, W, cc]; w: [9*cc (+ce), Cout]; b: [1, Cout]
        # extra: optional [HW, ce] appended as im2col columns (folds a 1x1 conv
        # into this matmul).
        v = jnp.maximum(x_hwc, 0.0) if pre_relu else x_hwc
        # Write the interior of the zero-padded scratch (border ring stays 0;
        # relu commutes with zero padding since relu(0) == 0).
        pad_ref[1:H + 1, 1:W + 1, :cc] = v
        xp = pad_ref[...]                                    # [H+2, W+2, Cmax]
        # im2col: single materialization of [HW, 9*cc(+ce)] in VMEM scratch,
        # then one MXU matmul.
        for t, (dy, dx) in enumerate(TAPS):
            patch = xp[dy:dy + H, dx:dx + W, :cc]            # [H, W, cc]
            col_ref[:, t * cc:(t + 1) * cc] = patch.reshape(HW, cc)
        k = 9 * cc
        if extra is not None:
            col_ref[:, k:k + ce] = extra
            k += ce
        col = col_ref[:, :k]                                 # [HW, k]
        y = jnp.dot(col, w, preferred_element_type=jnp.float32) + b
        if post_relu:
            y = jnp.maximum(y, 0.0)
        return y                                             # [HW, Cout]

    def kernel(*refs):
        it = iter(refs)
        enc_ref = next(it)
        dec_ref = next(it) if has_dec else None
        w11, b11, w12, b12 = next(it), next(it), next(it), next(it)
        if has_dec:
            w21, b21, w22, b22 = next(it), next(it), next(it), next(it)
        rt_ref = next(it)
        o_ref = next(it)
        pad_ref = next(it)
        col_ref = next(it)

        # Zero the padded scratch once per grid step (cheap); conv interiors
        # are overwritten per call and the zero ring / unused channel tail is
        # never read.  (Not gated on program_id so each core of a megacore
        # split initializes its own scratch.)
        pad_ref[...] = jnp.zeros_like(pad_ref)

        x = enc_ref[0]                                       # [H, W, Cin]
        x2 = x.reshape(HW, Cin)                              # [HW, Cin]

        # ----------------------------- res_block1 ----------------------------
        h1 = conv3x3(pad_ref, col_ref, x, w11[...], b11[...], Cin,
                     pre_relu=True, post_relu=True)
        if has_down:
            # conv2 + down_sample(1x1) fused into ONE matmul:
            #   [col(h1) | x] @ [[w2]; [wd]] + (b2 + bd)
            s = conv3x3(pad_ref, col_ref, h1.reshape(H, W, Cout), w12[...],
                        b12[...], Cout, pre_relu=False, post_relu=False,
                        extra=x2, ce=Cin)
        else:
            h2 = conv3x3(pad_ref, col_ref, h1.reshape(H, W, Cout), w12[...],
                         b12[...], Cout, pre_relu=False, post_relu=False)
            s = h2 + x2                                      # Cin == Cout here

        # --------------------- decoder add + res_block2 ----------------------
        if has_dec:
            s = s + dec_ref[0].reshape(HW, Cout)
            g1 = conv3x3(pad_ref, col_ref, s.reshape(H, W, Cout), w21[...],
                         b21[...], Cout, pre_relu=True, post_relu=True)
            g2 = conv3x3(pad_ref, col_ref, g1.reshape(H, W, Cout), w22[...],
                         b22[...], Cout, pre_relu=False, post_relu=False)
            s = g2 + s

        # ---- bilinear resize (align_corners=True) as one matmul, NCHW store --
        # rt = kron(A, B).T : [HW, Hout*Wout]
        # out[c, i*Wout + j] = sum_{h,w} A[i,h] B[j,w] s[h*W + w, c]
        out = jnp.dot(s.T, rt_ref[...], preferred_element_type=jnp.float32)
        o_ref[0] = out.astype(o_ref.dtype)                   # [Cout, Hout*Wout]

    return kernel


# ------------------------------- wrapper --------------------------------------

def decoder_block_forward(params, enc_nchw, dec_nchw, output_size):
    """output_size = (out_h, out_w), as F.interpolate interprets `size` for 4D."""
    Hout, Wout = int(output_size[0]), int(output_size[1])
    N, Cin, H, W = enc_nchw.shape
    p1 = params['res_block1']
    Cout = p1['b1'].shape[-1]
    has_dec = dec_nchw is not None
    has_down = 'wd' in p1
    Cmax = max(Cin, Cout)

    # Layout plumbing only: NCHW -> NHWC for the inputs.
    enc = jnp.transpose(enc_nchw, (0, 2, 3, 1))
    args = [enc]
    in_specs = [pl.BlockSpec((1, H, W, Cin), lambda n: (n, 0, 0, 0))]
    if has_dec:
        dec = jnp.transpose(dec_nchw, (0, 2, 3, 1))
        args.append(dec)
        in_specs.append(pl.BlockSpec((1, H, W, Cout), lambda n: (n, 0, 0, 0)))

    def add_const(x):
        x = jnp.asarray(x, jnp.float32)
        nd = x.ndim
        args.append(x)
        in_specs.append(pl.BlockSpec(x.shape, lambda n, _nd=nd: (0,) * _nd))

    add_const(p1['w1']); add_const(p1['b1'])
    if has_down:
        # Fold the 1x1 down-sample conv+BN into the second 3x3 conv's matmul.
        add_const(jnp.concatenate([p1['w2'], p1['wd']], axis=0))  # [9*Cout+Cin, Cout]
        add_const(p1['b2'] + p1['bd'])
    else:
        add_const(p1['w2']); add_const(p1['b2'])
    if has_dec:
        p2 = params['res_block2']
        add_const(p2['w1']); add_const(p2['b1'])
        add_const(p2['w2']); add_const(p2['b2'])

    # Bilinear resize (align_corners=True) folded into one precomputed matrix.
    A = bilinear_matrix(Hout, H)
    B = bilinear_matrix(Wout, W)
    add_const(np.kron(A, B).T)                               # [H*W, Hout*Wout]

    # im2col scratch width covers every matmul in the block.
    colW = max(9 * Cin, 9 * Cout + (Cin if has_down else 0))

    kernel = make_decoder_kernel(H, W, Cin, Cout, has_dec, has_down)
    out_flat = pl.pallas_call(
        kernel,
        out_shape=jax.ShapeDtypeStruct((N, Cout, Hout * Wout), jnp.float32),
        grid=(N,),
        in_specs=in_specs,
        out_specs=pl.BlockSpec((1, Cout, Hout * Wout), lambda n: (n, 0, 0)),
        scratch_shapes=[pltpu.VMEM((H + 2, W + 2, Cmax), jnp.float32),
                        pltpu.VMEM((H * W, colW), jnp.float32)],
        compiler_params=pltpu.CompilerParams(dimension_semantics=("parallel",)),
    )(*args)
    return out_flat.reshape(N, Cout, Hout, Wout)             # free reshape to NCHW


# ------------------------------- parameters -----------------------------------

def make_conv_bn_params(key, cin, cout, ksize):
    """Conv2d(ksize, bias=False) + BatchNorm2d (eval mode) folded together."""
    k1, k2, k3, k4, k5 = jax.random.split(key, 5)
    w = 0.1 * jax.random.normal(k1, (cout, cin, ksize, ksize), jnp.float32)  # OIHW
    gamma = 1.0 + 0.1 * jax.random.normal(k2, (cout,), jnp.float32)
    beta = 0.05 * jax.random.normal(k3, (cout,), jnp.float32)
    run_mean = 0.1 * jax.random.normal(k4, (cout,), jnp.float32)
    run_var = 0.5 + 0.5 * jax.random.uniform(k5, (cout,), jnp.float32)
    scale = gamma / jnp.sqrt(run_var + EPS)
    w_eff = w * scale[:, None, None, None]
    b_eff = beta - run_mean * scale
    # OIHW -> [kh*kw*Cin, Cout]  (im2col row order: tap-major, channel-minor).
    wk = jnp.transpose(w_eff, (2, 3, 1, 0)).reshape(ksize * ksize * cin, cout)
    return wk, b_eff.reshape(1, cout)


def make_residual_block_params(key, cin, cout=None):
    if cout is None:
        cout = cin
    keys = jax.random.split(key, 3)
    p = {}
    p['w1'], p['b1'] = make_conv_bn_params(keys[0], cin, cout, 3)
    p['w2'], p['b2'] = make_conv_bn_params(keys[1], cout, cout, 3)
    if cin != cout:
        p['wd'], p['bd'] = make_conv_bn_params(keys[2], cin, cout, 1)  # [Cin, Cout]
    return p


def make_decoder_block_params(key, in_channels, out_channels):
    k1, k2 = jax.random.split(key, 2)
    return {
        'res_block1': make_residual_block_params(k1, in_channels, out_channels),
        'res_block2': make_residual_block_params(k2, out_channels),
    }


# ------------------------------ pure-JAX reference ----------------------------

def _ref_conv(x, wk, b):
    cin = x.shape[-1]
    cout = wk.shape[-1]
    ks = int(round((wk.shape[0] // cin) ** 0.5))
    w_hwio = wk.reshape(ks, ks, cin, cout)
    y = jax.lax.conv_general_dilated(x, w_hwio, (1, 1), 'SAME',
                                     dimension_numbers=('NHWC', 'HWIO', 'NHWC'))
    return y + b.reshape(1, 1, 1, cout)


def _ref_residual_block(x, p):
    r = jnp.maximum(x, 0.0)
    h1 = jnp.maximum(_ref_conv(r, p['w1'], p['b1']), 0.0)
    h2 = _ref_conv(h1, p['w2'], p['b2'])
    if 'wd' in p:
        skip = jnp.einsum('nhwc,cd->nhwd', x, p['wd']) + p['bd'].reshape(1, 1, 1, -1)
        return h2 + skip
    return h2 + x


def _ref_forward(params, enc_nchw, dec_nchw, output_size):
    enc = jnp.transpose(enc_nchw, (0, 2, 3, 1))
    out = _ref_residual_block(enc, params['res_block1'])
    if dec_nchw is not None:
        dec = jnp.transpose(dec_nchw, (0, 2, 3, 1))
        out = _ref_residual_block(dec + out, params['res_block2'])
    A = jnp.asarray(bilinear_matrix(output_size[0], out.shape[1]))
    B = jnp.asarray(bilinear_matrix(output_size[1], out.shape[2]))
    out = jnp.einsum('ih,nhwc->niwc', A, out)
    out = jnp.einsum('jw,niwc->nijc', B, out)
    return jnp.transpose(out, (0, 3, 1, 2))


# ---------------------------------- main ---------------------------------------

if __name__ == "__main__":
    N, IN_CH, OUT_CH, H, W = 2, 8, 4, 8, 8
    OUT_SIZE = (12, 16)   # (out_h, out_w)

    key = jax.random.PRNGKey(0)
    k_par, k_enc, k_dec = jax.random.split(key, 3)

    params = make_decoder_block_params(k_par, IN_CH, OUT_CH)
    enc = jax.random.normal(k_enc, (N, IN_CH, H, W), jnp.float32)   # NCHW
    dec = jax.random.normal(k_dec, (N, OUT_CH, H, W), jnp.float32)  # NCHW

    out = jax.block_until_ready(decoder_block_forward(params, enc, dec, OUT_SIZE))
    ref = jax.block_until_ready(_ref_forward(params, enc, dec, OUT_SIZE))
    assert out.shape == (N, OUT_CH, OUT_SIZE[0], OUT_SIZE[1]), out.shape
    np.testing.assert_allclose(np.asarray(out), np.asarray(ref), rtol=1e-4, atol=1e-4)

    # Also exercise the input_from_decoder=None branch of DecoderBlock.forward.
    out0 = jax.block_until_ready(decoder_block_forward(params, enc, None, OUT_SIZE))
    ref0 = jax.block_until_ready(_ref_forward(params, enc, None, OUT_SIZE))
    np.testing.assert_allclose(np.asarray(out0), np.asarray(ref0), rtol=1e-4, atol=1e-4)

    print("KERNEL_OK")
</pallas_src>

<mosaic_0001>
module attributes {stable_mosaic.version = 11 : i64} {
  func.func @kernel(%arg0: i32, %arg1: memref<1x8x8x8xf32, #tpu.memory_space<vmem>>, %arg2: memref<1x8x8x4xf32, #tpu.memory_space<vmem>>, %arg3: memref<72x4xf32, #tpu.memory_space<vmem>>, %arg4: memref<1x4xf32, #tpu.memory_space<vmem>>, %arg5: memref<44x4xf32, #tpu.memory_space<vmem>>, %arg6: memref<1x4xf32, #tpu.memory_space<vmem>>, %arg7: memref<36x4xf32, #tpu.memory_space<vmem>>, %arg8: memref<1x4xf32, #tpu.memory_space<vmem>>, %arg9: memref<36x4xf32, #tpu.memory_space<vmem>>, %arg10: memref<1x4xf32, #tpu.memory_space<vmem>>, %arg11: memref<64x192xf32, #tpu.memory_space<vmem>>, %arg12: memref<1x4x192xf32, #tpu.memory_space<vmem>>, %arg13: memref<10x10x8xf32, #tpu.memory_space<vmem>>, %arg14: memref<64x72xf32, #tpu.memory_space<vmem>>) attributes {dimension_semantics = [#tpu.dimension_semantics<parallel>], iteration_bounds = array<i64: 2>, scalar_prefetch = 0 : i64, scratch_operands = 2 : i64, tpu.core_type = #tpu.core_type<tc>, window_params = [{transform_indices = @transform_0, window_bounds = array<i64: 1, 8, 8, 8>}, {transform_indices = @transform_1, window_bounds = array<i64: 1, 8, 8, 4>}, {pipeline_mode = #tpu.pipeline_mode<synchronous>, transform_indices = @transform_2, window_bounds = array<i64: 72, 4>}, {pipeline_mode = #tpu.pipeline_mode<synchronous>, transform_indices = @transform_3, window_bounds = array<i64: 1, 4>}, {pipeline_mode = #tpu.pipeline_mode<synchronous>, transform_indices = @transform_4, window_bounds = array<i64: 44, 4>}, {pipeline_mode = #tpu.pipeline_mode<synchronous>, transform_indices = @transform_5, window_bounds = array<i64: 1, 4>}, {pipeline_mode = #tpu.pipeline_mode<synchronous>, transform_indices = @transform_6, window_bounds = array<i64: 36, 4>}, {pipeline_mode = #tpu.pipeline_mode<synchronous>, transform_indices = @transform_7, window_bounds = array<i64: 1, 4>}, {pipeline_mode = #tpu.pipeline_mode<synchronous>, transform_indices = @transform_8, window_bounds = array<i64: 36, 4>}, {pipeline_mode = #tpu.pipeline_mode<synchronous>, transform_indices = @transform_9, window_bounds = array<i64: 1, 4>}, {pipeline_mode = #tpu.pipeline_mode<synchronous>, transform_indices = @transform_10, window_bounds = array<i64: 64, 192>}, {transform_indices = @transform_11, window_bounds = array<i64: 1, 4, 192>}]} {
    %cst = arith.constant 0.000000e+00 : f32
    %0 = vector.broadcast %cst : f32 to vector<10x10x8xf32>
    %c0 = arith.constant 0 : index
    %c0_0 = arith.constant 0 : index
    %c0_1 = arith.constant 0 : index
    %1 = vector.load %arg13[%c0, %c0_0, %c0_1] : memref<10x10x8xf32, #tpu.memory_space<vmem>>, vector<10x10x8xf32>
    tpu.vector_store %arg13[%c0, %c0_0, %c0_1], %0 {strides = array<i32>} : memref<10x10x8xf32, #tpu.memory_space<vmem>>, vector<10x10x8xf32>,
    %c0_2 = arith.constant 0 : index
    %c0_3 = arith.constant 0 : index
    %c0_4 = arith.constant 0 : index
    %c0_5 = arith.constant 0 : index
    %2 = vector.load %arg1[%c0_2, %c0_3, %c0_4, %c0_5] : memref<1x8x8x8xf32, #tpu.memory_space<vmem>>, vector<1x8x8x8xf32>
    %3 = vector.shape_cast %2 : vector<1x8x8x8xf32> to vector<8x8x8xf32>
    %4 = vector.shape_cast %3 : vector<8x8x8xf32> to vector<64x8xf32>
    %c0_6 = arith.constant 0 : index
    %c0_7 = arith.constant 0 : index
    %5 = vector.load %arg3[%c0_6, %c0_7] : memref<72x4xf32, #tpu.memory_space<vmem>>, vector<72x4xf32>
    %c0_8 = arith.constant 0 : index
    %c0_9 = arith.constant 0 : index
    %6 = vector.load %arg4[%c0_8, %c0_9] : memref<1x4xf32, #tpu.memory_space<vmem>>, vector<1x4xf32>
    %cst_10 = arith.constant 0.000000e+00 : f32
    %7 = vector.broadcast %cst_10 : f32 to vector<8x8x8xf32>
    %8 = arith.maximumf %3, %7 : vector<8x8x8xf32>
    %c1 = arith.constant 1 : index
    %c1_11 = arith.constant 1 : index
    %c0_12 = arith.constant 0 : index
    %9 = vector.load %arg13[%c1, %c1_11, %c0_12] : memref<10x10x8xf32, #tpu.memory_space<vmem>>, vector<8x8x8xf32>
    tpu.vector_store %arg13[%c1, %c1_11, %c0_12], %8 {strides = array<i32>} : memref<10x10x8xf32, #tpu.memory_space<vmem>>, vector<8x8x8xf32>,
    %c0_13 = arith.constant 0 : index
    %c0_14 = arith.constant 0 : index
    %c0_15 = arith.constant 0 : index
    %10 = vector.load %arg13[%c0_13, %c0_14, %c0_15] : memref<10x10x8xf32, #tpu.memory_space<vmem>>, vector<10x10x8xf32>
    %11 = vector.extract_strided_slice %10 {offsets = [0, 0, 0], sizes = [8, 8, 8], strides = [1, 1, 1]} : vector<10x10x8xf32> to vector<8x8x8xf32>
    %12 = vector.shape_cast %11 : vector<8x8x8xf32> to vector<64x8xf32>
    %c0_16 = arith.constant 0 : index
    %c0_17 = arith.constant 0 : index
    %13 = vector.load %arg14[%c0_16, %c0_17] : memref<64x72xf32, #tpu.memory_space<vmem>>, vector<64x8xf32>
    tpu.vector_store %arg14[%c0_16, %c0_17], %12 {strides = array<i32>} : memref<64x72xf32, #tpu.memory_space<vmem>>, vector<64x8xf32>,
    %14 = vector.extract_strided_slice %10 {offsets = [0, 1, 0], sizes = [8, 8, 8], strides = [1, 1, 1]} : vector<10x10x8xf32> to vector<8x8x8xf32>
    %15 = vector.shape_cast %14 : vector<8x8x8xf32> to vector<64x8xf32>
    %c0_18 = arith.constant 0 : index
    %c8 = arith.constant 8 : index
    %16 = vector.load %arg14[%c0_18, %c8] : memref<64x72xf32, #tpu.memory_space<vmem>>, vector<64x8xf32>
    tpu.vector_store %arg14[%c0_18, %c8], %15 {strides = array<i32>} : memref<64x72xf32, #tpu.memory_space<vmem>>, vector<64x8xf32>,
    %17 = vector.extract_strided_slice %10 {offsets = [0, 2, 0], sizes = [8, 8, 8], strides = [1, 1, 1]} : vector<10x10x8xf32> to vector<8x8x8xf32>
    %18 = vector.shape_cast %17 : vector<8x8x8xf32> to vector<64x8xf32>
    %c0_19 = arith.constant 0 : index
    %c16 = arith.constant 16 : index
    %19 = vector.load %arg14[%c0_19, %c16] : memref<64x72xf32, #tpu.memory_space<vmem>>, vector<64x8xf32>
    tpu.vector_store %arg14[%c0_19, %c16], %18 {strides = array<i32>} : memref<64x72xf32, #tpu.memory_space<vmem>>, vector<64x8xf32>,
    %20 = vector.extract_strided_slice %10 {offsets = [1, 0, 0], sizes = [8, 8, 8], strides = [1, 1, 1]} : vector<10x10x8xf32> to vector<8x8x8xf32>
    %21 = vector.shape_cast %20 : vector<8x8x8xf32> to vector<64x8xf32>
    %c0_20 = arith.constant 0 : index
    %c24 = arith.constant 24 : index
    %22 = vector.load %arg14[%c0_20, %c24] : memref<64x72xf32, #tpu.memory_space<vmem>>, vector<64x8xf32>
    tpu.vector_store %arg14[%c0_20, %c24], %21 {strides = array<i32>} : memref<64x72xf32, #tpu.memory_space<vmem>>, vector<64x8xf32>,
    %23 = vector.extract_strided_slice %10 {offsets = [1, 1, 0], sizes = [8, 8, 8], strides = [1, 1, 1]} : vector<10x10x8xf32> to vector<8x8x8xf32>
    %24 = vector.shape_cast %23 : vector<8x8x8xf32> to vector<64x8xf32>
    %c0_21 = arith.constant 0 : index
    %c32 = arith.constant 32 : index
    %25 = vector.load %arg14[%c0_21, %c32] : memref<64x72xf32, #tpu.memory_space<vmem>>, vector<64x8xf32>
    tpu.vector_store %arg14[%c0_21, %c32], %24 {strides = array<i32>} : memref<64x72xf32, #tpu.memory_space<vmem>>, vector<64x8xf32>,
    %26 = vector.extract_strided_slice %10 {offsets = [1, 2, 0], sizes = [8, 8, 8], strides = [1, 1, 1]} : vector<10x10x8xf32> to vector<8x8x8xf32>
    %27 = vector.shape_cast %26 : vector<8x8x8xf32> to vector<64x8xf32>
    %c0_22 = arith.constant 0 : index
    %c40 = arith.constant 40 : index
    %28 = vector.load %arg14[%c0_22, %c40] : memref<64x72xf32, #tpu.memory_space<vmem>>, vector<64x8xf32>
    tpu.vector_store %arg14[%c0_22, %c40], %27 {strides = array<i32>} : memref<64x72xf32, #tpu.memory_space<vmem>>, vector<64x8xf32>,
    %29 = vector.extract_strided_slice %10 {offsets = [2, 0, 0], sizes = [8, 8, 8], strides = [1, 1, 1]} : vector<10x10x8xf32> to vector<8x8x8xf32>
    %30 = vector.shape_cast %29 : vector<8x8x8xf32> to vector<64x8xf32>
    %c0_23 = arith.constant 0 : index
    %c48 = arith.constant 48 : index
    %31 = vector.load %arg14[%c0_23, %c48] : memref<64x72xf32, #tpu.memory_space<vmem>>, vector<64x8xf32>
    tpu.vector_store %arg14[%c0_23, %c48], %30 {strides = array<i32>} : memref<64x72xf32, #tpu.memory_space<vmem>>, vector<64x8xf32>,
    %32 = vector.extract_strided_slice %10 {offsets = [2, 1, 0], sizes = [8, 8, 8], strides = [1, 1, 1]} : vector<10x10x8xf32> to vector<8x8x8xf32>
    %33 = vector.shape_cast %32 : vector<8x8x8xf32> to vector<64x8xf32>
    %c0_24 = arith.constant 0 : index
    %c56 = arith.constant 56 : index
    %34 = vector.load %arg14[%c0_24, %c56] : memref<64x72xf32, #tpu.memory_space<vmem>>, vector<64x8xf32>
    tpu.vector_store %arg14[%c0_24, %c56], %33 {strides = array<i32>} : memref<64x72xf32, #tpu.memory_space<vmem>>, vector<64x8xf32>,
    %35 = vector.extract_strided_slice %10 {offsets = [2, 2, 0], sizes = [8, 8, 8], strides = [1, 1, 1]} : vector<10x10x8xf32> to vector<8x8x8xf32>
    %36 = vector.shape_cast %35 : vector<8x8x8xf32> to vector<64x8xf32>
    %c0_25 = arith.constant 0 : index
    %c64 = arith.constant 64 : index
    %37 = vector.load %arg14[%c0_25, %c64] : memref<64x72xf32, #tpu.memory_space<vmem>>, vector<64x8xf32>
    tpu.vector_store %arg14[%c0_25, %c64], %36 {strides = array<i32>} : memref<64x72xf32, #tpu.memory_space<vmem>>, vector<64x8xf32>,
    %c0_26 = arith.constant 0 : index
    %c0_27 = arith.constant 0 : index
    %38 = vector.load %arg14[%c0_26, %c0_27] : memref<64x72xf32, #tpu.memory_space<vmem>>, vector<64x72xf32>
    %cst_28 = arith.constant dense<0.000000e+00> : vector<64x4xf32>
    %39 = tpu.matmul %38, %5, %cst_28 {dimension_numbers = #tpu.dot_dimension_numbers<[1], [0], [0], [1], [0, 0, 1, 1], [], []>} : vector<64x72xf32>, vector<72x4xf32>, vector<64x4xf32> -> vector<64x4xf32>
    %40 = vector.broadcast %6 : vector<1x4xf32> to vector<64x4xf32>
    %41 = arith.addf %39, %40 : vector<64x4xf32>
    %cst_29 = arith.constant 0.000000e+00 : f32
    %42 = vector.broadcast %cst_29 : f32 to vector<64x4xf32>
    %43 = arith.maximumf %41, %42 : vector<64x4xf32>
    %44 = vector.shape_cast %43 : vector<64x4xf32> to vector<8x8x4xf32>
    %c0_30 = arith.constant 0 : index
    %c0_31 = arith.constant 0 : index
    %45 = vector.load %arg5[%c0_30, %c0_31] : memref<44x4xf32, #tpu.memory_space<vmem>>, vector<44x4xf32>
    %c0_32 = arith.constant 0 : index
    %c0_33 = arith.constant 0 : index
    %46 = vector.load %arg6[%c0_32, %c0_33] : memref<1x4xf32, #tpu.memory_space<vmem>>, vector<1x4xf32>
    %c1_34 = arith.constant 1 : index
    %c1_35 = arith.constant 1 : index
    %c0_36 = arith.constant 0 : index
    %47 = vector.load %arg13[%c1_34, %c1_35, %c0_36] : memref<10x10x8xf32, #tpu.memory_space<vmem>>, vector<8x8x4xf32>
    tpu.vector_store %arg13[%c1_34, %c1_35, %c0_36], %44 {strides = array<i32>} : memref<10x10x8xf32, #tpu.memory_space<vmem>>, vector<8x8x4xf32>,
    %c0_37 = arith.constant 0 : index
    %c0_38 = arith.constant 0 : index
    %c0_39 = arith.constant 0 : index
    %48 = vector.load %arg13[%c0_37, %c0_38, %c0_39] : memref<10x10x8xf32, #tpu.memory_space<vmem>>, vector<10x10x8xf32>
    %49 = vector.extract_strided_slice %48 {offsets = [0, 0, 0], sizes = [8, 8, 4], strides = [1, 1, 1]} : vector<10x10x8xf32> to vector<8x8x4xf32>
    %50 = vector.shape_cast %49 : vector<8x8x4xf32> to vector<64x4xf32>
    %c0_40 = arith.constant 0 : index
    %c0_41 = arith.constant 0 : index
    %51 = vector.load %arg14[%c0_40, %c0_41] : memref<64x72xf32, #tpu.memory_space<vmem>>, vector<64x4xf32>
    tpu.vector_store %arg14[%c0_40, %c0_41], %50 {strides = array<i32>} : memref<64x72xf32, #tpu.memory_space<vmem>>, vector<64x4xf32>,
    %52 = vector.extract_strided_slice %48 {offsets = [0, 1, 0], sizes = [8, 8, 4], strides = [1, 1, 1]} : vector<10x10x8xf32> to vector<8x8x4xf32>
    %53 = vector.shape_cast %52 : vector<8x8x4xf32> to vector<64x4xf32>
    %c0_42 = arith.constant 0 : index
    %c4 = arith.constant 4 : index
    %54 = vector.load %arg14[%c0_42, %c4] : memref<64x72xf32, #tpu.memory_space<vmem>>, vector<64x4xf32>
    tpu.vector_store %arg14[%c0_42, %c4], %53 {strides = array<i32>} : memref<64x72xf32, #tpu.memory_space<vmem>>, vector<64x4xf32>,
    %55 = vector.extract_strided_slice %48 {offsets = [0, 2, 0], sizes = [8, 8, 4], strides = [1, 1, 1]} : vector<10x10x8xf32> to vector<8x8x4xf32>
    %56 = vector.shape_cast %55 : vector<8x8x4xf32> to vector<64x4xf32>
    %c0_43 = arith.constant 0 : index
    %c8_44 = arith.constant 8 : index
    %57 = vector.load %arg14[%c0_43, %c8_44] : memref<64x72xf32, #tpu.memory_space<vmem>>, vector<64x4xf32>
    tpu.vector_store %arg14[%c0_43, %c8_44], %56 {strides = array<i32>} : memref<64x72xf32, #tpu.memory_space<vmem>>, vector<64x4xf32>,
    %58 = vector.extract_strided_slice %48 {offsets = [1, 0, 0], sizes = [8, 8, 4], strides = [1, 1, 1]} : vector<10x10x8xf32> to vector<8x8x4xf32>
    %59 = vector.shape_cast %58 : vector<8x8x4xf32> to vector<64x4xf32>
    %c0_45 = arith.constant 0 : index
    %c12 = arith.constant 12 : index
    %60 = vector.load %arg14[%c0_45, %c12] : memref<64x72xf32, #tpu.memory_space<vmem>>, vector<64x4xf32>
    tpu.vector_store %arg14[%c0_45, %c12], %59 {strides = array<i32>} : memref<64x72xf32, #tpu.memory_space<vmem>>, vector<64x4xf32>,
    %61 = vector.extract_strided_slice %48 {offsets = [1, 1, 0], sizes = [8, 8, 4], strides = [1, 1, 1]} : vector<10x10x8xf32> to vector<8x8x4xf32>
    %62 = vector.shape_cast %61 : vector<8x8x4xf32> to vector<64x4xf32>
    %c0_46 = arith.constant 0 : index
    %c16_47 = arith.constant 16 : index
    %63 = vector.load %arg14[%c0_46, %c16_47] : memref<64x72xf32, #tpu.memory_space<vmem>>, vector<64x4xf32>
    tpu.vector_store %arg14[%c0_46, %c16_47], %62 {strides = array<i32>} : memref<64x72xf32, #tpu.memory_space<vmem>>, vector<64x4xf32>,
    %64 = vector.extract_strided_slice %48 {offsets = [1, 2, 0], sizes = [8, 8, 4], strides = [1, 1, 1]} : vector<10x10x8xf32> to vector<8x8x4xf32>
    %65 = vector.shape_cast %64 : vector<8x8x4xf32> to vector<64x4xf32>
    %c0_48 = arith.constant 0 : index
    %c20 = arith.constant 20 : index
    %66 = vector.load %arg14[%c0_48, %c20] : memref<64x72xf32, #tpu.memory_space<vmem>>, vector<64x4xf32>
    tpu.vector_store %arg14[%c0_48, %c20], %65 {strides = array<i32>} : memref<64x72xf32, #tpu.memory_space<vmem>>, vector<64x4xf32>,
    %67 = vector.extract_strided_slice %48 {offsets = [2, 0, 0], sizes = [8, 8, 4], strides = [1, 1, 1]} : vector<10x10x8xf32> to vector<8x8x4xf32>
    %68 = vector.shape_cast %67 : vector<8x8x4xf32> to vector<64x4xf32>
    %c0_49 = arith.constant 0 : index
    %c24_50 = arith.constant 24 : index
    %69 = vector.load %arg14[%c0_49, %c24_50] : memref<64x72xf32, #tpu.memory_space<vmem>>, vector<64x4xf32>
    tpu.vector_store %arg14[%c0_49, %c24_50], %68 {strides = array<i32>} : memref<64x72xf32, #tpu.memory_space<vmem>>, vector<64x4xf32>,
    %70 = vector.extract_strided_slice %48 {offsets = [2, 1, 0], sizes = [8, 8, 4], strides = [1, 1, 1]} : vector<10x10x8xf32> to vector<8x8x4xf32>
    %71 = vector.shape_cast %70 : vector<8x8x4xf32> to vector<64x4xf32>
    %c0_51 = arith.constant 0 : index
    %c28 = arith.constant 28 : index
    %72 = vector.load %arg14[%c0_51, %c28] : memref<64x72xf32, #tpu.memory_space<vmem>>, vector<64x4xf32>
    tpu.vector_store %arg14[%c0_51, %c28], %71 {strides = array<i32>} : memref<64x72xf32, #tpu.memory_space<vmem>>, vector<64x4xf32>,
    %73 = vector.extract_strided_slice %48 {offsets = [2, 2, 0], sizes = [8, 8, 4], strides = [1, 1, 1]} : vector<10x10x8xf32> to vector<8x8x4xf32>
    %74 = vector.shape_cast %73 : vector<8x8x4xf32> to vector<64x4xf32>
    %c0_52 = arith.constant 0 : index
    %c32_53 = arith.constant 32 : index
    %75 = vector.load %arg14[%c0_52, %c32_53] : memref<64x72xf32, #tpu.memory_space<vmem>>, vector<64x4xf32>
    tpu.vector_store %arg14[%c0_52, %c32_53], %74 {strides = array<i32>} : memref<64x72xf32, #tpu.memory_space<vmem>>, vector<64x4xf32>,
    %c0_54 = arith.constant 0 : index
    %c36 = arith.constant 36 : index
    %76 = vector.load %arg14[%c0_54, %c36] : memref<64x72xf32, #tpu.memory_space<vmem>>, vector<64x8xf32>
    tpu.vector_store %arg14[%c0_54, %c36], %4 {strides = array<i32>} : memref<64x72xf32, #tpu.memory_space<vmem>>, vector<64x8xf32>,
    %c0_55 = arith.constant 0 : index
    %c0_56 = arith.constant 0 : index
    %77 = vector.load %arg14[%c0_55, %c0_56] : memref<64x72xf32, #tpu.memory_space<vmem>>, vector<64x44xf32>
    %cst_57 = arith.constant dense<0.000000e+00> : vector<64x4xf32>
    %78 = tpu.matmul %77, %45, %cst_57 {dimension_numbers = #tpu.dot_dimension_numbers<[1], [0], [0], [1], [0, 0, 1, 1], [], []>} : vector<64x44xf32>, vector<44x4xf32>, vector<64x4xf32> -> vector<64x4xf32>
    %79 = vector.broadcast %46 : vector<1x4xf32> to vector<64x4xf32>
    %80 = arith.addf %78, %79 : vector<64x4xf32>
    %c0_58 = arith.constant 0 : index
    %c0_59 = arith.constant 0 : index
    %c0_60 = arith.constant 0 : index
    %c0_61 = arith.constant 0 : index
    %81 = vector.load %arg2[%c0_58, %c0_59, %c0_60, %c0_61] : memref<1x8x8x4xf32, #tpu.memory_space<vmem>>, vector<1x8x8x4xf32>
    %82 = vector.shape_cast %81 : vector<1x8x8x4xf32> to vector<8x8x4xf32>
    %83 = vector.shape_cast %82 : vector<8x8x4xf32> to vector<64x4xf32>
    %84 = arith.addf %80, %83 : vector<64x4xf32>
    %85 = vector.shape_cast %84 : vector<64x4xf32> to vector<8x8x4xf32>
    %c0_62 = arith.constant 0 : index
    %c0_63 = arith.constant 0 : index
    %86 = vector.load %arg7[%c0_62, %c0_63] : memref<36x4xf32, #tpu.memory_space<vmem>>, vector<36x4xf32>
    %c0_64 = arith.constant 0 : index
    %c0_65 = arith.constant 0 : index
    %87 = vector.load %arg8[%c0_64, %c0_65] : memref<1x4xf32, #tpu.memory_space<vmem>>, vector<1x4xf32>
    %cst_66 = arith.constant 0.000000e+00 : f32
    %88 = vector.broadcast %cst_66 : f32 to vector<8x8x4xf32>
    %89 = arith.maximumf %85, %88 : vector<8x8x4xf32>
    %c1_67 = arith.constant 1 : index
    %c1_68 = arith.constant 1 : index
    %c0_69 = arith.constant 0 : index
    %90 = vector.load %arg13[%c1_67, %c1_68, %c0_69] : memref<10x10x8xf32, #tpu.memory_space<vmem>>, vector<8x8x4xf32>
    tpu.vector_store %arg13[%c1_67, %c1_68, %c0_69], %89 {strides = array<i32>} : memref<10x10x8xf32, #tpu.memory_space<vmem>>, vector<8x8x4xf32>,
    %c0_70 = arith.constant 0 : index
    %c0_71 = arith.constant 0 : index
    %c0_72 = arith.constant 0 : index
    %91 = vector.load %arg13[%c0_70, %c0_71, %c0_72] : memref<10x10x8xf32, #tpu.memory_space<vmem>>, vector<10x10x8xf32>
    %92 = vector.extract_strided_slice %91 {offsets = [0, 0, 0], sizes = [8, 8, 4], strides = [1, 1, 1]} : vector<10x10x8xf32> to vector<8x8x4xf32>
    %93 = vector.shape_cast %92 : vector<8x8x4xf32> to vector<64x4xf32>
    %c0_73 = arith.constant 0 : index
    %c0_74 = arith.constant 0 : index
    %94 = vector.load %arg14[%c0_73, %c0_74] : memref<64x72xf32, #tpu.memory_space<vmem>>, vector<64x4xf32>
    tpu.vector_store %arg14[%c0_73, %c0_74], %93 {strides = array<i32>} : memref<64x72xf32, #tpu.memory_space<vmem>>, vector<64x4xf32>,
    %95 = vector.extract_strided_slice %91 {offsets = [0, 1, 0], sizes = [8, 8, 4], strides = [1, 1, 1]} : vector<10x10x8xf32> to vector<8x8x4xf32>
    %96 = vector.shape_cast %95 : vector<8x8x4xf32> to vector<64x4xf32>
    %c0_75 = arith.constant 0 : index
    %c4_76 = arith.constant 4 : index
    %97 = vector.load %arg14[%c0_75, %c4_76] : memref<64x72xf32, #tpu.memory_space<vmem>>, vector<64x4xf32>
    tpu.vector_store %arg14[%c0_75, %c4_76], %96 {strides = array<i32>} : memref<64x72xf32, #tpu.memory_space<vmem>>, vector<64x4xf32>,
    %98 = vector.extract_strided_slice %91 {offsets = [0, 2, 0], sizes = [8, 8, 4], strides = [1, 1, 1]} : vector<10x10x8xf32> to vector<8x8x4xf32>
    %99 = vector.shape_cast %98 : vector<8x8x4xf32> to vector<64x4xf32>
    %c0_77 = arith.constant 0 : index
    %c8_78 = arith.constant 8 : index
    %100 = vector.load %arg14[%c0_77, %c8_78] : memref<64x72xf32, #tpu.memory_space<vmem>>, vector<64x4xf32>
    tpu.vector_store %arg14[%c0_77, %c8_78], %99 {strides = array<i32>} : memref<64x72xf32, #tpu.memory_space<vmem>>, vector<64x4xf32>,
    %101 = vector.extract_strided_slice %91 {offsets = [1, 0, 0], sizes = [8, 8, 4], strides = [1, 1, 1]} : vector<10x10x8xf32> to vector<8x8x4xf32>
    %102 = vector.shape_cast %101 : vector<8x8x4xf32> to vector<64x4xf32>
    %c0_79 = arith.constant 0 : index
    %c12_80 = arith.constant 12 : index
    %103 = vector.load %arg14[%c0_79, %c12_80] : memref<64x72xf32, #tpu.memory_space<vmem>>, vector<64x4xf32>
    tpu.vector_store %arg14[%c0_79, %c12_80], %102 {strides = array<i32>} : memref<64x72xf32, #tpu.memory_space<vmem>>, vector<64x4xf32>,
    %104 = vector.extract_strided_slice %91 {offsets = [1, 1, 0], sizes = [8, 8, 4], strides = [1, 1, 1]} : vector<10x10x8xf32> to vector<8x8x4xf32>
    %105 = vector.shape_cast %104 : vector<8x8x4xf32> to vector<64x4xf32>
    %c0_81 = arith.constant 0 : index
    %c16_82 = arith.constant 16 : index
    %106 = vector.load %arg14[%c0_81, %c16_82] : memref<64x72xf32, #tpu.memory_space<vmem>>, vector<64x4xf32>
    tpu.vector_store %arg14[%c0_81, %c16_82], %105 {strides = array<i32>} : memref<64x72xf32, #tpu.memory_space<vmem>>, vector<64x4xf32>,
    %107 = vector.extract_strided_slice %91 {offsets = [1, 2, 0], sizes = [8, 8, 4], strides = [1, 1, 1]} : vector<10x10x8xf32> to vector<8x8x4xf32>
    %108 = vector.shape_cast %107 : vector<8x8x4xf32> to vector<64x4xf32>
    %c0_83 = arith.constant 0 : index
    %c20_84 = arith.constant 20 : index
    %109 = vector.load %arg14[%c0_83, %c20_84] : memref<64x72xf32, #tpu.memory_space<vmem>>, vector<64x4xf32>
    tpu.vector_store %arg14[%c0_83, %c20_84], %108 {strides = array<i32>} : memref<64x72xf32, #tpu.memory_space<vmem>>, vector<64x4xf32>,
    %110 = vector.extract_strided_slice %91 {offsets = [2, 0, 0], sizes = [8, 8, 4], strides = [1, 1, 1]} : vector<10x10x8xf32> to vector<8x8x4xf32>
    %111 = vector.shape_cast %110 : vector<8x8x4xf32> to vector<64x4xf32>
    %c0_85 = arith.constant 0 : index
    %c24_86 = arith.constant 24 : index
    %112 = vector.load %arg14[%c0_85, %c24_86] : memref<64x72xf32, #tpu.memory_space<vmem>>, vector<64x4xf32>
    tpu.vector_store %arg14[%c0_85, %c24_86], %111 {strides = array<i32>} : memref<64x72xf32, #tpu.memory_space<vmem>>, vector<64x4xf32>,
    %113 = vector.extract_strided_slice %91 {offsets = [2, 1, 0], sizes = [8, 8, 4], strides = [1, 1, 1]} : vector<10x10x8xf32> to vector<8x8x4xf32>
    %114 = vector.shape_cast %113 : vector<8x8x4xf32> to vector<64x4xf32>
    %c0_87 = arith.constant 0 : index
    %c28_88 = arith.constant 28 : index
    %115 = vector.load %arg14[%c0_87, %c28_88] : memref<64x72xf32, #tpu.memory_space<vmem>>, vector<64x4xf32>
    tpu.vector_store %arg14[%c0_87, %c28_88], %114 {strides = array<i32>} : memref<64x72xf32, #tpu.memory_space<vmem>>, vector<64x4xf32>,
    %116 = vector.extract_strided_slice %91 {offsets = [2, 2, 0], sizes = [8, 8, 4], strides = [1, 1, 1]} : vector<10x10x8xf32> to vector<8x8x4xf32>
    %117 = vector.shape_cast %116 : vector<8x8x4xf32> to vector<64x4xf32>
    %c0_89 = arith.constant 0 : index
    %c32_90 = arith.constant 32 : index
    %118 = vector.load %arg14[%c0_89, %c32_90] : memref<64x72xf32, #tpu.memory_space<vmem>>, vector<64x4xf32>
    tpu.vector_store %arg14[%c0_89, %c32_90], %117 {strides = array<i32>} : memref<64x72xf32, #tpu.memory_space<vmem>>, vector<64x4xf32>,
    %c0_91 = arith.constant 0 : index
    %c0_92 = arith.constant 0 : index
    %119 = vector.load %arg14[%c0_91, %c0_92] : memref<64x72xf32, #tpu.memory_space<vmem>>, vector<64x36xf32>
    %cst_93 = arith.constant dense<0.000000e+00> : vector<64x4xf32>
    %120 = tpu.matmul %119, %86, %cst_93 {dimension_numbers = #tpu.dot_dimension_numbers<[1], [0], [0], [1], [0, 0, 1, 1], [], []>} : vector<64x36xf32>, vector<36x4xf32>, vector<64x4xf32> -> vector<64x4xf32>
    %121 = vector.broadcast %87 : vector<1x4xf32> to vector<64x4xf32>
    %122 = arith.addf %120, %121 : vector<64x4xf32>
    %cst_94 = arith.constant 0.000000e+00 : f32
    %123 = vector.broadcast %cst_94 : f32 to vector<64x4xf32>
    %124 = arith.maximumf %122, %123 : vector<64x4xf32>
    %125 = vector.shape_cast %124 : vector<64x4xf32> to vector<8x8x4xf32>
    %c0_95 = arith.constant 0 : index
    %c0_96 = arith.constant 0 : index
    %126 = vector.load %arg9[%c0_95, %c0_96] : memref<36x4xf32, #tpu.memory_space<vmem>>, vector<36x4xf32>
    %c0_97 = arith.constant 0 : index
    %c0_98 = arith.constant 0 : index
    %127 = vector.load %arg10[%c0_97, %c0_98] : memref<1x4xf32, #tpu.memory_space<vmem>>, vector<1x4xf32>
    %c1_99 = arith.constant 1 : index
    %c1_100 = arith.constant 1 : index
    %c0_101 = arith.constant 0 : index
    %128 = vector.load %arg13[%c1_99, %c1_100, %c0_101] : memref<10x10x8xf32, #tpu.memory_space<vmem>>, vector<8x8x4xf32>
    tpu.vector_store %arg13[%c1_99, %c1_100, %c0_101], %125 {strides = array<i32>} : memref<10x10x8xf32, #tpu.memory_space<vmem>>, vector<8x8x4xf32>,
    %c0_102 = arith.constant 0 : index
    %c0_103 = arith.constant 0 : index
    %c0_104 = arith.constant 0 : index
    %129 = vector.load %arg13[%c0_102, %c0_103, %c0_104] : memref<10x10x8xf32, #tpu.memory_space<vmem>>, vector<10x10x8xf32>
    %130 = vector.extract_strided_slice %129 {offsets = [0, 0, 0], sizes = [8, 8, 4], strides = [1, 1, 1]} : vector<10x10x8xf32> to vector<8x8x4xf32>
    %131 = vector.shape_cast %130 : vector<8x8x4xf32> to vector<64x4xf32>
    %c0_105 = arith.constant 0 : index
    %c0_106 = arith.constant 0 : index
    %132 = vector.load %arg14[%c0_105, %c0_106] : memref<64x72xf32, #tpu.memory_space<vmem>>, vector<64x4xf32>
    tpu.vector_store %arg14[%c0_105, %c0_106], %131 {strides = array<i32>} : memref<64x72xf32, #tpu.memory_space<vmem>>, vector<64x4xf32>,
    %133 = vector.extract_strided_slice %129 {offsets = [0, 1, 0], sizes = [8, 8, 4], strides = [1, 1, 1]} : vector<10x10x8xf32> to vector<8x8x4xf32>
    %134 = vector.shape_cast %133 : vector<8x8x4xf32> to vector<64x4xf32>
    %c0_107 = arith.constant 0 : index
    %c4_108 = arith.constant 4 : index
    %135 = vector.load %arg14[%c0_107, %c4_108] : memref<64x72xf32, #tpu.memory_space<vmem>>, vector<64x4xf32>
    tpu.vector_store %arg14[%c0_107, %c4_108], %134 {strides = array<i32>} : memref<64x72xf32, #tpu.memory_space<vmem>>, vector<64x4xf32>,
    %136 = vector.extract_strided_slice %129 {offsets = [0, 2, 0], sizes = [8, 8, 4], strides = [1, 1, 1]} : vector<10x10x8xf32> to vector<8x8x4xf32>
    %137 = vector.shape_cast %136 : vector<8x8x4xf32> to vector<64x4xf32>
    %c0_109 = arith.constant 0 : index
    %c8_110 = arith.constant 8 : index
    %138 = vector.load %arg14[%c0_109, %c8_110] : memref<64x72xf32, #tpu.memory_space<vmem>>, vector<64x4xf32>
    tpu.vector_store %arg14[%c0_109, %c8_110], %137 {strides = array<i32>} : memref<64x72xf32, #tpu.memory_space<vmem>>, vector<64x4xf32>,
    %139 = vector.extract_strided_slice %129 {offsets = [1, 0, 0], sizes = [8, 8, 4], strides = [1, 1, 1]} : vector<10x10x8xf32> to vector<8x8x4xf32>
    %140 = vector.shape_cast %139 : vector<8x8x4xf32> to vector<64x4xf32>
    %c0_111 = arith.constant 0 : index
    %c12_112 = arith.constant 12 : index
    %141 = vector.load %arg14[%c0_111, %c12_112] : memref<64x72xf32, #tpu.memory_space<vmem>>, vector<64x4xf32>
    tpu.vector_store %arg14[%c0_111, %c12_112], %140 {strides = array<i32>} : memref<64x72xf32, #tpu.memory_space<vmem>>, vector<64x4xf32>,
    %142 = vector.extract_strided_slice %129 {offsets = [1, 1, 0], sizes = [8, 8, 4], strides = [1, 1, 1]} : vector<10x10x8xf32> to vector<8x8x4xf32>
    %143 = vector.shape_cast %142 : vector<8x8x4xf32> to vector<64x4xf32>
    %c0_113 = arith.constant 0 : index
    %c16_114 = arith.constant 16 : index
    %144 = vector.load %arg14[%c0_113, %c16_114] : memref<64x72xf32, #tpu.memory_space<vmem>>, vector<64x4xf32>
    tpu.vector_store %arg14[%c0_113, %c16_114], %143 {strides = array<i32>} : memref<64x72xf32, #tpu.memory_space<vmem>>, vector<64x4xf32>,
    %145 = vector.extract_strided_slice %129 {offsets = [1, 2, 0], sizes = [8, 8, 4], strides = [1, 1, 1]} : vector<10x10x8xf32> to vector<8x8x4xf32>
    %146 = vector.shape_cast %145 : vector<8x8x4xf32> to vector<64x4xf32>
    %c0_115 = arith.constant 0 : index
    %c20_116 = arith.constant 20 : index
    %147 = vector.load %arg14[%c0_115, %c20_116] : memref<64x72xf32, #tpu.memory_space<vmem>>, vector<64x4xf32>
    tpu.vector_store %arg14[%c0_115, %c20_116], %146 {strides = array<i32>} : memref<64x72xf32, #tpu.memory_space<vmem>>, vector<64x4xf32>,
    %148 = vector.extract_strided_slice %129 {offsets = [2, 0, 0], sizes = [8, 8, 4], strides = [1, 1, 1]} : vector<10x10x8xf32> to vector<8x8x4xf32>
    %149 = vector.shape_cast %148 : vector<8x8x4xf32> to vector<64x4xf32>
    %c0_117 = arith.constant 0 : index
    %c24_118 = arith.constant 24 : index
    %150 = vector.load %arg14[%c0_117, %c24_118] : memref<64x72xf32, #tpu.memory_space<vmem>>, vector<64x4xf32>
    tpu.vector_store %arg14[%c0_117, %c24_118], %149 {strides = array<i32>} : memref<64x72xf32, #tpu.memory_space<vmem>>, vector<64x4xf32>,
    %151 = vector.extract_strided_slice %129 {offsets = [2, 1, 0], sizes = [8, 8, 4], strides = [1, 1, 1]} : vector<10x10x8xf32> to vector<8x8x4xf32>
    %152 = vector.shape_cast %151 : vector<8x8x4xf32> to vector<64x4xf32>
    %c0_119 = arith.constant 0 : index
    %c28_120 = arith.constant 28 : index
    %153 = vector.load %arg14[%c0_119, %c28_120] : memref<64x72xf32, #tpu.memory_space<vmem>>, vector<64x4xf32>
    tpu.vector_store %arg14[%c0_119, %c28_120], %152 {strides = array<i32>} : memref<64x72xf32, #tpu.memory_space<vmem>>, vector<64x4xf32>,
    %154 = vector.extract_strided_slice %129 {offsets = [2, 2, 0], sizes = [8, 8, 4], strides = [1, 1, 1]} : vector<10x10x8xf32> to vector<8x8x4xf32>
    %155 = vector.shape_cast %154 : vector<8x8x4xf32> to vector<64x4xf32>
    %c0_121 = arith.constant 0 : index
    %c32_122 = arith.constant 32 : index
    %156 = vector.load %arg14[%c0_121, %c32_122] : memref<64x72xf32, #tpu.memory_space<vmem>>, vector<64x4xf32>
    tpu.vector_store %arg14[%c0_121, %c32_122], %155 {strides = array<i32>} : memref<64x72xf32, #tpu.memory_space<vmem>>, vector<64x4xf32>,
    %c0_123 = arith.constant 0 : index
    %c0_124 = arith.constant 0 : index
    %157 = vector.load %arg14[%c0_123, %c0_124] : memref<64x72xf32, #tpu.memory_space<vmem>>, vector<64x36xf32>
    %cst_125 = arith.constant dense<0.000000e+00> : vector<64x4xf32>
    %158 = tpu.matmul %157, %126, %cst_125 {dimension_numbers = #tpu.dot_dimension_numbers<[1], [0], [0], [1], [0, 0, 1, 1], [], []>} : vector<64x36xf32>, vector<36x4xf32>, vector<64x4xf32> -> vector<64x4xf32>
    %159 = vector.broadcast %127 : vector<1x4xf32> to vector<64x4xf32>
    %160 = arith.addf %158, %159 : vector<64x4xf32>
    %161 = arith.addf %160, %84 : vector<64x4xf32>
    %162 = tpu.transpose %161, [1, 0] : vector<64x4xf32> -> vector<4x64xf32>
    %c0_126 = arith.constant 0 : index
    %c0_127 = arith.constant 0 : index
    %163 = vector.load %arg11[%c0_126, %c0_127] : memref<64x192xf32, #tpu.memory_space<vmem>>, vector<64x192xf32>
    %cst_128 = arith.constant dense<0.000000e+00> : vector<4x192xf32>
    %164 = tpu.matmul %162, %163, %cst_128 {dimension_numbers = #tpu.dot_dimension_numbers<[1], [0], [0], [1], [0, 0, 1, 1], [], []>} : vector<4x64xf32>, vector<64x192xf32>, vector<4x192xf32> -> vector<4x192xf32>
    %c0_129 = arith.constant 0 : index
    %c0_130 = arith.constant 0 : index
    %c0_131 = arith.constant 0 : index
    %165 = vector.load %arg12[%c0_129, %c0_130, %c0_131] : memref<1x4x192xf32, #tpu.memory_space<vmem>>, vector<1x4x192xf32>
    %166 = vector.shape_cast %165 : vector<1x4x192xf32> to vector<4x192xf32>
    %167 = vector.shape_cast %164 : vector<4x192xf32> to vector<1x4x192xf32>
    tpu.vector_store %arg12[%c0_129, %c0_130, %c0_131], %167 {strides = array<i32>} : memref<1x4x192xf32, #tpu.memory_space<vmem>>, vector<1x4x192xf32>,
    return
  }
  func.func @transform_0(%arg0: i32) -> (i32, i32, i32, i32) {
    %c0_i32 = arith.constant 0 : i32
    %c0_i32_0 = arith.constant 0 : i32
    %c0_i32_1 = arith.constant 0 : i32
    %c0_i32_2 = arith.constant 0 : i32
    return %arg0, %c0_i32, %c0_i32_0, %c0_i32_1 : i32, i32, i32, i32
  }
  func.func @transform_1(%arg0: i32) -> (i32, i32, i32, i32) {
    %c0_i32 = arith.constant 0 : i32
    %c0_i32_0 = arith.constant 0 : i32
    %c0_i32_1 = arith.constant 0 : i32
    %c0_i32_2 = arith.constant 0 : i32
    return %arg0, %c0_i32, %c0_i32_0, %c0_i32_1 : i32, i32, i32, i32
  }
  func.func @transform_2(%arg0: i32) -> (i32, i32) {
    %c0_i32 = arith.constant 0 : i32
    %c0_i32_0 = arith.constant 0 : i32
    %c0_i32_1 = arith.constant 0 : i32
    return %c0_i32, %c0_i32_0 : i32, i32
  }
  func.func @transform_3(%arg0: i32) -> (i32, i32) {
    %c0_i32 = arith.constant 0 : i32
    %c0_i32_0 = arith.constant 0 : i32
    %c0_i32_1 = arith.constant 0 : i32
    return %c0_i32, %c0_i32_0 : i32, i32
  }
  func.func @transform_4(%arg0: i32) -> (i32, i32) {
    %c0_i32 = arith.constant 0 : i32
    %c0_i32_0 = arith.constant 0 : i32
    %c0_i32_1 = arith.constant 0 : i32
    return %c0_i32, %c0_i32_0 : i32, i32
  }
  func.func @transform_5(%arg0: i32) -> (i32, i32) {
    %c0_i32 = arith.constant 0 : i32
    %c0_i32_0 = arith.constant 0 : i32
    %c0_i32_1 = arith.constant 0 : i32
    return %c0_i32, %c0_i32_0 : i32, i32
  }
  func.func @transform_6(%arg0: i32) -> (i32, i32) {
    %c0_i32 = arith.constant 0 : i32
    %c0_i32_0 = arith.constant 0 : i32
    %c0_i32_1 = arith.constant 0 : i32
    return %c0_i32, %c0_i32_0 : i32, i32
  }
  func.func @transform_7(%arg0: i32) -> (i32, i32) {
    %c0_i32 = arith.constant 0 : i32
    %c0_i32_0 = arith.constant 0 : i32
    %c0_i32_1 = arith.constant 0 : i32
    return %c0_i32, %c0_i32_0 : i32, i32
  }
  func.func @transform_8(%arg0: i32) -> (i32, i32) {
    %c0_i32 = arith.constant 0 : i32
    %c0_i32_0 = arith.constant 0 : i32
    %c0_i32_1 = arith.constant 0 : i32
    return %c0_i32, %c0_i32_0 : i32, i32
  }
  func.func @transform_9(%arg0: i32) -> (i32, i32) {
    %c0_i32 = arith.constant 0 : i32
    %c0_i32_0 = arith.constant 0 : i32
    %c0_i32_1 = arith.constant 0 : i32
    return %c0_i32, %c0_i32_0 : i32, i32
  }
  func.func @transform_10(%arg0: i32) -> (i32, i32) {
    %c0_i32 = arith.constant 0 : i32
    %c0_i32_0 = arith.constant 0 : i32
    %c0_i32_1 = arith.constant 0 : i32
    return %c0_i32, %c0_i32_0 : i32, i32
  }
  func.func @transform_11(%arg0: i32) -> (i32, i32, i32) {
    %c0_i32 = arith.constant 0 : i32
    %c0_i32_0 = arith.constant 0 : i32
    %c0_i32_1 = arith.constant 0 : i32
    return %arg0, %c0_i32, %c0_i32_0 : i32, i32, i32
  }
}

</mosaic_0001>

<llo_original>
// kernel: tpu_custom_call.1
$region0: #{tpu_custom_call.1}
  #allocation0 [shape = 'u32[]', space=smem, size = 0x4, offset = 0x4, fixed_abs, tag = 'smem constant byte address 0x4 - core index']
  #allocation1 [shape = 'u32[144,128]{1,0:T(1,128)}', space=vmem, size = 0x12000, scoped, tag = 'internal scratch']
  #allocation2 [shape = 'f32[10,10,8]{2,1,0:T(8,128)}', space=vmem, size = 0x14000, scoped, tag = 'scratch operand']
  #allocation3 [shape = 'f32[64,72]{1,0:T(8,128)}', space=vmem, size = 0x8000, scoped, tag = 'scratch operand']
  %s0 = inlined_call_operand.vmem [shape: f32[2,8,8,8], index: 0, kind: input, shape index: {}]
  %s1 = inlined_call_operand.vmem [shape: f32[2,8,8,4], index: 1, kind: input, shape index: {}]
  %s2 = inlined_call_operand.vmem [shape: f32[72,4], index: 2, kind: input, shape index: {}]
  %s3 = inlined_call_operand.vmem [shape: f32[1,4], index: 3, kind: input, shape index: {}]
  %s4 = inlined_call_operand.vmem [shape: f32[44,4], index: 4, kind: input, shape index: {}]
  %s5 = inlined_call_operand.vmem [shape: f32[1,4], index: 5, kind: input, shape index: {}]
  %s6 = inlined_call_operand.vmem [shape: f32[36,4], index: 6, kind: input, shape index: {}]
  %s7 = inlined_call_operand.vmem [shape: f32[1,4], index: 7, kind: input, shape index: {}]
  %s8 = inlined_call_operand.vmem [shape: f32[36,4], index: 8, kind: input, shape index: {}]
  %s9 = inlined_call_operand.vmem [shape: f32[1,4], index: 9, kind: input, shape index: {}]
  %s10 = inlined_call_operand.vmem [shape: f32[64,192], index: 10, kind: input, shape index: {}]
  %s11 = inlined_call_operand.hbm [shape: f32[2,4,192], index: 11, kind: output, shape index: {}]
  %s12 = sld [smem:[#allocation0]]
  $region77: #{tpu_custom_call.1} parent=0
    _
  %s14 = ssub.s32 1, %s12
  %s15 = scalar_select 0, %s14, %s12
  $region1: #{tpu_custom_call.1} parent=0
    #allocation4 [shape = 'u8[8192]{0}', space=vmem, size = 0x2000, scoped, tag = 'output window, operand 0']
    #allocation5 [shape = 's32[2]{0}', space=sflag, size = 0x8, scoped, tag = 'scoped memory for tpu_custom_call.1']
    %16 = vsyncpa [#allocation5], 0
    %s17 = scalar_lea.sflag [#allocation5], 1
    %18 = vsyncpa %s17, 0
    loop: start=0, step=1, limit=4
    $region2: #{tpu_custom_call.1} parent=1 // loop_pre_header
      _
    $region3: #{tpu_custom_call.1} parent=1 // loop_header
      %s20 = sphi 0, %s24
      %p21 = scmp.ge.s32.totalorder %s20, 4
      %s30 = sphi 0, %s32
      %s33 = sphi 0, %s30
      %s34 = sphi 0, %s33
      %s50 = sphi 0, %s34
      %s56 = sphi 0, %s58
      %s59 = sphi 0, %s56
      %s60 = sphi 0, %s59
      %s76 = sphi 0, %s60
      %s80 = sphi 0, %s80
      %s82 = sphi 0, %s80
      %s83 = sphi 0, %s82
      %s97 = sphi 0, %s83
      %s101 = sphi 0, %s101
      %s103 = sphi 0, %s101
      %s104 = sphi 0, %s103
      %s118 = sphi 0, %s104
      %s122 = sphi 0, %s122
      %s124 = sphi 0, %s122
      %s125 = sphi 0, %s124
      %s139 = sphi 0, %s125
      %s143 = sphi 0, %s143
      %s145 = sphi 0, %s143
      %s146 = sphi 0, %s145
      %s160 = sphi 0, %s146
      %s164 = sphi 0, %s164
      %s166 = sphi 0, %s164
      %s167 = sphi 0, %s166
      %s181 = sphi 0, %s167
      %s185 = sphi 0, %s185
      %s187 = sphi 0, %s185
      %s188 = sphi 0, %s187
      %s202 = sphi 0, %s188
      %s206 = sphi 0, %s206
      %s208 = sphi 0, %s206
      %s209 = sphi 0, %s208
      %s223 = sphi 0, %s209
      %s227 = sphi 0, %s227
      %s229 = sphi 0, %s227
      %s230 = sphi 0, %s229
      %s244 = sphi 0, %s230
      %s248 = sphi 0, %s248
      %s250 = sphi 0, %s248
      %s251 = sphi 0, %s250
      %s265 = sphi 0, %s251
      %s271 = sphi 0, %s273
      %s274 = sphi 0, %s271
      %s275 = sphi 0, %s274
      %s291 = sphi 0, %s275
    $region4: #{tpu_custom_call.1} parent=1 // loop_header_branch
      %23 = sbr.rel (%p21) target = $region8
    $region5: #{tpu_custom_call.1} parent=1 // loop_body
      %s25 = ssub.s32 %s20, 1
      %s26 = ssub.s32 %s20, 2
      %s27 = sadd.s32 %s20, 1
      %s28 = ssub.s32 %s20, %s27
      %p29 = scmp.eq.s32.totalorder %s28, 0
      %s31 = sadd.s32 %s30, 1
      %s32 = scalar_select %p29, %s30, %s31
      %p35 = pneg %p29
      %p36 = scmp.eq.s32.totalorder %s20, 1
      %p37 = por %p35, %p36
      %p38 = scmp.ne.s32.totalorder %s30, %s33
      %p39 = scmp.eq.s32.totalorder %s20, 0
      %p40 = por %p38, %p39
      %p41 = scmp.ne.s32.totalorder %s30, %s33
      %p42 = scmp.eq.s32.totalorder %s25, 1
      %p43 = por %p41, %p42
      %p44 = scmp.ne.s32.totalorder %s33, %s34
      %p45 = scmp.eq.s32.totalorder %s25, 0
      %p46 = por %p44, %p45
      %p47 = scmp.ne.s32.totalorder %s33, %s34
      %p48 = scmp.eq.s32.totalorder %s26, 1
      %p49 = por %p47, %p48
      %p51 = scmp.ne.s32.totalorder %s34, %s50
      %p52 = scmp.eq.s32.totalorder %s26, 0
      %p53 = por %p51, %p52
      %s54 = ssub.s32 %s20, %s27
      %p55 = scmp.eq.s32.totalorder %s54, 0
      %s57 = sadd.s32 %s56, 1
      %s58 = scalar_select %p55, %s56, %s57
      %p61 = pneg %p55
      %p62 = scmp.eq.s32.totalorder %s20, 1
      %p63 = por %p61, %p62
      %p64 = scmp.ne.s32.totalorder %s56, %s59
      %p65 = scmp.eq.s32.totalorder %s20, 0
      %p66 = por %p64, %p65
      %p67 = scmp.ne.s32.totalorder %s56, %s59
      %p68 = scmp.eq.s32.totalorder %s25, 1
      %p69 = por %p67, %p68
      %p70 = scmp.ne.s32.totalorder %s59, %s60
      %p71 = scmp.eq.s32.totalorder %s25, 0
      %p72 = por %p70, %p71
      %p73 = scmp.ne.s32.totalorder %s59, %s60
      %p74 = scmp.eq.s32.totalorder %s26, 1
      %p75 = por %p73, %p74
      %p77 = scmp.ne.s32.totalorder %s60, %s76
      %p78 = scmp.eq.s32.totalorder %s26, 0
      %p79 = por %p77, %p78
      %s81 = sadd.s32 %s80, 1
      %p84 = scmp.eq.s32.totalorder %s20, 1
      %p85 = scmp.ne.s32.totalorder %s80, %s82
      %p86 = scmp.eq.s32.totalorder %s20, 0
      %p87 = por %p85, %p86
      %p88 = scmp.ne.s32.totalorder %s80, %s82
      %p89 = scmp.eq.s32.totalorder %s25, 1
      %p90 = por %p88, %p89
      %p91 = scmp.ne.s32.totalorder %s82, %s83
      %p92 = scmp.eq.s32.totalorder %s25, 0
      %p93 = por %p91, %p92
      %p94 = scmp.ne.s32.totalorder %s82, %s83
      %p95 = scmp.eq.s32.totalorder %s26, 1
      %p96 = por %p94, %p95
      %p98 = scmp.ne.s32.totalorder %s83, %s97
      %p99 = scmp.eq.s32.totalorder %s26, 0
      %p100 = por %p98, %p99
      %s102 = sadd.s32 %s101, 1
      %p105 = scmp.eq.s32.totalorder %s20, 1
      %p106 = scmp.ne.s32.totalorder %s101, %s103
      %p107 = scmp.eq.s32.totalorder %s20, 0
      %p108 = por %p106, %p107
      %p109 = scmp.ne.s32.totalorder %s101, %s103
      %p110 = scmp.eq.s32.totalorder %s25, 1
      %p111 = por %p109, %p110
      %p112 = scmp.ne.s32.totalorder %s103, %s104
      %p113 = scmp.eq.s32.totalorder %s25, 0
      %p114 = por %p112, %p113
      %p115 = scmp.ne.s32.totalorder %s103, %s104
      %p116 = scmp.eq.s32.totalorder %s26, 1
      %p117 = por %p115, %p116
      %p119 = scmp.ne.s32.totalorder %s104, %s118
      %p120 = scmp.eq.s32.totalorder %s26, 0
      %p121 = por %p119, %p120
      %s123 = sadd.s32 %s122, 1
      %p126 = scmp.eq.s32.totalorder %s20, 1
      %p127 = scmp.ne.s32.totalorder %s122, %s124
      %p128 = scmp.eq.s32.totalorder %s20, 0
      %p129 = por %p127, %p128
      %p130 = scmp.ne.s32.totalorder %s122, %s124
      %p131 = scmp.eq.s32.totalorder %s25, 1
      %p132 = por %p130, %p131
      %p133 = scmp.ne.s32.totalorder %s124, %s125
      %p134 = scmp.eq.s32.totalorder %s25, 0
      %p135 = por %p133, %p134
      %p136 = scmp.ne.s32.totalorder %s124, %s125
      %p137 = scmp.eq.s32.totalorder %s26, 1
      %p138 = por %p136, %p137
      %p140 = scmp.ne.s32.totalorder %s125, %s139
      %p141 = scmp.eq.s32.totalorder %s26, 0
      %p142 = por %p140, %p141
      %s144 = sadd.s32 %s143, 1
      %p147 = scmp.eq.s32.totalorder %s20, 1
      %p148 = scmp.ne.s32.totalorder %s143, %s145
      %p149 = scmp.eq.s32.totalorder %s20, 0
      %p150 = por %p148, %p149
      %p151 = scmp.ne.s32.totalorder %s143, %s145
      %p152 = scmp.eq.s32.totalorder %s25, 1
      %p153 = por %p151, %p152
      %p154 = scmp.ne.s32.totalorder %s145, %s146
      %p155 = scmp.eq.s32.totalorder %s25, 0
      %p156 = por %p154, %p155
      %p157 = scmp.ne.s32.totalorder %s145, %s146
      %p158 = scmp.eq.s32.totalorder %s26, 1
      %p159 = por %p157, %p158
      %p161 = scmp.ne.s32.totalorder %s146, %s160
      %p162 = scmp.eq.s32.totalorder %s26, 0
      %p163 = por %p161, %p162
      %s165 = sadd.s32 %s164, 1
      %p168 = scmp.eq.s32.totalorder %s20, 1
      %p169 = scmp.ne.s32.totalorder %s164, %s166
      %p170 = scmp.eq.s32.totalorder %s20, 0
      %p171 = por %p169, %p170
      %p172 = scmp.ne.s32.totalorder %s164, %s166
      %p173 = scmp.eq.s32.totalorder %s25, 1
      %p174 = por %p172, %p173
      %p175 = scmp.ne.s32.totalorder %s166, %s167
      %p176 = scmp.eq.s32.totalorder %s25, 0
      %p177 = por %p175, %p176
      %p178 = scmp.ne.s32.totalorder %s166, %s167
      %p179 = scmp.eq.s32.totalorder %s26, 1
      %p180 = por %p178, %p179
      %p182 = scmp.ne.s32.totalorder %s167, %s181
      %p183 = scmp.eq.s32.totalorder %s26, 0
      %p184 = por %p182, %p183
      %s186 = sadd.s32 %s185, 1
      %p189 = scmp.eq.s32.totalorder %s20, 1
      %p190 = scmp.ne.s32.totalorder %s185, %s187
      %p191 = scmp.eq.s32.totalorder %s20, 0
      %p192 = por %p190, %p191
      %p193 = scmp.ne.s32.totalorder %s185, %s187
      %p194 = scmp.eq.s32.totalorder %s25, 1
      %p195 = por %p193, %p194
      %p196 = scmp.ne.s32.totalorder %s187, %s188
      %p197 = scmp.eq.s32.totalorder %s25, 0
      %p198 = por %p196, %p197
      %p199 = scmp.ne.s32.totalorder %s187, %s188
      %p200 = scmp.eq.s32.totalorder %s26, 1
      %p201 = por %p199, %p200
      %p203 = scmp.ne.s32.totalorder %s188, %s202
      %p204 = scmp.eq.s32.totalorder %s26, 0
      %p205 = por %p203, %p204
      %s207 = sadd.s32 %s206, 1
      %p210 = scmp.eq.s32.totalorder %s20, 1
      %p211 = scmp.ne.s32.totalorder %s206, %s208
      %p212 = scmp.eq.s32.totalorder %s20, 0
      %p213 = por %p211, %p212
      %p214 = scmp.ne.s32.totalorder %s206, %s208
      %p215 = scmp.eq.s32.totalorder %s25, 1
      %p216 = por %p214, %p215
      %p217 = scmp.ne.s32.totalorder %s208, %s209
      %p218 = scmp.eq.s32.totalorder %s25, 0
      %p219 = por %p217, %p218
      %p220 = scmp.ne.s32.totalorder %s208, %s209
      %p221 = scmp.eq.s32.totalorder %s26, 1
      %p222 = por %p220, %p221
      %p224 = scmp.ne.s32.totalorder %s209, %s223
      %p225 = scmp.eq.s32.totalorder %s26, 0
      %p226 = por %p224, %p225
      %s228 = sadd.s32 %s227, 1
      %p231 = scmp.eq.s32.totalorder %s20, 1
      %p232 = scmp.ne.s32.totalorder %s227, %s229
      %p233 = scmp.eq.s32.totalorder %s20, 0
      %p234 = por %p232, %p233
      %p235 = scmp.ne.s32.totalorder %s227, %s229
      %p236 = scmp.eq.s32.totalorder %s25, 1
      %p237 = por %p235, %p236
      %p238 = scmp.ne.s32.totalorder %s229, %s230
      %p239 = scmp.eq.s32.totalorder %s25, 0
      %p240 = por %p238, %p239
      %p241 = scmp.ne.s32.totalorder %s229, %s230
      %p242 = scmp.eq.s32.totalorder %s26, 1
      %p243 = por %p241, %p242
      %p245 = scmp.ne.s32.totalorder %s230, %s244
      %p246 = scmp.eq.s32.totalorder %s26, 0
      %p247 = por %p245, %p246
      %s249 = sadd.s32 %s248, 1
      %p252 = scmp.eq.s32.totalorder %s20, 1
      %p253 = scmp.ne.s32.totalorder %s248, %s250
      %p254 = scmp.eq.s32.totalorder %s20, 0
      %p255 = por %p253, %p254
      %p256 = scmp.ne.s32.totalorder %s248, %s250
      %p257 = scmp.eq.s32.totalorder %s25, 1
      %p258 = por %p256, %p257
      %p259 = scmp.ne.s32.totalorder %s250, %s251
      %p260 = scmp.eq.s32.totalorder %s25, 0
      %p261 = por %p259, %p260
      %p262 = scmp.ne.s32.totalorder %s250, %s251
      %p263 = scmp.eq.s32.totalorder %s26, 1
      %p264 = por %p262, %p263
      %p266 = scmp.ne.s32.totalorder %s251, %s265
      %p267 = scmp.eq.s32.totalorder %s26, 0
      %p268 = por %p266, %p267
      %s269 = ssub.s32 %s20, %s27
      %p270 = scmp.eq.s32.totalorder %s269, 0
      %s272 = sadd.s32 %s271, 1
      %s273 = scalar_select %p270, %s271, %s272
      %p276 = pneg %p270
      %p277 = scmp.eq.s32.totalorder %s20, 1
      %p278 = por %p276, %p277
      %p279 = scmp.ne.s32.totalorder %s271, %s274
      %p280 = scmp.eq.s32.totalorder %s20, 0
      %p281 = por %p279, %p280
      %p282 = scmp.ne.s32.totalorder %s271, %s274
      %p283 = scmp.eq.s32.totalorder %s25, 1
      %p284 = por %p282, %p283
      %p285 = scmp.ne.s32.totalorder %s274, %s275
      %p286 = scmp.eq.s32.totalorder %s25, 0
      %p287 = por %p285, %p286
      %p288 = scmp.ne.s32.totalorder %s274, %s275
      %p289 = scmp.eq.s32.totalorder %s26, 1
      %p290 = por %p288, %p289
      %p292 = scmp.ne.s32.totalorder %s275, %s291
      %p293 = scmp.eq.s32.totalorder %s26, 0
      %p294 = por %p292, %p293
      %p295 = scmp.le.s32.totalorder 1, %s20
      %p296 = scmp.lt.s32.totalorder %s20, 3
      %p297 = pnand %p295, %p296
      %p298 = pneg %p297
      // Predicated region
      $region9: #{tpu_custom_call.1} parent=5 // pred_check
        _
      $region10: #{tpu_custom_call.1} parent=5 // pred_check_branch
        %300 = sbr.rel (%p297) target = $region12
      $region11: #{tpu_custom_call.1} parent=5 // pred_region
        %s301 = ssub.s32 %s20, 1
        // Predicated region
        $region13: #{tpu_custom_call.1} parent=11 // pred_check
          %p302 = pneg %p93
        $region14: #{tpu_custom_call.1} parent=11 // pred_check_branch
          %304 = sbr.rel (%p302) target = $region16
        $region15: #{tpu_custom_call.1} parent=11 // pred_region
          _
        $region16: #{tpu_custom_call.1} parent=11 // pred_fallthru
          _
        // Predicated region
        $region17: #{tpu_custom_call.1} parent=11 // pred_check
          %p305 = pneg %p114
        $region18: #{tpu_custom_call.1} parent=11 // pred_check_branch
          %307 = sbr.rel (%p305) target = $region20
        $region19: #{tpu_custom_call.1} parent=11 // pred_region
          _
        $region20: #{tpu_custom_call.1} parent=11 // pred_fallthru
          _
        // Predicated region
        $region21: #{tpu_custom_call.1} parent=11 // pred_check
          %p308 = pneg %p135
        $region22: #{tpu_custom_call.1} parent=11 // pred_check_branch
          %310 = sbr.rel (%p308) target = $region24
        $region23: #{tpu_custom_call.1} parent=11 // pred_region
          _
        $region24: #{tpu_custom_call.1} parent=11 // pred_fallthru
          _
        // Predicated region
        $region25: #{tpu_custom_call.1} parent=11 // pred_check
          %p311 = pneg %p156
        $region26: #{tpu_custom_call.1} parent=11 // pred_check_branch
          %313 = sbr.rel (%p311) target = $region28
        $region27: #{tpu_custom_call.1} parent=11 // pred_region
          _
        $region28: #{tpu_custom_call.1} parent=11 // pred_fallthru
          _
        // Predicated region
        $region29: #{tpu_custom_call.1} parent=11 // pred_check
          %p314 = pneg %p177
        $region30: #{tpu_custom_call.1} parent=11 // pred_check_branch
          %316 = sbr.rel (%p314) target = $region32
        $region31: #{tpu_custom_call.1} parent=11 // pred_region
          _
        $region32: #{tpu_custom_call.1} parent=11 // pred_fallthru
          _
        // Predicated region
        $region33: #{tpu_custom_call.1} parent=11 // pred_check
          %p317 = pneg %p198
        $region34: #{tpu_custom_call.1} parent=11 // pred_check_branch
          %319 = sbr.rel (%p317) target = $region36
        $region35: #{tpu_custom_call.1} parent=11 // pred_region
          _
        $region36: #{tpu_custom_call.1} parent=11 // pred_fallthru
          _
        // Predicated region
        $region37: #{tpu_custom_call.1} parent=11 // pred_check
          %p320 = pneg %p219
        $region38: #{tpu_custom_call.1} parent=11 // pred_check_branch
          %322 = sbr.rel (%p320) target = $region40
        $region39: #{tpu_custom_call.1} parent=11 // pred_region
          _
        $region40: #{tpu_custom_call.1} parent=11 // pred_fallthru
          _
        // Predicated region
        $region41: #{tpu_custom_call.1} parent=11 // pred_check
          %p323 = pneg %p240
        $region42: #{tpu_custom_call.1} parent=11 // pred_check_branch
          %325 = sbr.rel (%p323) target = $region44
        $region43: #{tpu_custom_call.1} parent=11 // pred_region
          _
        $region44: #{tpu_custom_call.1} parent=11 // pred_fallthru
          _
        // Predicated region
        $region45: #{tpu_custom_call.1} parent=11 // pred_check
          %p326 = pneg %p261
        $region46: #{tpu_custom_call.1} parent=11 // pred_check_branch
          %328 = sbr.rel (%p326) target = $region48
        $region47: #{tpu_custom_call.1} parent=11 // pred_region
          _
        $region48: #{tpu_custom_call.1} parent=11 // pred_fallthru
          _
      $region12: #{tpu_custom_call.1} parent=5 // pred_fallthru
        _
      %p329 = scmp.lt.s32.totalorder %s20, 2
      // Predicated region
      $region49: #{tpu_custom_call.1} parent=5 // pred_check
        %p330 = pneg %p329
      $region50: #{tpu_custom_call.1} parent=5 // pred_check_branch
        %332 = sbr.rel (%p330) target = $region52
      $region51: #{tpu_custom_call.1} parent=5 // pred_region
        // Predicated region
        $region53: #{tpu_custom_call.1} parent=51 // pred_check
          %p333 = pneg %p40
        $region54: #{tpu_custom_call.1} parent=51 // pred_check_branch
          %335 = sbr.rel (%p333) target = $region56
        $region55: #{tpu_custom_call.1} parent=51 // pred_region
          %p336 = scmp.lt.s32.totalorder %s20, 1
          %s337 = scalar_select %p336, %s20, 1
          %s338 = smul.addr %s337, 8
          %s339 = smul.addr %s338, 8
          %s340 = scalar_lea.vmem %s0, %s339
        $region56: #{tpu_custom_call.1} parent=51 // pred_fallthru
          _
        // Predicated region
        $region57: #{tpu_custom_call.1} parent=51 // pred_check
          %p341 = pneg %p66
        $region58: #{tpu_custom_call.1} parent=51 // pred_check_branch
          %343 = sbr.rel (%p341) target = $region60
        $region59: #{tpu_custom_call.1} parent=51 // pred_region
          %p344 = scmp.lt.s32.totalorder %s20, 1
          %s345 = scalar_select %p344, %s20, 1
          %s346 = smul.addr %s345, 8
          %s347 = smul.addr %s346, 8
          %s348 = scalar_lea.vmem %s1, %s347
        $region60: #{tpu_custom_call.1} parent=51 // pred_fallthru
          _
      $region52: #{tpu_custom_call.1} parent=5 // pred_fallthru
        _
      %p349 = scmp.le.s32.totalorder 1, %s20
      %p350 = scmp.lt.s32.totalorder %s20, 3
      %p351 = pnand %p349, %p350
      %p352 = pneg %p351
      // Predicated region
      $region61: #{tpu_custom_call.1} parent=5 // pred_check
        _
      $region62: #{tpu_custom_call.1} parent=5 // pred_check_branch
        %354 = sbr.rel (%p351) target = $region64
      $region63: #{tpu_custom_call.1} parent=5 // pred_region
        %s355 = ssub.s32 %s20, 1
        %p356 = scmp.lt.s32.totalorder %s25, 1
        %s357 = scalar_select %p356, %s25, 1
        %s358 = smul.addr %s357, 8
        %s359 = smul.addr %s358, 8
        %s360 = scalar_lea.vmem %s0, %s359
        %p361 = pneg %p46
        %p362 = pneg %p43
        %p363 = scmp.lt.s32.totalorder %s25, 1
        %s364 = scalar_select %p363, %s25, 1
        %s365 = smul.addr %s364, 8
        %s366 = smul.addr %s365, 8
        %s367 = scalar_lea.vmem %s1, %s366
        %p368 = pneg %p72
        %p369 = pneg %p69
        %p370 = pneg %p93
        %p371 = pneg %p90
        %p372 = pneg %p114
        %p373 = pneg %p111
        %p374 = pneg %p135
        %p375 = pneg %p132
        %p376 = pneg %p156
        %p377 = pneg %p153
        %p378 = pneg %p177
        %p379 = pneg %p174
        %p380 = pneg %p198
        %p381 = pneg %p195
        %p382 = pneg %p219
        %p383 = pneg %p216
        %p384 = pneg %p240
        %p385 = pneg %p237
        %p386 = pneg %p261
        %p387 = pneg %p258
        %p388 = pneg %p287
        %p389 = pneg %p284
        %s390 = sand.u32 %s274, 1
        %s391 = scalar_lea.sflag [#allocation5], %s390
        %s392 = sand.u32 %s274, 1
        %s393 = smul.addr %s392, 8
        %s394 = scalar_lea.vmem [#allocation4], %s393
        %p395 = scmp.lt.s32.totalorder %s25, 1
        %s396 = scalar_select %p395, %s25, 1
        %s397 = smul.addr %s396, 8
        %s398 = smul.addr %s397, 8
        %s399 = scalar_lea.vmem %s0, %s398
        %p400 = scmp.lt.s32.totalorder %s25, 1
        %s401 = scalar_select %p400, %s25, 1
        %s402 = smul.addr %s401, 8
        %s403 = smul.addr %s402, 8
        %s404 = scalar_lea.vmem %s1, %s403
        %vm405 = vcmask 64512
        %406 = vst.msk [vmem:[#allocation2] sm:$0xff] %vm405, 0.0
        %vm407 = vcmask 58368
        %408 = vst.msk [vmem:[#allocation2 + $0x8] sm:$0x3] %vm407, 0.0
        %409 = vst.msk [vmem:[#allocation2 + $0x10] sm:$0xff] %vm405, 0.0
        %410 = vst.msk [vmem:[#allocation2 + $0x18] sm:$0x3] %vm407, 0.0
        %411 = vst.msk [vmem:[#allocation2 + $0x20] sm:$0xff] %vm405, 0.0
        %412 = vst.msk [vmem:[#allocation2 + $0x28] sm:$0x3] %vm407, 0.0
        %413 = vst.msk [vmem:[#allocation2 + $0x30] sm:$0xff] %vm405, 0.0
        %414 = vst.msk [vmem:[#allocation2 + $0x38] sm:$0x3] %vm407, 0.0
        %415 = vst.msk [vmem:[#allocation2 + $0x40] sm:$0xff] %vm405, 0.0
        %416 = vst.msk [vmem:[#allocation2 + $0x48] sm:$0x3] %vm407, 0.0
        %417 = vst.msk [vmem:[#allocation2 + $0x50] sm:$0xff] %vm405, 0.0
        %418 = vst.msk [vmem:[#allocation2 + $0x58] sm:$0x3] %vm407, 0.0
        %419 = vst.msk [vmem:[#allocation2 + $0x60] sm:$0xff] %vm405, 0.0
        %420 = vst.msk [vmem:[#allocation2 + $0x68] sm:$0x3] %vm407, 0.0
        %421 = vst.msk [vmem:[#allocation2 + $0x70] sm:$0xff] %vm405, 0.0
        %422 = vst.msk [vmem:[#allocation2 + $0x78] sm:$0x3] %vm407, 0.0
        %423 = vst.msk [vmem:[#allocation2 + $0x80] sm:$0xff] %vm405, 0.0
        %424 = vst.msk [vmem:[#allocation2 + $0x88] sm:$0x3] %vm407, 0.0
        %425 = vst.msk [vmem:[#allocation2 + $0x90] sm:$0xff] %vm405, 0.0
        %426 = vst.msk [vmem:[#allocation2 + $0x98] sm:$0x3] %vm407, 0.0
        %v427 = vld [vmem:[%s399] sm:$0xff]
        %v428 = vld [vmem:[%s399 + $0x8] sm:$0xff]
        %v429 = vld [vmem:[%s399 + $0x10] sm:$0xff]
        %v430 = vld [vmem:[%s399 + $0x18] sm:$0xff]
        %v431 = vld [vmem:[%s399 + $0x20] sm:$0xff]
        %v432 = vld [vmem:[%s399 + $0x28] sm:$0xff]
        %v433 = vld [vmem:[%s399 + $0x30] sm:$0xff]
        %v434 = vld [vmem:[%s399 + $0x38] sm:$0xff]
        %v435 = vld [vmem:[%s2] sm:$0xff]
        %v436 = vld [vmem:[%s2 + $0x8] sm:$0xff]
        %v437 = vld [vmem:[%s2 + $0x10] sm:$0xff]
        %v438 = vld [vmem:[%s2 + $0x18] sm:$0xff]
        %v439 = vld [vmem:[%s2 + $0x20] sm:$0xff]
        %v440 = vld [vmem:[%s2 + $0x28] sm:$0xff]
        %v441 = vld [vmem:[%s2 + $0x30] sm:$0xff]
        %v442 = vld [vmem:[%s2 + $0x38] sm:$0xff]
        %v443 = vld [vmem:[%s2 + $0x40] sm:$0xff]
        %v444 = vld [vmem:[%s3] sm:$0x1]
        %v445 = vmax.f32 %v427, 0.0
        %v446 = vmax.f32 %v428, 0.0
        %v447 = vmax.f32 %v429, 0.0
        %v448 = vmax.f32 %v430, 0.0
        %v449 = vmax.f32 %v431, 0.0
        %v450 = vmax.f32 %v432, 0.0
        %v451 = vmax.f32 %v433, 0.0
        %v452 = vmax.f32 %v434, 0.0
        %s453 = scalar_lea.vmem [#allocation2], 16
        %454 = vst.msk [vmem:[%s453 + $0x1] sm:$0xff] %vm405, %v445
        %455 = vst.msk [vmem:[%s453 + $0x11] sm:$0xff] %vm405, %v446
        %456 = vst.msk [vmem:[%s453 + $0x21] sm:$0xff] %vm405, %v447
        %457 = vst.msk [vmem:[%s453 + $0x31] sm:$0xff] %vm405, %v448
        %458 = vst.msk [vmem:[%s453 + $0x41] sm:$0xff] %vm405, %v449
        %459 = vst.msk [vmem:[%s453 + $0x51] sm:$0xff] %vm405, %v450
        %460 = vst.msk [vmem:[%s453 + $0x61] sm:$0xff] %vm405, %v451
        %461 = vst.msk [vmem:[%s453 + $0x71] sm:$0xff] %vm405, %v452
        %v462 = vld [vmem:[#allocation2] sm:$0xff]
        %v463 = vld [vmem:[#allocation2 + $0x8] sm:$0x3]
        %v464 = vld [vmem:[#allocation2 + $0x10] sm:$0xff]
        %v465 = vld [vmem:[#allocation2 + $0x18] sm:$0x3]
        %v466 = vld [vmem:[#allocation2 + $0x20] sm:$0xff]
        %v467 = vld [vmem:[#allocation2 + $0x28] sm:$0x3]
        %v468 = vld [vmem:[#allocation2 + $0x30] sm:$0xff]
        %v469 = vld [vmem:[#allocation2 + $0x38] sm:$0x3]
        %v470 = vld [vmem:[#allocation2 + $0x40] sm:$0xff]
        %v471 = vld [vmem:[#allocation2 + $0x48] sm:$0x3]
        %v472 = vld [vmem:[#allocation2 + $0x50] sm:$0xff]
        %v473 = vld [vmem:[#allocation2 + $0x58] sm:$0x3]
        %v474 = vld [vmem:[#allocation2 + $0x60] sm:$0xff]
        %v475 = vld [vmem:[#allocation2 + $0x68] sm:$0x3]
        %v476 = vld [vmem:[#allocation2 + $0x70] sm:$0xff]
        %v477 = vld [vmem:[#allocation2 + $0x78] sm:$0x3]
        %v478 = vld [vmem:[#allocation2 + $0x80] sm:$0xff]
        %v479 = vld [vmem:[#allocation2 + $0x88] sm:$0x3]
        %v480 = vld [vmem:[#allocation2 + $0x90] sm:$0xff]
        %v481 = vld [vmem:[#allocation2 + $0x98] sm:$0x3]
        %482 = vst.msk [vmem:[#allocation3] sm:$0xff] %vm405, %v462
        %483 = vst.msk [vmem:[#allocation3 + $0x8] sm:$0xff] %vm405, %v464
        %484 = vst.msk [vmem:[#allocation3 + $0x10] sm:$0xff] %vm405, %v466
        %485 = vst.msk [vmem:[#allocation3 + $0x18] sm:$0xff] %vm405, %v468
        %486 = vst.msk [vmem:[#allocation3 + $0x20] sm:$0xff] %vm405, %v470
        %487 = vst.msk [vmem:[#allocation3 + $0x28] sm:$0xff] %vm405, %v472
        %488 = vst.msk [vmem:[#allocation3 + $0x30] sm:$0xff] %vm405, %v474
        %489 = vst.msk [vmem:[#allocation3 + $0x38] sm:$0xff] %vm405, %v476
        %vm506 = vcmask 1046528
        %v507 = vrot.slane %v462, 1
        %v508 = vrot.slane %v463, 1
        %v509 = vsel %vm506, %v507, %v508
        %v510 = vrot.slane %v464, 1
        %v511 = vrot.slane %v465, 1
        %v512 = vsel %vm506, %v510, %v511
        %v513 = vrot.slane %v466, 1
        %v514 = vrot.slane %v467, 1
        %v515 = vsel %vm506, %v513, %v514
        %v516 = vrot.slane %v468, 1
        %v517 = vrot.slane %v469, 1
        %v518 = vsel %vm506, %v516, %v517
        %v519 = vrot.slane %v470, 1
        %v520 = vrot.slane %v471, 1
        %v521 = vsel %vm506, %v519, %v520
        %v522 = vrot.slane %v472, 1
        %v523 = vrot.slane %v473, 1
        %v524 = vsel %vm506, %v522, %v523
        %v525 = vrot.slane %v474, 1
        %v526 = vrot.slane %v475, 1
        %v527 = vsel %vm506, %v525, %v526
        %v528 = vrot.slane %v476, 1
        %v529 = vrot.slane %v477, 1
        %v530 = vsel %vm506, %v528, %v529
        %531 = vrot.lane.b32.xlu0 %v509, 8
        %v532 = vpop.permute.xlu0 %531
        %533 = vrot.lane.b32.xlu0 %v512, 8
        %v534 = vpop.permute.xlu0 %533
        %535 = vrot.lane.b32.xlu0 %v515, 8
        %v536 = vpop.permute.xlu0 %535
        %537 = vrot.lane.b32.xlu0 %v518, 8
        %v538 = vpop.permute.xlu0 %537
        %539 = vrot.lane.b32.xlu0 %v521, 8
        %v540 = vpop.permute.xlu0 %539
        %541 = vrot.lane.b32.xlu0 %v524, 8
        %v542 = vpop.permute.xlu0 %541
        %543 = vrot.lane.b32.xlu0 %v527, 8
        %v544 = vpop.permute.xlu0 %543
        %545 = vrot.lane.b32.xlu0 %v530, 8
        %v546 = vpop.permute.xlu0 %545
        %vm555 = vcmask 130112
        %556 = vst.msk [vmem:[#allocation3] sm:$0xff] %vm555, %v532
        %557 = vst.msk [vmem:[#allocation3 + $0x8] sm:$0xff] %vm555, %v534
        %558 = vst.msk [vmem:[#allocation3 + $0x10] sm:$0xff] %vm555, %v536
        %559 = vst.msk [vmem:[#allocation3 + $0x18] sm:$0xff] %vm555, %v538
        %560 = vst.msk [vmem:[#allocation3 + $0x20] sm:$0xff] %vm555, %v540
        %561 = vst.msk [vmem:[#allocation3 + $0x28] sm:$0xff] %vm555, %v542
        %562 = vst.msk [vmem:[#allocation3 + $0x30] sm:$0xff] %vm555, %v544
        %563 = vst.msk [vmem:[#allocation3 + $0x38] sm:$0xff] %vm555, %v546
        %vm564 = vcmask 1045504
        %v565 = vrot.slane %v462, 2
        %v566 = vrot.slane %v463, 2
        %v567 = vsel %vm564, %v565, %v566
        %v568 = vrot.slane %v464, 2
        %v569 = vrot.slane %v465, 2
        %v570 = vsel %vm564, %v568, %v569
        %v571 = vrot.slane %v466, 2
        %v572 = vrot.slane %v467, 2
        %v573 = vsel %vm564, %v571, %v572
        %v574 = vrot.slane %v468, 2
        %v575 = vrot.slane %v469, 2
        %v576 = vsel %vm564, %v574, %v575
        %v577 = vrot.slane %v470, 2
        %v578 = vrot.slane %v471, 2
        %v579 = vsel %vm564, %v577, %v578
        %v580 = vrot.slane %v472, 2
        %v581 = vrot.slane %v473, 2
        %v582 = vsel %vm564, %v580, %v581
        %v583 = vrot.slane %v474, 2
        %v584 = vrot.slane %v475, 2
        %v585 = vsel %vm564, %v583, %v584
        %v586 = vrot.slane %v476, 2
        %v587 = vrot.slane %v477, 2
        %v588 = vsel %vm564, %v586, %v587
        %589 = vrot.lane.b32.xlu0 %v567, 16
        %v590 = vpop.permute.xlu0 %589
        %591 = vrot.lane.b32.xlu0 %v570, 16
        %v592 = vpop.permute.xlu0 %591
        %593 = vrot.lane.b32.xlu0 %v573, 16
        %v594 = vpop.permute.xlu0 %593
        %595 = vrot.lane.b32.xlu0 %v576, 16
        %v596 = vpop.permute.xlu0 %595
        %597 = vrot.lane.b32.xlu0 %v579, 16
        %v598 = vpop.permute.xlu0 %597
        %599 = vrot.lane.b32.xlu0 %v582, 16
        %v600 = vpop.permute.xlu0 %599
        %601 = vrot.lane.b32.xlu0 %v585, 16
        %v602 = vpop.permute.xlu0 %601
        %603 = vrot.lane.b32.xlu0 %v588, 16
        %v604 = vpop.permute.xlu0 %603
        %vm613 = vcmask 195712
        %614 = vst.msk [vmem:[#allocation3] sm:$0xff] %vm613, %v590
        %615 = vst.msk [vmem:[#allocation3 + $0x8] sm:$0xff] %vm613, %v592
        %616 = vst.msk [vmem:[#allocation3 + $0x10] sm:$0xff] %vm613, %v594
        %617 = vst.msk [vmem:[#allocation3 + $0x18] sm:$0xff] %vm613, %v596
        %618 = vst.msk [vmem:[#allocation3 + $0x20] sm:$0xff] %vm613, %v598
        %619 = vst.msk [vmem:[#allocation3 + $0x28] sm:$0xff] %vm613, %v600
        %620 = vst.msk [vmem:[#allocation3 + $0x30] sm:$0xff] %vm613, %v602
        %621 = vst.msk [vmem:[#allocation3 + $0x38] sm:$0xff] %vm613, %v604
        %623 = vrot.lane.b32.xlu0 %v464, 24
        %v624 = vpop.permute.xlu0 %623
        %625 = vrot.lane.b32.xlu0 %v466, 24
        %v626 = vpop.permute.xlu0 %625
        %627 = vrot.lane.b32.xlu0 %v468, 24
        %v628 = vpop.permute.xlu0 %627
        %629 = vrot.lane.b32.xlu0 %v470, 24
        %v630 = vpop.permute.xlu0 %629
        %631 = vrot.lane.b32.xlu0 %v472, 24
        %v632 = vpop.permute.xlu0 %631
        %633 = vrot.lane.b32.xlu0 %v474, 24
        %v634 = vpop.permute.xlu0 %633
        %635 = vrot.lane.b32.xlu0 %v476, 24
        %v636 = vpop.permute.xlu0 %635
        %637 = vrot.lane.b32.xlu0 %v478, 24
        %v638 = vpop.permute.xlu0 %637
        %vm647 = vcmask 261312
        %648 = vst.msk [vmem:[#allocation3] sm:$0xff] %vm647, %v624
        %649 = vst.msk [vmem:[#allocation3 + $0x8] sm:$0xff] %vm647, %v626
        %650 = vst.msk [vmem:[#allocation3 + $0x10] sm:$0xff] %vm647, %v628
        %651 = vst.msk [vmem:[#allocation3 + $0x18] sm:$0xff] %vm647, %v630
        %652 = vst.msk [vmem:[#allocation3 + $0x20] sm:$0xff] %vm647, %v632
        %653 = vst.msk [vmem:[#allocation3 + $0x28] sm:$0xff] %vm647, %v634
        %654 = vst.msk [vmem:[#allocation3 + $0x30] sm:$0xff] %vm647, %v636
        %655 = vst.msk [vmem:[#allocation3 + $0x38] sm:$0xff] %vm647, %v638
        %v657 = vrot.slane %v478, 1
        %v658 = vrot.slane %v479, 1
        %v659 = vsel %vm506, %v657, %v658
        %660 = vrot.lane.b32.xlu0 %v512, 32
        %v661 = vpop.permute.xlu0 %660
        %662 = vrot.lane.b32.xlu0 %v515, 32
        %v663 = vpop.permute.xlu0 %662
        %664 = vrot.lane.b32.xlu0 %v518, 32
        %v665 = vpop.permute.xlu0 %664
        %666 = vrot.lane.b32.xlu0 %v521, 32
        %v667 = vpop.permute.xlu0 %666
        %668 = vrot.lane.b32.xlu0 %v524, 32
        %v669 = vpop.permute.xlu0 %668
        %670 = vrot.lane.b32.xlu0 %v527, 32
        %v671 = vpop.permute.xlu0 %670
        %672 = vrot.lane.b32.xlu0 %v530, 32
        %v673 = vpop.permute.xlu0 %672
        %674 = vrot.lane.b32.xlu0 %v659, 32
        %v675 = vpop.permute.xlu0 %674
        %vm684 = vcmask 326912
        %685 = vst.msk [vmem:[#allocation3] sm:$0xff] %vm684, %v661
        %686 = vst.msk [vmem:[#allocation3 + $0x8] sm:$0xff] %vm684, %v663
        %687 = vst.msk [vmem:[#allocation3 + $0x10] sm:$0xff] %vm684, %v665
        %688 = vst.msk [vmem:[#allocation3 + $0x18] sm:$0xff] %vm684, %v667
        %689 = vst.msk [vmem:[#allocation3 + $0x20] sm:$0xff] %vm684, %v669
        %690 = vst.msk [vmem:[#allocation3 + $0x28] sm:$0xff] %vm684, %v671
        %691 = vst.msk [vmem:[#allocation3 + $0x30] sm:$0xff] %vm684, %v673
        %692 = vst.msk [vmem:[#allocation3 + $0x38] sm:$0xff] %vm684, %v675
        %v693 = vrot.slane %v478, 2
        %v694 = vrot.slane %v479, 2
        %v695 = vsel %vm564, %v693, %v694
        %696 = vrot.lane.b32.xlu0 %v570, 40
        %v697 = vpop.permute.xlu0 %696
        %698 = vrot.lane.b32.xlu0 %v573, 40
        %v699 = vpop.permute.xlu0 %698
        %700 = vrot.lane.b32.xlu0 %v576, 40
        %v701 = vpop.permute.xlu0 %700
        %702 = vrot.lane.b32.xlu0 %v579, 40
        %v703 = vpop.permute.xlu0 %702
        %704 = vrot.lane.b32.xlu0 %v582, 40
        %v705 = vpop.permute.xlu0 %704
        %706 = vrot.lane.b32.xlu0 %v585, 40
        %v707 = vpop.permute.xlu0 %706
        %708 = vrot.lane.b32.xlu0 %v588, 40
        %v709 = vpop.permute.xlu0 %708
        %710 = vrot.lane.b32.xlu0 %v695, 40
        %v711 = vpop.permute.xlu0 %710
        %vm720 = vcmask 392512
        %721 = vst.msk [vmem:[#allocation3] sm:$0xff] %vm720, %v697
        %722 = vst.msk [vmem:[#allocation3 + $0x8] sm:$0xff] %vm720, %v699
        %723 = vst.msk [vmem:[#allocation3 + $0x10] sm:$0xff] %vm720, %v701
        %724 = vst.msk [vmem:[#allocation3 + $0x18] sm:$0xff] %vm720, %v703
        %725 = vst.msk [vmem:[#allocation3 + $0x20] sm:$0xff] %vm720, %v705
        %726 = vst.msk [vmem:[#allocation3 + $0x28] sm:$0xff] %vm720, %v707
        %727 = vst.msk [vmem:[#allocation3 + $0x30] sm:$0xff] %vm720, %v709
        %728 = vst.msk [vmem:[#allocation3 + $0x38] sm:$0xff] %vm720, %v711
        %730 = vrot.lane.b32.xlu0 %v466, 48
        %v731 = vpop.permute.xlu0 %730
        %732 = vrot.lane.b32.xlu0 %v468, 48
        %v733 = vpop.permute.xlu0 %732
        %734 = vrot.lane.b32.xlu0 %v470, 48
        %v735 = vpop.permute.xlu0 %734
        %736 = vrot.lane.b32.xlu0 %v472, 48
        %v737 = vpop.permute.xlu0 %736
        %738 = vrot.lane.b32.xlu0 %v474, 48
        %v739 = vpop.permute.xlu0 %738
        %740 = vrot.lane.b32.xlu0 %v476, 48
        %v741 = vpop.permute.xlu0 %740
        %742 = vrot.lane.b32.xlu0 %v478, 48
        %v743 = vpop.permute.xlu0 %742
        %744 = vrot.lane.b32.xlu0 %v480, 48
        %v745 = vpop.permute.xlu0 %744
        %vm754 = vcmask 458112
        %755 = vst.msk [vmem:[#allocation3] sm:$0xff] %vm754, %v731
        %756 = vst.msk [vmem:[#allocation3 + $0x8] sm:$0xff] %vm754, %v733
        %757 = vst.msk [vmem:[#allocation3 + $0x10] sm:$0xff] %vm754, %v735
        %758 = vst.msk [vmem:[#allocation3 + $0x18] sm:$0xff] %vm754, %v737
        %759 = vst.msk [vmem:[#allocation3 + $0x20] sm:$0xff] %vm754, %v739
        %760 = vst.msk [vmem:[#allocation3 + $0x28] sm:$0xff] %vm754, %v741
        %761 = vst.msk [vmem:[#allocation3 + $0x30] sm:$0xff] %vm754, %v743
        %762 = vst.msk [vmem:[#allocation3 + $0x38] sm:$0xff] %vm754, %v745
        %v764 = vrot.slane %v480, 1
        %v765 = vrot.slane %v481, 1
        %v766 = vsel %vm506, %v764, %v765
        %767 = vrot.lane.b32.xlu0 %v515, 56
        %v768 = vpop.permute.xlu0 %767
        %769 = vrot.lane.b32.xlu0 %v518, 56
        %v770 = vpop.permute.xlu0 %769
        %771 = vrot.lane.b32.xlu0 %v521, 56
        %v772 = vpop.permute.xlu0 %771
        %773 = vrot.lane.b32.xlu0 %v524, 56
        %v774 = vpop.permute.xlu0 %773
        %775 = vrot.lane.b32.xlu0 %v527, 56
        %v776 = vpop.permute.xlu0 %775
        %777 = vrot.lane.b32.xlu0 %v530, 56
        %v778 = vpop.permute.xlu0 %777
        %779 = vrot.lane.b32.xlu0 %v659, 56
        %v780 = vpop.permute.xlu0 %779
        %781 = vrot.lane.b32.xlu0 %v766, 56
        %v782 = vpop.permute.xlu0 %781
        %vm791 = vcmask 523712
        %792 = vst.msk [vmem:[#allocation3] sm:$0xff] %vm791, %v768
        %793 = vst.msk [vmem:[#allocation3 + $0x8] sm:$0xff] %vm791, %v770
        %794 = vst.msk [vmem:[#allocation3 + $0x10] sm:$0xff] %vm791, %v772
        %795 = vst.msk [vmem:[#allocation3 + $0x18] sm:$0xff] %vm791, %v774
        %796 = vst.msk [vmem:[#allocation3 + $0x20] sm:$0xff] %vm791, %v776
        %797 = vst.msk [vmem:[#allocation3 + $0x28] sm:$0xff] %vm791, %v778
        %798 = vst.msk [vmem:[#allocation3 + $0x30] sm:$0xff] %vm791, %v780
        %799 = vst.msk [vmem:[#allocation3 + $0x38] sm:$0xff] %vm791, %v782
        %v800 = vrot.slane %v480, 2
        %v801 = vrot.slane %v481, 2
        %v802 = vsel %vm564, %v800, %v801
        %803 = vrot.lane.b32.xlu0 %v573, 64
        %v804 = vpop.permute.xlu0 %803
        %805 = vrot.lane.b32.xlu0 %v576, 64
        %v806 = vpop.permute.xlu0 %805
        %807 = vrot.lane.b32.xlu0 %v579, 64
        %v808 = vpop.permute.xlu0 %807
        %809 = vrot.lane.b32.xlu0 %v582, 64
        %v810 = vpop.permute.xlu0 %809
        %811 = vrot.lane.b32.xlu0 %v585, 64
        %v812 = vpop.permute.xlu0 %811
        %813 = vrot.lane.b32.xlu0 %v588, 64
        %v814 = vpop.permute.xlu0 %813
        %815 = vrot.lane.b32.xlu0 %v695, 64
        %v816 = vpop.permute.xlu0 %815
        %817 = vrot.lane.b32.xlu0 %v802, 64
        %v818 = vpop.permute.xlu0 %817
        %vm827 = vcmask 589312
        %828 = vst.msk [vmem:[#allocation3] sm:$0xff] %vm827, %v804
        %829 = vst.msk [vmem:[#allocation3 + $0x8] sm:$0xff] %vm827, %v806
        %830 = vst.msk [vmem:[#allocation3 + $0x10] sm:$0xff] %vm827, %v808
        %831 = vst.msk [vmem:[#allocation3 + $0x18] sm:$0xff] %vm827, %v810
        %832 = vst.msk [vmem:[#allocation3 + $0x20] sm:$0xff] %vm827, %v812
        %833 = vst.msk [vmem:[#allocation3 + $0x28] sm:$0xff] %vm827, %v814
        %834 = vst.msk [vmem:[#allocation3 + $0x30] sm:$0xff] %vm827, %v816
        %835 = vst.msk [vmem:[#allocation3 + $0x38] sm:$0xff] %vm827, %v818
        %v836 = vld [vmem:[#allocation3] sm:$0xff]
        %v837 = vld [vmem:[#allocation3 + $0x8] sm:$0xff]
        %v838 = vld [vmem:[#allocation3 + $0x10] sm:$0xff]
        %v839 = vld [vmem:[#allocation3 + $0x18] sm:$0xff]
        %v840 = vld [vmem:[#allocation3 + $0x20] sm:$0xff]
        %v841 = vld [vmem:[#allocation3 + $0x28] sm:$0xff]
        %v842 = vld [vmem:[#allocation3 + $0x30] sm:$0xff]
        %v843 = vld [vmem:[#allocation3 + $0x38] sm:$0xff]
        %v845 = vlaneseq
        %v846 = vshrl.u32 %v845, 7
        %v847 = vsub.s32 0, %v846
        %v848 = vrot.slane %v444, %v847
        %vm850 = vcmask 588800
        %v852 = vsel %vm850, %v836, 0
        %v855 = vsel %vm850, %v837, 0
        %v858 = vsel %vm850, %v838, 0
        %v861 = vsel %vm850, %v839, 0
        %v864 = vsel %vm850, %v840, 0
        %v867 = vsel %vm850, %v841, 0
        %v870 = vsel %vm850, %v842, 0
        %v873 = vsel %vm850, %v843, 0
        %875 = vmatprep.subr.mxu0 0.0
        %876 = vmatpush1.msra.mxu0 %v435
        %877 = vmatprep.subr.mxu0 0.0
        %878 = vmatpush1.msra.mxu0 %v436
        %879 = vmatprep.subr.mxu0 0.0
        %880 = vmatpush1.msra.mxu0 %v437
        %881 = vmatprep.subr.mxu0 0.0
        %882 = vmatpush1.msra.mxu0 %v438
        %883 = vmatprep.subr.mxu0 0.0
        %884 = vmatpush1.msra.mxu0 %v439
        %885 = vmatprep.subr.mxu0 0.0
        %886 = vmatpush1.msra.mxu0 %v440
        %887 = vmatprep.subr.mxu0 0.0
        %888 = vmatpush1.msra.mxu0 %v441
        %889 = vmatprep.subr.mxu0 0.0
        %890 = vmatpush1.msra.mxu0 %v442
        %891 = vmatprep.subr.mxu0 0.0
        %892 = vmatpush1.msra.mxu0 %v443
        %893 = vmatprep.subr.mxu0 0.0
        %894 = vmatpush1.msra.mxu0 0.0
        %895 = vmatprep.subr.mxu0 0.0
        %896 = vmatpush1.msra.mxu0 0.0
        %897 = vmatprep.subr.mxu0 0.0
        %898 = vmatpush1.msra.mxu0 0.0
        %899 = vmatprep.subr.mxu0 0.0
        %900 = vmatpush1.msra.mxu0 0.0
        %901 = vmatprep.subr.mxu0 0.0
        %902 = vmatpush1.msra.mxu0 0.0
        %903 = vmatprep.subr.mxu0 0.0
        %904 = vmatpush1.msra.mxu0 0.0
        %905 = vmatprep.subr.mxu0 0.0
        %906 = vmatpush1.msra.mxu0 0.0
        %907 = vmatprep.subr.mxu0 0.0
        %908 = vmatpush1.msra.mxu0 0.0
        %909 = vmatprep.subr.mxu0 0.0
        %910 = vmatpush1.msra.mxu0 0.0
        %911 = vmatprep.subr.mxu0 0.0
        %912 = vmatpush1.msra.mxu0 0.0
        %913 = vmatprep.subr.mxu0 0.0
        %914 = vmatpush1.msra.mxu0 0.0
        %915 = vmatprep.subr.mxu0 0.0
        %916 = vmatpush1.msra.mxu0 0.0
        %917 = vmatprep.subr.mxu0 0.0
        %918 = vmatpush1.msra.mxu0 0.0
        %919 = vmatprep.subr.mxu0 0.0
        %920 = vmatpush1.msra.mxu0 0.0
        %921 = vmatprep.subr.mxu0 0.0
        %922 = vmatpush1.msra.mxu0 0.0
        %923 = vmatprep.subr.mxu0 0.0
        %924 = vmatpush1.msra.mxu0 0.0
        %925 = vmatprep.subr.mxu0 0.0
        %926 = vmatpush1.msra.mxu0 0.0
        %927 = vmatprep.subr.mxu0 0.0
        %928 = vmatpush1.msra.mxu0 0.0
        %929 = vmatprep.subr.mxu0 0.0
        %930 = vmatpush1.msra.mxu0 0.0
        %931 = vmatprep.subr.mxu0 0.0
        %932 = vmatpush1.msra.mxu0 0.0
        %933 = vmatprep.subr.mxu0 0.0
        %934 = vmatpush1.msra.mxu0 0.0
        %935 = vmatprep.subr.mxu0 0.0
        %936 = vmatpush1.msra.mxu0 0.0
        %937 = vmatprep.subr.mxu0 0.0
        %938 = vmatpush1.msra.mxu0 0.0
        %939 = vmatprep.mubr.f32.mxu0 0.0
        %940 = vmatmul.mubr.f32.gmra.mrb[0].mxu0 %v852
        %v941 = vpop.f32.mrb[0].mxu0
        %v942 = vadd.f32 %v848, %v941
        %v943 = vpop.f32.mrb[0].mxu0
        %944 = vmatprep.mubr.f32.mxu0 0.0
        %945 = vmatmul.mubr.f32.gmra.mrb[0].mxu0 %v855
        %v946 = vpop.f32.mrb[0].mxu0
        %v947 = vadd.f32 %v848, %v946
        %v948 = vpop.f32.mrb[0].mxu0
        %949 = vmatprep.mubr.f32.mxu0 0.0
        %950 = vmatmul.mubr.f32.gmra.mrb[0].mxu0 %v858
        %v951 = vpop.f32.mrb[0].mxu0
        %v952 = vadd.f32 %v848, %v951
        %v953 = vpop.f32.mrb[0].mxu0
        %954 = vmatprep.mubr.f32.mxu0 0.0
        %955 = vmatmul.mubr.f32.gmra.mrb[0].mxu0 %v861
        %v956 = vpop.f32.mrb[0].mxu0
        %v957 = vadd.f32 %v848, %v956
        %v958 = vpop.f32.mrb[0].mxu0
        %959 = vmatprep.mubr.f32.mxu0 0.0
        %960 = vmatmul.mubr.f32.gmra.mrb[0].mxu0 %v864
        %v961 = vpop.f32.mrb[0].mxu0
        %v962 = vadd.f32 %v848, %v961
        %v963 = vpop.f32.mrb[0].mxu0
        %964 = vmatprep.mubr.f32.mxu0 0.0
        %965 = vmatmul.mubr.f32.gmra.mrb[0].mxu0 %v867
        %v966 = vpop.f32.mrb[0].mxu0
        %v967 = vadd.f32 %v848, %v966
        %v968 = vpop.f32.mrb[0].mxu0
        %969 = vmatprep.mubr.f32.mxu0 0.0
        %970 = vmatmul.mubr.f32.gmra.mrb[0].mxu0 %v870
        %v971 = vpop.f32.mrb[0].mxu0
        %v972 = vadd.f32 %v848, %v971
        %v973 = vpop.f32.mrb[0].mxu0
        %974 = vmatprep.mubr.f32.mxu0 0.0
        %975 = vmatmul.mubr.f32.gmra.mrb[0].mxu0 %v873
        %v976 = vpop.f32.mrb[0].mxu0
        %v977 = vadd.f32 %v848, %v976
        %v978 = vpop.f32.mrb[0].mxu0
        %979 = vdwg.mxu0
        %v980 = vmax.f32 %v942, 0.0
        %v981 = vmax.f32 %v947, 0.0
        %v982 = vmax.f32 %v952, 0.0
        %v983 = vmax.f32 %v957, 0.0
        %v984 = vmax.f32 %v962, 0.0
        %v985 = vmax.f32 %v967, 0.0
        %v986 = vmax.f32 %v972, 0.0
        %v987 = vmax.f32 %v977, 0.0
        %v988 = vld [vmem:[%s4] sm:$0xff]
        %v989 = vld [vmem:[%s4 + $0x8] sm:$0xff]
        %v990 = vld [vmem:[%s4 + $0x10] sm:$0xff]
        %v991 = vld [vmem:[%s4 + $0x18] sm:$0xff]
        %v992 = vld [vmem:[%s4 + $0x20] sm:$0xff]
        %v993 = vld [vmem:[%s4 + $0x28] sm:$0xf]
        %v994 = vld [vmem:[%s5] sm:$0x1]
        %vm995 = vcmask 31744
        %996 = vst.msk [vmem:[%s453 + $0x1] sm:$0xff] %vm995, %v980
        %997 = vst.msk [vmem:[%s453 + $0x11] sm:$0xff] %vm995, %v981
        %998 = vst.msk [vmem:[%s453 + $0x21] sm:$0xff] %vm995, %v982
        %999 = vst.msk [vmem:[%s453 + $0x31] sm:$0xff] %vm995, %v983
        %1000 = vst.msk [vmem:[%s453 + $0x41] sm:$0xff] %vm995, %v984
        %1001 = vst.msk [vmem:[%s453 + $0x51] sm:$0xff] %vm995, %v985
        %1002 = vst.msk [vmem:[%s453 + $0x61] sm:$0xff] %vm995, %v986
        %1003 = vst.msk [vmem:[%s453 + $0x71] sm:$0xff] %vm995, %v987
        %v1004 = vld [vmem:[#allocation2] sm:$0xff]
        %v1005 = vld [vmem:[#allocation2 + $0x8] sm:$0x3]
        %v1006 = vld [vmem:[#allocation2 + $0x10] sm:$0xff]
        %v1007 = vld [vmem:[#allocation2 + $0x18] sm:$0x3]
        %v1008 = vld [vmem:[#allocation2 + $0x20] sm:$0xff]
        %v1009 = vld [vmem:[#allocation2 + $0x28] sm:$0x3]
        %v1010 = vld [vmem:[#allocation2 + $0x30] sm:$0xff]
        %v1011 = vld [vmem:[#allocation2 + $0x38] sm:$0x3]
        %v1012 = vld [vmem:[#allocation2 + $0x40] sm:$0xff]
        %v1013 = vld [vmem:[#allocation2 + $0x48] sm:$0x3]
        %v1014 = vld [vmem:[#allocation2 + $0x50] sm:$0xff]
        %v1015 = vld [vmem:[#allocation2 + $0x58] sm:$0x3]
        %v1016 = vld [vmem:[#allocation2 + $0x60] sm:$0xff]
        %v1017 = vld [vmem:[#allocation2 + $0x68] sm:$0x3]
        %v1018 = vld [vmem:[#allocation2 + $0x70] sm:$0xff]
        %v1019 = vld [vmem:[#allocation2 + $0x78] sm:$0x3]
        %v1020 = vld [vmem:[#allocation2 + $0x80] sm:$0xff]
        %v1021 = vld [vmem:[#allocation2 + $0x88] sm:$0x3]
        %v1022 = vld [vmem:[#allocation2 + $0x90] sm:$0xff]
        %v1023 = vld [vmem:[#allocation2 + $0x98] sm:$0x3]
        %1024 = vst.msk [vmem:[#allocation3] sm:$0xff] %vm995, %v1004
        %1025 = vst.msk [vmem:[#allocation3 + $0x8] sm:$0xff] %vm995, %v1006
        %1026 = vst.msk [vmem:[#allocation3 + $0x10] sm:$0xff] %vm995, %v1008
        %1027 = vst.msk [vmem:[#allocation3 + $0x18] sm:$0xff] %vm995, %v1010
        %1028 = vst.msk [vmem:[#allocation3 + $0x20] sm:$0xff] %vm995, %v1012
        %1029 = vst.msk [vmem:[#allocation3 + $0x28] sm:$0xff] %vm995, %v1014
        %1030 = vst.msk [vmem:[#allocation3 + $0x30] sm:$0xff] %vm995, %v1016
        %1031 = vst.msk [vmem:[#allocation3 + $0x38] sm:$0xff] %vm995, %v1018
        %v1048 = vrot.slane %v1004, 1
        %v1049 = vrot.slane %v1005, 1
        %v1050 = vsel %vm506, %v1048, %v1049
        %v1051 = vrot.slane %v1006, 1
        %v1052 = vrot.slane %v1007, 1
        %v1053 = vsel %vm506, %v1051, %v1052
        %v1054 = vrot.slane %v1008, 1
        %v1055 = vrot.slane %v1009, 1
        %v1056 = vsel %vm506, %v1054, %v1055
        %v1057 = vrot.slane %v1010, 1
        %v1058 = vrot.slane %v1011, 1
        %v1059 = vsel %vm506, %v1057, %v1058
        %v1060 = vrot.slane %v1012, 1
        %v1061 = vrot.slane %v1013, 1
        %v1062 = vsel %vm506, %v1060, %v1061
        %v1063 = vrot.slane %v1014, 1
        %v1064 = vrot.slane %v1015, 1
        %v1065 = vsel %vm506, %v1063, %v1064
        %v1066 = vrot.slane %v1016, 1
        %v1067 = vrot.slane %v1017, 1
        %v1068 = vsel %vm506, %v1066, %v1067
        %v1069 = vrot.slane %v1018, 1
        %v1070 = vrot.slane %v1019, 1
        %v1071 = vsel %vm506, %v1069, %v1070
        %1072 = vrot.lane.b32.xlu0 %v1050, 4
        %v1073 = vpop.permute.xlu0 %1072
        %1074 = vrot.lane.b32.xlu0 %v1053, 4
        %v1075 = vpop.permute.xlu0 %1074
        %1076 = vrot.lane.b32.xlu0 %v1056, 4
        %v1077 = vpop.permute.xlu0 %1076
        %1078 = vrot.lane.b32.xlu0 %v1059, 4
        %v1079 = vpop.permute.xlu0 %1078
        %1080 = vrot.lane.b32.xlu0 %v1062, 4
        %v1081 = vpop.permute.xlu0 %1080
        %1082 = vrot.lane.b32.xlu0 %v1065, 4
        %v1083 = vpop.permute.xlu0 %1082
        %1084 = vrot.lane.b32.xlu0 %v1068, 4
        %v1085 = vpop.permute.xlu0 %1084
        %1086 = vrot.lane.b32.xlu0 %v1071, 4
        %v1087 = vpop.permute.xlu0 %1086
        %vm1096 = vcmask 64544
        %1097 = vst.msk [vmem:[#allocation3] sm:$0xff] %vm1096, %v1073
        %1098 = vst.msk [vmem:[#allocation3 + $0x8] sm:$0xff] %vm1096, %v1075
        %1099 = vst.msk [vmem:[#allocation3 + $0x10] sm:$0xff] %vm1096, %v1077
        %1100 = vst.msk [vmem:[#allocation3 + $0x18] sm:$0xff] %vm1096, %v1079
        %1101 = vst.msk [vmem:[#allocation3 + $0x20] sm:$0xff] %vm1096, %v1081
        %1102 = vst.msk [vmem:[#allocation3 + $0x28] sm:$0xff] %vm1096, %v1083
        %1103 = vst.msk [vmem:[#allocation3 + $0x30] sm:$0xff] %vm1096, %v1085
        %1104 = vst.msk [vmem:[#allocation3 + $0x38] sm:$0xff] %vm1096, %v1087
        %v1105 = vrot.slane %v1004, 2
        %v1106 = vrot.slane %v1005, 2
        %v1107 = vsel %vm564, %v1105, %v1106
        %v1108 = vrot.slane %v1006, 2
        %v1109 = vrot.slane %v1007, 2
        %v1110 = vsel %vm564, %v1108, %v1109
        %v1111 = vrot.slane %v1008, 2
        %v1112 = vrot.slane %v1009, 2
        %v1113 = vsel %vm564, %v1111, %v1112
        %v1114 = vrot.slane %v1010, 2
        %v1115 = vrot.slane %v1011, 2
        %v1116 = vsel %vm564, %v1114, %v1115
        %v1117 = vrot.slane %v1012, 2
        %v1118 = vrot.slane %v1013, 2
        %v1119 = vsel %vm564, %v1117, %v1118
        %v1120 = vrot.slane %v1014, 2
        %v1121 = vrot.slane %v1015, 2
        %v1122 = vsel %vm564, %v1120, %v1121
        %v1123 = vrot.slane %v1016, 2
        %v1124 = vrot.slane %v1017, 2
        %v1125 = vsel %vm564, %v1123, %v1124
        %v1126 = vrot.slane %v1018, 2
        %v1127 = vrot.slane %v1019, 2
        %v1128 = vsel %vm564, %v1126, %v1127
        %1129 = vrot.lane.b32.xlu0 %v1107, 8
        %v1130 = vpop.permute.xlu0 %1129
        %1131 = vrot.lane.b32.xlu0 %v1110, 8
        %v1132 = vpop.permute.xlu0 %1131
        %1133 = vrot.lane.b32.xlu0 %v1113, 8
        %v1134 = vpop.permute.xlu0 %1133
        %1135 = vrot.lane.b32.xlu0 %v1116, 8
        %v1136 = vpop.permute.xlu0 %1135
        %1137 = vrot.lane.b32.xlu0 %v1119, 8
        %v1138 = vpop.permute.xlu0 %1137
        %1139 = vrot.lane.b32.xlu0 %v1122, 8
        %v1140 = vpop.permute.xlu0 %1139
        %1141 = vrot.lane.b32.xlu0 %v1125, 8
        %v1142 = vpop.permute.xlu0 %1141
        %1143 = vrot.lane.b32.xlu0 %v1128, 8
        %v1144 = vpop.permute.xlu0 %1143
        %vm1153 = vcmask 97344
        %1154 = vst.msk [vmem:[#allocation3] sm:$0xff] %vm1153, %v1130
        %1155 = vst.msk [vmem:[#allocation3 + $0x8] sm:$0xff] %vm1153, %v1132
        %1156 = vst.msk [vmem:[#allocation3 + $0x10] sm:$0xff] %vm1153, %v1134
        %1157 = vst.msk [vmem:[#allocation3 + $0x18] sm:$0xff] %vm1153, %v1136
        %1158 = vst.msk [vmem:[#allocation3 + $0x20] sm:$0xff] %vm1153, %v1138
        %1159 = vst.msk [vmem:[#allocation3 + $0x28] sm:$0xff] %vm1153, %v1140
        %1160 = vst.msk [vmem:[#allocation3 + $0x30] sm:$0xff] %vm1153, %v1142
        %1161 = vst.msk [vmem:[#allocation3 + $0x38] sm:$0xff] %vm1153, %v1144
        %1163 = vrot.lane.b32.xlu0 %v1006, 12
        %v1164 = vpop.permute.xlu0 %1163
        %1165 = vrot.lane.b32.xlu0 %v1008, 12
        %v1166 = vpop.permute.xlu0 %1165
        %1167 = vrot.lane.b32.xlu0 %v1010, 12
        %v1168 = vpop.permute.xlu0 %1167
        %1169 = vrot.lane.b32.xlu0 %v1012, 12
        %v1170 = vpop.permute.xlu0 %1169
        %1171 = vrot.lane.b32.xlu0 %v1014, 12
        %v1172 = vpop.permute.xlu0 %1171
        %1173 = vrot.lane.b32.xlu0 %v1016, 12
        %v1174 = vpop.permute.xlu0 %1173
        %1175 = vrot.lane.b32.xlu0 %v1018, 12
        %v1176 = vpop.permute.xlu0 %1175
        %1177 = vrot.lane.b32.xlu0 %v1020, 12
        %v1178 = vpop.permute.xlu0 %1177
        %vm1187 = vcmask 130144
        %1188 = vst.msk [vmem:[#allocation3] sm:$0xff] %vm1187, %v1164
        %1189 = vst.msk [vmem:[#allocation3 + $0x8] sm:$0xff] %vm1187, %v1166
        %1190 = vst.msk [vmem:[#allocation3 + $0x10] sm:$0xff] %vm1187, %v1168
        %1191 = vst.msk [vmem:[#allocation3 + $0x18] sm:$0xff] %vm1187, %v1170
        %1192 = vst.msk [vmem:[#allocation3 + $0x20] sm:$0xff] %vm1187, %v1172
        %1193 = vst.msk [vmem:[#allocation3 + $0x28] sm:$0xff] %vm1187, %v1174
        %1194 = vst.msk [vmem:[#allocation3 + $0x30] sm:$0xff] %vm1187, %v1176
        %1195 = vst.msk [vmem:[#allocation3 + $0x38] sm:$0xff] %vm1187, %v1178
        %v1197 = vrot.slane %v1020, 1
        %v1198 = vrot.slane %v1021, 1
        %v1199 = vsel %vm506, %v1197, %v1198
        %1200 = vrot.lane.b32.xlu0 %v1053, 16
        %v1201 = vpop.permute.xlu0 %1200
        %1202 = vrot.lane.b32.xlu0 %v1056, 16
        %v1203 = vpop.permute.xlu0 %1202
        %1204 = vrot.lane.b32.xlu0 %v1059, 16
        %v1205 = vpop.permute.xlu0 %1204
        %1206 = vrot.lane.b32.xlu0 %v1062, 16
        %v1207 = vpop.permute.xlu0 %1206
        %1208 = vrot.lane.b32.xlu0 %v1065, 16
        %v1209 = vpop.permute.xlu0 %1208
        %1210 = vrot.lane.b32.xlu0 %v1068, 16
        %v1211 = vpop.permute.xlu0 %1210
        %1212 = vrot.lane.b32.xlu0 %v1071, 16
        %v1213 = vpop.permute.xlu0 %1212
        %1214 = vrot.lane.b32.xlu0 %v1199, 16
        %v1215 = vpop.permute.xlu0 %1214
        %vm1224 = vcmask 162944
        %1225 = vst.msk [vmem:[#allocation3] sm:$0xff] %vm1224, %v1201
        %1226 = vst.msk [vmem:[#allocation3 + $0x8] sm:$0xff] %vm1224, %v1203
        %1227 = vst.msk [vmem:[#allocation3 + $0x10] sm:$0xff] %vm1224, %v1205
        %1228 = vst.msk [vmem:[#allocation3 + $0x18] sm:$0xff] %vm1224, %v1207
        %1229 = vst.msk [vmem:[#allocation3 + $0x20] sm:$0xff] %vm1224, %v1209
        %1230 = vst.msk [vmem:[#allocation3 + $0x28] sm:$0xff] %vm1224, %v1211
        %1231 = vst.msk [vmem:[#allocation3 + $0x30] sm:$0xff] %vm1224, %v1213
        %1232 = vst.msk [vmem:[#allocation3 + $0x38] sm:$0xff] %vm1224, %v1215
        %v1233 = vrot.slane %v1020, 2
        %v1234 = vrot.slane %v1021, 2
        %v1235 = vsel %vm564, %v1233, %v1234
        %1236 = vrot.lane.b32.xlu0 %v1110, 20
        %v1237 = vpop.permute.xlu0 %1236
        %1238 = vrot.lane.b32.xlu0 %v1113, 20
        %v1239 = vpop.permute.xlu0 %1238
        %1240 = vrot.lane.b32.xlu0 %v1116, 20
        %v1241 = vpop.permute.xlu0 %1240
        %1242 = vrot.lane.b32.xlu0 %v1119, 20
        %v1243 = vpop.permute.xlu0 %1242
        %1244 = vrot.lane.b32.xlu0 %v1122, 20
        %v1245 = vpop.permute.xlu0 %1244
        %1246 = vrot.lane.b32.xlu0 %v1125, 20
        %v1247 = vpop.permute.xlu0 %1246
        %1248 = vrot.lane.b32.xlu0 %v1128, 20
        %v1249 = vpop.permute.xlu0 %1248
        %1250 = vrot.lane.b32.xlu0 %v1235, 20
        %v1251 = vpop.permute.xlu0 %1250
        %vm1260 = vcmask 195744
        %1261 = vst.msk [vmem:[#allocation3] sm:$0xff] %vm1260, %v1237
        %1262 = vst.msk [vmem:[#allocation3 + $0x8] sm:$0xff] %vm1260, %v1239
        %1263 = vst.msk [vmem:[#allocation3 + $0x10] sm:$0xff] %vm1260, %v1241
        %1264 = vst.msk [vmem:[#allocation3 + $0x18] sm:$0xff] %vm1260, %v1243
        %1265 = vst.msk [vmem:[#allocation3 + $0x20] sm:$0xff] %vm1260, %v1245
        %1266 = vst.msk [vmem:[#allocation3 + $0x28] sm:$0xff] %vm1260, %v1247
        %1267 = vst.msk [vmem:[#allocation3 + $0x30] sm:$0xff] %vm1260, %v1249
        %1268 = vst.msk [vmem:[#allocation3 + $0x38] sm:$0xff] %vm1260, %v1251
        %1270 = vrot.lane.b32.xlu0 %v1008, 24
        %v1271 = vpop.permute.xlu0 %1270
        %1272 = vrot.lane.b32.xlu0 %v1010, 24
        %v1273 = vpop.permute.xlu0 %1272
        %1274 = vrot.lane.b32.xlu0 %v1012, 24
        %v1275 = vpop.permute.xlu0 %1274
        %1276 = vrot.lane.b32.xlu0 %v1014, 24
        %v1277 = vpop.permute.xlu0 %1276
        %1278 = vrot.lane.b32.xlu0 %v1016, 24
        %v1279 = vpop.permute.xlu0 %1278
        %1280 = vrot.lane.b32.xlu0 %v1018, 24
        %v1281 = vpop.permute.xlu0 %1280
        %1282 = vrot.lane.b32.xlu0 %v1020, 24
        %v1283 = vpop.permute.xlu0 %1282
        %1284 = vrot.lane.b32.xlu0 %v1022, 24
        %v1285 = vpop.permute.xlu0 %1284
        %vm1294 = vcmask 228544
        %1295 = vst.msk [vmem:[#allocation3] sm:$0xff] %vm1294, %v1271
        %1296 = vst.msk [vmem:[#allocation3 + $0x8] sm:$0xff] %vm1294, %v1273
        %1297 = vst.msk [vmem:[#allocation3 + $0x10] sm:$0xff] %vm1294, %v1275
        %1298 = vst.msk [vmem:[#allocation3 + $0x18] sm:$0xff] %vm1294, %v1277
        %1299 = vst.msk [vmem:[#allocation3 + $0x20] sm:$0xff] %vm1294, %v1279
        %1300 = vst.msk [vmem:[#allocation3 + $0x28] sm:$0xff] %vm1294, %v1281
        %1301 = vst.msk [vmem:[#allocation3 + $0x30] sm:$0xff] %vm1294, %v1283
        %1302 = vst.msk [vmem:[#allocation3 + $0x38] sm:$0xff] %vm1294, %v1285
        %v1304 = vrot.slane %v1022, 1
        %v1305 = vrot.slane %v1023, 1
        %v1306 = vsel %vm506, %v1304, %v1305
        %1307 = vrot.lane.b32.xlu0 %v1056, 28
        %v1308 = vpop.permute.xlu0 %1307
        %1309 = vrot.lane.b32.xlu0 %v1059, 28
        %v1310 = vpop.permute.xlu0 %1309
        %1311 = vrot.lane.b32.xlu0 %v1062, 28
        %v1312 = vpop.permute.xlu0 %1311
        %1313 = vrot.lane.b32.xlu0 %v1065, 28
        %v1314 = vpop.permute.xlu0 %1313
        %1315 = vrot.lane.b32.xlu0 %v1068, 28
        %v1316 = vpop.permute.xlu0 %1315
        %1317 = vrot.lane.b32.xlu0 %v1071, 28
        %v1318 = vpop.permute.xlu0 %1317
        %1319 = vrot.lane.b32.xlu0 %v1199, 28
        %v1320 = vpop.permute.xlu0 %1319
        %1321 = vrot.lane.b32.xlu0 %v1306, 28
        %v1322 = vpop.permute.xlu0 %1321
        %vm1331 = vcmask 261344
        %1332 = vst.msk [vmem:[#allocation3] sm:$0xff] %vm1331, %v1308
        %1333 = vst.msk [vmem:[#allocation3 + $0x8] sm:$0xff] %vm1331, %v1310
        %1334 = vst.msk [vmem:[#allocation3 + $0x10] sm:$0xff] %vm1331, %v1312
        %1335 = vst.msk [vmem:[#allocation3 + $0x18] sm:$0xff] %vm1331, %v1314
        %1336 = vst.msk [vmem:[#allocation3 + $0x20] sm:$0xff] %vm1331, %v1316
        %1337 = vst.msk [vmem:[#allocation3 + $0x28] sm:$0xff] %vm1331, %v1318
        %1338 = vst.msk [vmem:[#allocation3 + $0x30] sm:$0xff] %vm1331, %v1320
        %1339 = vst.msk [vmem:[#allocation3 + $0x38] sm:$0xff] %vm1331, %v1322
        %v1340 = vrot.slane %v1022, 2
        %v1341 = vrot.slane %v1023, 2
        %v1342 = vsel %vm564, %v1340, %v1341
        %1343 = vrot.lane.b32.xlu0 %v1113, 32
        %v1344 = vpop.permute.xlu0 %1343
        %1345 = vrot.lane.b32.xlu0 %v1116, 32
        %v1346 = vpop.permute.xlu0 %1345
        %1347 = vrot.lane.b32.xlu0 %v1119, 32
        %v1348 = vpop.permute.xlu0 %1347
        %1349 = vrot.lane.b32.xlu0 %v1122, 32
        %v1350 = vpop.permute.xlu0 %1349
        %1351 = vrot.lane.b32.xlu0 %v1125, 32
        %v1352 = vpop.permute.xlu0 %1351
        %1353 = vrot.lane.b32.xlu0 %v1128, 32
        %v1354 = vpop.permute.xlu0 %1353
        %1355 = vrot.lane.b32.xlu0 %v1235, 32
        %v1356 = vpop.permute.xlu0 %1355
        %1357 = vrot.lane.b32.xlu0 %v1342, 32
        %v1358 = vpop.permute.xlu0 %1357
        %vm1367 = vcmask 294144
        %1368 = vst.msk [vmem:[#allocation3] sm:$0xff] %vm1367, %v1344
        %1369 = vst.msk [vmem:[#allocation3 + $0x8] sm:$0xff] %vm1367, %v1346
        %1370 = vst.msk [vmem:[#allocation3 + $0x10] sm:$0xff] %vm1367, %v1348
        %1371 = vst.msk [vmem:[#allocation3 + $0x18] sm:$0xff] %vm1367, %v1350
        %1372 = vst.msk [vmem:[#allocation3 + $0x20] sm:$0xff] %vm1367, %v1352
        %1373 = vst.msk [vmem:[#allocation3 + $0x28] sm:$0xff] %vm1367, %v1354
        %1374 = vst.msk [vmem:[#allocation3 + $0x30] sm:$0xff] %vm1367, %v1356
        %1375 = vst.msk [vmem:[#allocation3 + $0x38] sm:$0xff] %vm1367, %v1358
        %1384 = vrot.lane.b32.xlu0 %v427, 36
        %v1385 = vpop.permute.xlu0 %1384
        %1386 = vrot.lane.b32.xlu0 %v428, 36
        %v1387 = vpop.permute.xlu0 %1386
        %1388 = vrot.lane.b32.xlu0 %v429, 36
        %v1389 = vpop.permute.xlu0 %1388
        %1390 = vrot.lane.b32.xlu0 %v430, 36
        %v1391 = vpop.permute.xlu0 %1390
        %1392 = vrot.lane.b32.xlu0 %v431, 36
        %v1393 = vpop.permute.xlu0 %1392
        %1394 = vrot.lane.b32.xlu0 %v432, 36
        %v1395 = vpop.permute.xlu0 %1394
        %1396 = vrot.lane.b32.xlu0 %v433, 36
        %v1397 = vpop.permute.xlu0 %1396
        %1398 = vrot.lane.b32.xlu0 %v434, 36
        %v1399 = vpop.permute.xlu0 %1398
        %vm1408 = vcmask 359712
        %1409 = vst.msk [vmem:[#allocation3] sm:$0xff] %vm1408, %v1385
        %1410 = vst.msk [vmem:[#allocation3 + $0x8] sm:$0xff] %vm1408, %v1387
        %1411 = vst.msk [vmem:[#allocation3 + $0x10] sm:$0xff] %vm1408, %v1389
        %1412 = vst.msk [vmem:[#allocation3 + $0x18] sm:$0xff] %vm1408, %v1391
        %1413 = vst.msk [vmem:[#allocation3 + $0x20] sm:$0xff] %vm1408, %v1393
        %1414 = vst.msk [vmem:[#allocation3 + $0x28] sm:$0xff] %vm1408, %v1395
        %1415 = vst.msk [vmem:[#allocation3 + $0x30] sm:$0xff] %vm1408, %v1397
        %1416 = vst.msk [vmem:[#allocation3 + $0x38] sm:$0xff] %vm1408, %v1399
        %v1417 = vld [vmem:[#allocation3] sm:$0xff]
        %v1418 = vld [vmem:[#allocation3 + $0x8] sm:$0xff]
        %v1419 = vld [vmem:[#allocation3 + $0x10] sm:$0xff]
        %v1420 = vld [vmem:[#allocation3 + $0x18] sm:$0xff]
        %v1421 = vld [vmem:[#allocation3 + $0x20] sm:$0xff]
        %v1422 = vld [vmem:[#allocation3 + $0x28] sm:$0xff]
        %v1423 = vld [vmem:[#allocation3 + $0x30] sm:$0xff]
        %v1424 = vld [vmem:[#allocation3 + $0x38] sm:$0xff]
        %v1426 = vlaneseq
        %v1427 = vshrl.u32 %v1426, 7
        %v1428 = vsub.s32 0, %v1427
        %v1429 = vrot.slane %v994, %v1428
        %vm1431 = vcmask 359424
        %v1433 = vsel %vm1431, %v1417, 0
        %v1436 = vsel %vm1431, %v1418, 0
        %v1439 = vsel %vm1431, %v1419, 0
        %v1442 = vsel %vm1431, %v1420, 0
        %v1445 = vsel %vm1431, %v1421, 0
        %v1448 = vsel %vm1431, %v1422, 0
        %v1451 = vsel %vm1431, %v1423, 0
        %v1454 = vsel %vm1431, %v1424, 0
        %vm1456 = vcmask 1043456
        %v1458 = vsel %vm1456, %v993, 0
        %1460 = vmatprep.subr.mxu0 0.0
        %1461 = vmatpush1.msra.mxu0 %v988
        %1462 = vmatprep.subr.mxu0 0.0
        %1463 = vmatpush1.msra.mxu0 %v989
        %1464 = vmatprep.subr.mxu0 0.0
        %1465 = vmatpush1.msra.mxu0 %v990
        %1466 = vmatprep.subr.mxu0 0.0
        %1467 = vmatpush1.msra.mxu0 %v991
        %1468 = vmatprep.subr.mxu0 0.0
        %1469 = vmatpush1.msra.mxu0 %v992
        %1470 = vmatprep.subr.mxu0 0.0
        %1471 = vmatpush1.msra.mxu0 %v1458
        %1472 = vmatprep.subr.mxu0 0.0
        %1473 = vmatpush1.msra.mxu0 0.0
        %1474 = vmatprep.subr.mxu0 0.0
        %1475 = vmatpush1.msra.mxu0 0.0
        %1476 = vmatprep.subr.mxu0 0.0
        %1477 = vmatpush1.msra.mxu0 0.0
        %1478 = vmatprep.subr.mxu0 0.0
        %1479 = vmatpush1.msra.mxu0 0.0
        %1480 = vmatprep.subr.mxu0 0.0
        %1481 = vmatpush1.msra.mxu0 0.0
        %1482 = vmatprep.subr.mxu0 0.0
        %1483 = vmatpush1.msra.mxu0 0.0
        %1484 = vmatprep.subr.mxu0 0.0
        %1485 = vmatpush1.msra.mxu0 0.0
        %1486 = vmatprep.subr.mxu0 0.0
        %1487 = vmatpush1.msra.mxu0 0.0
        %1488 = vmatprep.subr.mxu0 0.0
        %1489 = vmatpush1.msra.mxu0 0.0
        %1490 = vmatprep.subr.mxu0 0.0
        %1491 = vmatpush1.msra.mxu0 0.0
        %1492 = vmatprep.subr.mxu0 0.0
        %1493 = vmatpush1.msra.mxu0 0.0
        %1494 = vmatprep.subr.mxu0 0.0
        %1495 = vmatpush1.msra.mxu0 0.0
        %1496 = vmatprep.subr.mxu0 0.0
        %1497 = vmatpush1.msra.mxu0 0.0
        %1498 = vmatprep.subr.mxu0 0.0
        %1499 = vmatpush1.msra.mxu0 0.0
        %1500 = vmatprep.subr.mxu0 0.0
        %1501 = vmatpush1.msra.mxu0 0.0
        %1502 = vmatprep.subr.mxu0 0.0
        %1503 = vmatpush1.msra.mxu0 0.0
        %1504 = vmatprep.subr.mxu0 0.0
        %1505 = vmatpush1.msra.mxu0 0.0
        %1506 = vmatprep.subr.mxu0 0.0
        %1507 = vmatpush1.msra.mxu0 0.0
        %1508 = vmatprep.subr.mxu0 0.0
        %1509 = vmatpush1.msra.mxu0 0.0
        %1510 = vmatprep.subr.mxu0 0.0
        %1511 = vmatpush1.msra.mxu0 0.0
        %1512 = vmatprep.subr.mxu0 0.0
        %1513 = vmatpush1.msra.mxu0 0.0
        %1514 = vmatprep.subr.mxu0 0.0
        %1515 = vmatpush1.msra.mxu0 0.0
        %1516 = vmatprep.subr.mxu0 0.0
        %1517 = vmatpush1.msra.mxu0 0.0
        %1518 = vmatprep.subr.mxu0 0.0
        %1519 = vmatpush1.msra.mxu0 0.0
        %1520 = vmatprep.subr.mxu0 0.0
        %1521 = vmatpush1.msra.mxu0 0.0
        %1522 = vmatprep.subr.mxu0 0.0
        %1523 = vmatpush1.msra.mxu0 0.0
        %1524 = vmatprep.mubr.f32.mxu0 0.0
        %1525 = vmatmul.mubr.f32.gmra.mrb[0].mxu0 %v1433
        %v1526 = vpop.f32.mrb[0].mxu0
        %v1527 = vadd.f32 %v1429, %v1526
        %v1528 = vpop.f32.mrb[0].mxu0
        %1529 = vmatprep.mubr.f32.mxu0 0.0
        %1530 = vmatmul.mubr.f32.gmra.mrb[0].mxu0 %v1436
        %v1531 = vpop.f32.mrb[0].mxu0
        %v1532 = vadd.f32 %v1429, %v1531
        %v1533 = vpop.f32.mrb[0].mxu0
        %1534 = vmatprep.mubr.f32.mxu0 0.0
        %1535 = vmatmul.mubr.f32.gmra.mrb[0].mxu0 %v1439
        %v1536 = vpop.f32.mrb[0].mxu0
        %v1537 = vadd.f32 %v1429, %v1536
        %v1538 = vpop.f32.mrb[0].mxu0
        %1539 = vmatprep.mubr.f32.mxu0 0.0
        %1540 = vmatmul.mubr.f32.gmra.mrb[0].mxu0 %v1442
        %v1541 = vpop.f32.mrb[0].mxu0
        %v1542 = vadd.f32 %v1429, %v1541
        %v1543 = vpop.f32.mrb[0].mxu0
        %1544 = vmatprep.mubr.f32.mxu0 0.0
        %1545 = vmatmul.mubr.f32.gmra.mrb[0].mxu0 %v1445
        %v1546 = vpop.f32.mrb[0].mxu0
        %v1547 = vadd.f32 %v1429, %v1546
        %v1548 = vpop.f32.mrb[0].mxu0
        %1549 = vmatprep.mubr.f32.mxu0 0.0
        %1550 = vmatmul.mubr.f32.gmra.mrb[0].mxu0 %v1448
        %v1551 = vpop.f32.mrb[0].mxu0
        %v1552 = vadd.f32 %v1429, %v1551
        %v1553 = vpop.f32.mrb[0].mxu0
        %1554 = vmatprep.mubr.f32.mxu0 0.0
        %1555 = vmatmul.mubr.f32.gmra.mrb[0].mxu0 %v1451
        %v1556 = vpop.f32.mrb[0].mxu0
        %v1557 = vadd.f32 %v1429, %v1556
        %v1558 = vpop.f32.mrb[0].mxu0
        %1559 = vmatprep.mubr.f32.mxu0 0.0
        %1560 = vmatmul.mubr.f32.gmra.mrb[0].mxu0 %v1454
        %v1561 = vpop.f32.mrb[0].mxu0
        %v1562 = vadd.f32 %v1429, %v1561
        %v1563 = vpop.f32.mrb[0].mxu0
        %1564 = vdwg.mxu0
        %v1565 = vld [vmem:[%s404] sm:$0xff]
        %v1566 = vld [vmem:[%s404 + $0x8] sm:$0xff]
        %v1567 = vld [vmem:[%s404 + $0x10] sm:$0xff]
        %v1568 = vld [vmem:[%s404 + $0x18] sm:$0xff]
        %v1569 = vld [vmem:[%s404 + $0x20] sm:$0xff]
        %v1570 = vld [vmem:[%s404 + $0x28] sm:$0xff]
        %v1571 = vld [vmem:[%s404 + $0x30] sm:$0xff]
        %v1572 = vld [vmem:[%s404 + $0x38] sm:$0xff]
        %v1573 = vadd.f32 %v1527, %v1565
        %v1574 = vadd.f32 %v1532, %v1566
        %v1575 = vadd.f32 %v1537, %v1567
        %v1576 = vadd.f32 %v1542, %v1568
        %v1577 = vadd.f32 %v1547, %v1569
        %v1578 = vadd.f32 %v1552, %v1570
        %v1579 = vadd.f32 %v1557, %v1571
        %v1580 = vadd.f32 %v1562, %v1572
        %v1581 = vld [vmem:[%s6] sm:$0xff]
        %v1582 = vld [vmem:[%s6 + $0x8] sm:$0xff]
        %v1583 = vld [vmem:[%s6 + $0x10] sm:$0xff]
        %v1584 = vld [vmem:[%s6 + $0x18] sm:$0xff]
        %v1585 = vld [vmem:[%s6 + $0x20] sm:$0xf]
        %v1586 = vld [vmem:[%s7] sm:$0x1]
        %v1587 = vmax.f32 %v1573, 0.0
        %v1588 = vmax.f32 %v1574, 0.0
        %v1589 = vmax.f32 %v1575, 0.0
        %v1590 = vmax.f32 %v1576, 0.0
        %v1591 = vmax.f32 %v1577, 0.0
        %v1592 = vmax.f32 %v1578, 0.0
        %v1593 = vmax.f32 %v1579, 0.0
        %v1594 = vmax.f32 %v1580, 0.0
        %1595 = vst.msk [vmem:[%s453 + $0x1] sm:$0xff] %vm995, %v1587
        %1596 = vst.msk [vmem:[%s453 + $0x11] sm:$0xff] %vm995, %v1588
        %1597 = vst.msk [vmem:[%s453 + $0x21] sm:$0xff] %vm995, %v1589
        %1598 = vst.msk [vmem:[%s453 + $0x31] sm:$0xff] %vm995, %v1590
        %1599 = vst.msk [vmem:[%s453 + $0x41] sm:$0xff] %vm995, %v1591
        %1600 = vst.msk [vmem:[%s453 + $0x51] sm:$0xff] %vm995, %v1592
        %1601 = vst.msk [vmem:[%s453 + $0x61] sm:$0xff] %vm995, %v1593
        %1602 = vst.msk [vmem:[%s453 + $0x71] sm:$0xff] %vm995, %v1594
        %v1603 = vld [vmem:[#allocation2] sm:$0xff]
        %v1604 = vld [vmem:[#allocation2 + $0x8] sm:$0x3]
        %v1605 = vld [vmem:[#allocation2 + $0x10] sm:$0xff]
        %v1606 = vld [vmem:[#allocation2 + $0x18] sm:$0x3]
        %v1607 = vld [vmem:[#allocation2 + $0x20] sm:$0xff]
        %v1608 = vld [vmem:[#allocation2 + $0x28] sm:$0x3]
        %v1609 = vld [vmem:[#allocation2 + $0x30] sm:$0xff]
        %v1610 = vld [vmem:[#allocation2 + $0x38] sm:$0x3]
        %v1611 = vld [vmem:[#allocation2 + $0x40] sm:$0xff]
        %v1612 = vld [vmem:[#allocation2 + $0x48] sm:$0x3]
        %v1613 = vld [vmem:[#allocation2 + $0x50] sm:$0xff]
        %v1614 = vld [vmem:[#allocation2 + $0x58] sm:$0x3]
        %v1615 = vld [vmem:[#allocation2 + $0x60] sm:$0xff]
        %v1616 = vld [vmem:[#allocation2 + $0x68] sm:$0x3]
        %v1617 = vld [vmem:[#allocation2 + $0x70] sm:$0xff]
        %v1618 = vld [vmem:[#allocation2 + $0x78] sm:$0x3]
        %v1619 = vld [vmem:[#allocation2 + $0x80] sm:$0xff]
        %v1620 = vld [vmem:[#allocation2 + $0x88] sm:$0x3]
        %v1621 = vld [vmem:[#allocation2 + $0x90] sm:$0xff]
        %v1622 = vld [vmem:[#allocation2 + $0x98] sm:$0x3]
        %1623 = vst.msk [vmem:[#allocation3] sm:$0xff] %vm995, %v1603
        %1624 = vst.msk [vmem:[#allocation3 + $0x8] sm:$0xff] %vm995, %v1605
        %1625 = vst.msk [vmem:[#allocation3 + $0x10] sm:$0xff] %vm995, %v1607
        %1626 = vst.msk [vmem:[#allocation3 + $0x18] sm:$0xff] %vm995, %v1609
        %1627 = vst.msk [vmem:[#allocation3 + $0x20] sm:$0xff] %vm995, %v1611
        %1628 = vst.msk [vmem:[#allocation3 + $0x28] sm:$0xff] %vm995, %v1613
        %1629 = vst.msk [vmem:[#allocation3 + $0x30] sm:$0xff] %vm995, %v1615
        %1630 = vst.msk [vmem:[#allocation3 + $0x38] sm:$0xff] %vm995, %v1617
        %v1647 = vrot.slane %v1603, 1
        %v1648 = vrot.slane %v1604, 1
        %v1649 = vsel %vm506, %v1647, %v1648
        %v1650 = vrot.slane %v1605, 1
        %v1651 = vrot.slane %v1606, 1
        %v1652 = vsel %vm506, %v1650, %v1651
        %v1653 = vrot.slane %v1607, 1
        %v1654 = vrot.slane %v1608, 1
        %v1655 = vsel %vm506, %v1653, %v1654
        %v1656 = vrot.slane %v1609, 1
        %v1657 = vrot.slane %v1610, 1
        %v1658 = vsel %vm506, %v1656, %v1657
        %v1659 = vrot.slane %v1611, 1
        %v1660 = vrot.slane %v1612, 1
        %v1661 = vsel %vm506, %v1659, %v1660
        %v1662 = vrot.slane %v1613, 1
        %v1663 = vrot.slane %v1614, 1
        %v1664 = vsel %vm506, %v1662, %v1663
        %v1665 = vrot.slane %v1615, 1
        %v1666 = vrot.slane %v1616, 1
        %v1667 = vsel %vm506, %v1665, %v1666
        %v1668 = vrot.slane %v1617, 1
        %v1669 = vrot.slane %v1618, 1
        %v1670 = vsel %vm506, %v1668, %v1669
        %1671 = vrot.lane.b32.xlu0 %v1649, 4
        %v1672 = vpop.permute.xlu0 %1671
        %1673 = vrot.lane.b32.xlu0 %v1652, 4
        %v1674 = vpop.permute.xlu0 %1673
        %1675 = vrot.lane.b32.xlu0 %v1655, 4
        %v1676 = vpop.permute.xlu0 %1675
        %1677 = vrot.lane.b32.xlu0 %v1658, 4
        %v1678 = vpop.permute.xlu0 %1677
        %1679 = vrot.lane.b32.xlu0 %v1661, 4
        %v1680 = vpop.permute.xlu0 %1679
        %1681 = vrot.lane.b32.xlu0 %v1664, 4
        %v1682 = vpop.permute.xlu0 %1681
        %1683 = vrot.lane.b32.xlu0 %v1667, 4
        %v1684 = vpop.permute.xlu0 %1683
        %1685 = vrot.lane.b32.xlu0 %v1670, 4
        %v1686 = vpop.permute.xlu0 %1685
        %1695 = vst.msk [vmem:[#allocation3] sm:$0xff] %vm1096, %v1672
        %1696 = vst.msk [vmem:[#allocation3 + $0x8] sm:$0xff] %vm1096, %v1674
        %1697 = vst.msk [vmem:[#allocation3 + $0x10] sm:$0xff] %vm1096, %v1676
        %1698 = vst.msk [vmem:[#allocation3 + $0x18] sm:$0xff] %vm1096, %v1678
        %1699 = vst.msk [vmem:[#allocation3 + $0x20] sm:$0xff] %vm1096, %v1680
        %1700 = vst.msk [vmem:[#allocation3 + $0x28] sm:$0xff] %vm1096, %v1682
        %1701 = vst.msk [vmem:[#allocation3 + $0x30] sm:$0xff] %vm1096, %v1684
        %1702 = vst.msk [vmem:[#allocation3 + $0x38] sm:$0xff] %vm1096, %v1686
        %v1703 = vrot.slane %v1603, 2
        %v1704 = vrot.slane %v1604, 2
        %v1705 = vsel %vm564, %v1703, %v1704
        %v1706 = vrot.slane %v1605, 2
        %v1707 = vrot.slane %v1606, 2
        %v1708 = vsel %vm564, %v1706, %v1707
        %v1709 = vrot.slane %v1607, 2
        %v1710 = vrot.slane %v1608, 2
        %v1711 = vsel %vm564, %v1709, %v1710
        %v1712 = vrot.slane %v1609, 2
        %v1713 = vrot.slane %v1610, 2
        %v1714 = vsel %vm564, %v1712, %v1713
        %v1715 = vrot.slane %v1611, 2
        %v1716 = vrot.slane %v1612, 2
        %v1717 = vsel %vm564, %v1715, %v1716
        %v1718 = vrot.slane %v1613, 2
        %v1719 = vrot.slane %v1614, 2
        %v1720 = vsel %vm564, %v1718, %v1719
        %v1721 = vrot.slane %v1615, 2
        %v1722 = vrot.slane %v1616, 2
        %v1723 = vsel %vm564, %v1721, %v1722
        %v1724 = vrot.slane %v1617, 2
        %v1725 = vrot.slane %v1618, 2
        %v1726 = vsel %vm564, %v1724, %v1725
        %1727 = vrot.lane.b32.xlu0 %v1705, 8
        %v1728 = vpop.permute.xlu0 %1727
        %1729 = vrot.lane.b32.xlu0 %v1708, 8
        %v1730 = vpop.permute.xlu0 %1729
        %1731 = vrot.lane.b32.xlu0 %v1711, 8
        %v1732 = vpop.permute.xlu0 %1731
        %1733 = vrot.lane.b32.xlu0 %v1714, 8
        %v1734 = vpop.permute.xlu0 %1733
        %1735 = vrot.lane.b32.xlu0 %v1717, 8
        %v1736 = vpop.permute.xlu0 %1735
        %1737 = vrot.lane.b32.xlu0 %v1720, 8
        %v1738 = vpop.permute.xlu0 %1737
        %1739 = vrot.lane.b32.xlu0 %v1723, 8
        %v1740 = vpop.permute.xlu0 %1739
        %1741 = vrot.lane.b32.xlu0 %v1726, 8
        %v1742 = vpop.permute.xlu0 %1741
        %1751 = vst.msk [vmem:[#allocation3] sm:$0xff] %vm1153, %v1728
        %1752 = vst.msk [vmem:[#allocation3 + $0x8] sm:$0xff] %vm1153, %v1730
        %1753 = vst.msk [vmem:[#allocation3 + $0x10] sm:$0xff] %vm1153, %v1732
        %1754 = vst.msk [vmem:[#allocation3 + $0x18] sm:$0xff] %vm1153, %v1734
        %1755 = vst.msk [vmem:[#allocation3 + $0x20] sm:$0xff] %vm1153, %v1736
        %1756 = vst.msk [vmem:[#allocation3 + $0x28] sm:$0xff] %vm1153, %v1738
        %1757 = vst.msk [vmem:[#allocation3 + $0x30] sm:$0xff] %vm1153, %v1740
        %1758 = vst.msk [vmem:[#allocation3 + $0x38] sm:$0xff] %vm1153, %v1742
        %1760 = vrot.lane.b32.xlu0 %v1605, 12
        %v1761 = vpop.permute.xlu0 %1760
        %1762 = vrot.lane.b32.xlu0 %v1607, 12
        %v1763 = vpop.permute.xlu0 %1762
        %1764 = vrot.lane.b32.xlu0 %v1609, 12
        %v1765 = vpop.permute.xlu0 %1764
        %1766 = vrot.lane.b32.xlu0 %v1611, 12
        %v1767 = vpop.permute.xlu0 %1766
        %1768 = vrot.lane.b32.xlu0 %v1613, 12
        %v1769 = vpop.permute.xlu0 %1768
        %1770 = vrot.lane.b32.xlu0 %v1615, 12
        %v1771 = vpop.permute.xlu0 %1770
        %1772 = vrot.lane.b32.xlu0 %v1617, 12
        %v1773 = vpop.permute.xlu0 %1772
        %1774 = vrot.lane.b32.xlu0 %v1619, 12
        %v1775 = vpop.permute.xlu0 %1774
        %1784 = vst.msk [vmem:[#allocation3] sm:$0xff] %vm1187, %v1761
        %1785 = vst.msk [vmem:[#allocation3 + $0x8] sm:$0xff] %vm1187, %v1763
        %1786 = vst.msk [vmem:[#allocation3 + $0x10] sm:$0xff] %vm1187, %v1765
        %1787 = vst.msk [vmem:[#allocation3 + $0x18] sm:$0xff] %vm1187, %v1767
        %1788 = vst.msk [vmem:[#allocation3 + $0x20] sm:$0xff] %vm1187, %v1769
        %1789 = vst.msk [vmem:[#allocation3 + $0x28] sm:$0xff] %vm1187, %v1771
        %1790 = vst.msk [vmem:[#allocation3 + $0x30] sm:$0xff] %vm1187, %v1773
        %1791 = vst.msk [vmem:[#allocation3 + $0x38] sm:$0xff] %vm1187, %v1775
        %v1793 = vrot.slane %v1619, 1
        %v1794 = vrot.slane %v1620, 1
        %v1795 = vsel %vm506, %v1793, %v1794
        %1796 = vrot.lane.b32.xlu0 %v1652, 16
        %v1797 = vpop.permute.xlu0 %1796
        %1798 = vrot.lane.b32.xlu0 %v1655, 16
        %v1799 = vpop.permute.xlu0 %1798
        %1800 = vrot.lane.b32.xlu0 %v1658, 16
        %v1801 = vpop.permute.xlu0 %1800
        %1802 = vrot.lane.b32.xlu0 %v1661, 16
        %v1803 = vpop.permute.xlu0 %1802
        %1804 = vrot.lane.b32.xlu0 %v1664, 16
        %v1805 = vpop.permute.xlu0 %1804
        %1806 = vrot.lane.b32.xlu0 %v1667, 16
        %v1807 = vpop.permute.xlu0 %1806
        %1808 = vrot.lane.b32.xlu0 %v1670, 16
        %v1809 = vpop.permute.xlu0 %1808
        %1810 = vrot.lane.b32.xlu0 %v1795, 16
        %v1811 = vpop.permute.xlu0 %1810
        %1820 = vst.msk [vmem:[#allocation3] sm:$0xff] %vm1224, %v1797
        %1821 = vst.msk [vmem:[#allocation3 + $0x8] sm:$0xff] %vm1224, %v1799
        %1822 = vst.msk [vmem:[#allocation3 + $0x10] sm:$0xff] %vm1224, %v1801
        %1823 = vst.msk [vmem:[#allocation3 + $0x18] sm:$0xff] %vm1224, %v1803
        %1824 = vst.msk [vmem:[#allocation3 + $0x20] sm:$0xff] %vm1224, %v1805
        %1825 = vst.msk [vmem:[#allocation3 + $0x28] sm:$0xff] %vm1224, %v1807
        %1826 = vst.msk [vmem:[#allocation3 + $0x30] sm:$0xff] %vm1224, %v1809
        %1827 = vst.msk [vmem:[#allocation3 + $0x38] sm:$0xff] %vm1224, %v1811
        %v1828 = vrot.slane %v1619, 2
        %v1829 = vrot.slane %v1620, 2
        %v1830 = vsel %vm564, %v1828, %v1829
        %1831 = vrot.lane.b32.xlu0 %v1708, 20
        %v1832 = vpop.permute.xlu0 %1831
        %1833 = vrot.lane.b32.xlu0 %v1711, 20
        %v1834 = vpop.permute.xlu0 %1833
        %1835 = vrot.lane.b32.xlu0 %v1714, 20
        %v1836 = vpop.permute.xlu0 %1835
        %1837 = vrot.lane.b32.xlu0 %v1717, 20
        %v1838 = vpop.permute.xlu0 %1837
        %1839 = vrot.lane.b32.xlu0 %v1720, 20
        %v1840 = vpop.permute.xlu0 %1839
        %1841 = vrot.lane.b32.xlu0 %v1723, 20
        %v1842 = vpop.permute.xlu0 %1841
        %1843 = vrot.lane.b32.xlu0 %v1726, 20
        %v1844 = vpop.permute.xlu0 %1843
        %1845 = vrot.lane.b32.xlu0 %v1830, 20
        %v1846 = vpop.permute.xlu0 %1845
        %1855 = vst.msk [vmem:[#allocation3] sm:$0xff] %vm1260, %v1832
        %1856 = vst.msk [vmem:[#allocation3 + $0x8] sm:$0xff] %vm1260, %v1834
        %1857 = vst.msk [vmem:[#allocation3 + $0x10] sm:$0xff] %vm1260, %v1836
        %1858 = vst.msk [vmem:[#allocation3 + $0x18] sm:$0xff] %vm1260, %v1838
        %1859 = vst.msk [vmem:[#allocation3 + $0x20] sm:$0xff] %vm1260, %v1840
        %1860 = vst.msk [vmem:[#allocation3 + $0x28] sm:$0xff] %vm1260, %v1842
        %1861 = vst.msk [vmem:[#allocation3 + $0x30] sm:$0xff] %vm1260, %v1844
        %1862 = vst.msk [vmem:[#allocation3 + $0x38] sm:$0xff] %vm1260, %v1846
        %1864 = vrot.lane.b32.xlu0 %v1607, 24
        %v1865 = vpop.permute.xlu0 %1864
        %1866 = vrot.lane.b32.xlu0 %v1609, 24
        %v1867 = vpop.permute.xlu0 %1866
        %1868 = vrot.lane.b32.xlu0 %v1611, 24
        %v1869 = vpop.permute.xlu0 %1868
        %1870 = vrot.lane.b32.xlu0 %v1613, 24
        %v1871 = vpop.permute.xlu0 %1870
        %1872 = vrot.lane.b32.xlu0 %v1615, 24
        %v1873 = vpop.permute.xlu0 %1872
        %1874 = vrot.lane.b32.xlu0 %v1617, 24
        %v1875 = vpop.permute.xlu0 %1874
        %1876 = vrot.lane.b32.xlu0 %v1619, 24
        %v1877 = vpop.permute.xlu0 %1876
        %1878 = vrot.lane.b32.xlu0 %v1621, 24
        %v1879 = vpop.permute.xlu0 %1878
        %1888 = vst.msk [vmem:[#allocation3] sm:$0xff] %vm1294, %v1865
        %1889 = vst.msk [vmem:[#allocation3 + $0x8] sm:$0xff] %vm1294, %v1867
        %1890 = vst.msk [vmem:[#allocation3 + $0x10] sm:$0xff] %vm1294, %v1869
        %1891 = vst.msk [vmem:[#allocation3 + $0x18] sm:$0xff] %vm1294, %v1871
        %1892 = vst.msk [vmem:[#allocation3 + $0x20] sm:$0xff] %vm1294, %v1873
        %1893 = vst.msk [vmem:[#allocation3 + $0x28] sm:$0xff] %vm1294, %v1875
        %1894 = vst.msk [vmem:[#allocation3 + $0x30] sm:$0xff] %vm1294, %v1877
        %1895 = vst.msk [vmem:[#allocation3 + $0x38] sm:$0xff] %vm1294, %v1879
        %v1897 = vrot.slane %v1621, 1
        %v1898 = vrot.slane %v1622, 1
        %v1899 = vsel %vm506, %v1897, %v1898
        %1900 = vrot.lane.b32.xlu0 %v1655, 28
        %v1901 = vpop.permute.xlu0 %1900
        %1902 = vrot.lane.b32.xlu0 %v1658, 28
        %v1903 = vpop.permute.xlu0 %1902
        %1904 = vrot.lane.b32.xlu0 %v1661, 28
        %v1905 = vpop.permute.xlu0 %1904
        %1906 = vrot.lane.b32.xlu0 %v1664, 28
        %v1907 = vpop.permute.xlu0 %1906
        %1908 = vrot.lane.b32.xlu0 %v1667, 28
        %v1909 = vpop.permute.xlu0 %1908
        %1910 = vrot.lane.b32.xlu0 %v1670, 28
        %v1911 = vpop.permute.xlu0 %1910
        %1912 = vrot.lane.b32.xlu0 %v1795, 28
        %v1913 = vpop.permute.xlu0 %1912
        %1914 = vrot.lane.b32.xlu0 %v1899, 28
        %v1915 = vpop.permute.xlu0 %1914
        %1924 = vst.msk [vmem:[#allocation3] sm:$0xff] %vm1331, %v1901
        %1925 = vst.msk [vmem:[#allocation3 + $0x8] sm:$0xff] %vm1331, %v1903
        %1926 = vst.msk [vmem:[#allocation3 + $0x10] sm:$0xff] %vm1331, %v1905
        %1927 = vst.msk [vmem:[#allocation3 + $0x18] sm:$0xff] %vm1331, %v1907
        %1928 = vst.msk [vmem:[#allocation3 + $0x20] sm:$0xff] %vm1331, %v1909
        %1929 = vst.msk [vmem:[#allocation3 + $0x28] sm:$0xff] %vm1331, %v1911
        %1930 = vst.msk [vmem:[#allocation3 + $0x30] sm:$0xff] %vm1331, %v1913
        %1931 = vst.msk [vmem:[#allocation3 + $0x38] sm:$0xff] %vm1331, %v1915
        %v1932 = vrot.slane %v1621, 2
        %v1933 = vrot.slane %v1622, 2
        %v1934 = vsel %vm564, %v1932, %v1933
        %1935 = vrot.lane.b32.xlu0 %v1711, 32
        %v1936 = vpop.permute.xlu0 %1935
        %1937 = vrot.lane.b32.xlu0 %v1714, 32
        %v1938 = vpop.permute.xlu0 %1937
        %1939 = vrot.lane.b32.xlu0 %v1717, 32
        %v1940 = vpop.permute.xlu0 %1939
        %1941 = vrot.lane.b32.xlu0 %v1720, 32
        %v1942 = vpop.permute.xlu0 %1941
        %1943 = vrot.lane.b32.xlu0 %v1723, 32
        %v1944 = vpop.permute.xlu0 %1943
        %1945 = vrot.lane.b32.xlu0 %v1726, 32
        %v1946 = vpop.permute.xlu0 %1945
        %1947 = vrot.lane.b32.xlu0 %v1830, 32
        %v1948 = vpop.permute.xlu0 %1947
        %1949 = vrot.lane.b32.xlu0 %v1934, 32
        %v1950 = vpop.permute.xlu0 %1949
        %1959 = vst.msk [vmem:[#allocation3] sm:$0xff] %vm1367, %v1936
        %1960 = vst.msk [vmem:[#allocation3 + $0x8] sm:$0xff] %vm1367, %v1938
        %1961 = vst.msk [vmem:[#allocation3 + $0x10] sm:$0xff] %vm1367, %v1940
        %1962 = vst.msk [vmem:[#allocation3 + $0x18] sm:$0xff] %vm1367, %v1942
        %1963 = vst.msk [vmem:[#allocation3 + $0x20] sm:$0xff] %vm1367, %v1944
        %1964 = vst.msk [vmem:[#allocation3 + $0x28] sm:$0xff] %vm1367, %v1946
        %1965 = vst.msk [vmem:[#allocation3 + $0x30] sm:$0xff] %vm1367, %v1948
        %1966 = vst.msk [vmem:[#allocation3 + $0x38] sm:$0xff] %vm1367, %v1950
        %v1967 = vld [vmem:[#allocation3] sm:$0xff]
        %v1968 = vld [vmem:[#allocation3 + $0x8] sm:$0xff]
        %v1969 = vld [vmem:[#allocation3 + $0x10] sm:$0xff]
        %v1970 = vld [vmem:[#allocation3 + $0x18] sm:$0xff]
        %v1971 = vld [vmem:[#allocation3 + $0x20] sm:$0xff]
        %v1972 = vld [vmem:[#allocation3 + $0x28] sm:$0xff]
        %v1973 = vld [vmem:[#allocation3 + $0x30] sm:$0xff]
        %v1974 = vld [vmem:[#allocation3 + $0x38] sm:$0xff]
        %v1976 = vlaneseq
        %v1977 = vshrl.u32 %v1976, 7
        %v1978 = vsub.s32 0, %v1977
        %v1979 = vrot.slane %v1586, %v1978
        %vm1981 = vcmask 293888
        %v1983 = vsel %vm1981, %v1967, 0
        %v1986 = vsel %vm1981, %v1968, 0
        %v1989 = vsel %vm1981, %v1969, 0
        %v1992 = vsel %vm1981, %v1970, 0
        %v1995 = vsel %vm1981, %v1971, 0
        %v1998 = vsel %vm1981, %v1972, 0
        %v2001 = vsel %vm1981, %v1973, 0
        %v2004 = vsel %vm1981, %v1974, 0
        %v2007 = vsel %vm1456, %v1585, 0
        %2009 = vmatprep.subr.mxu0 0.0
        %2010 = vmatpush1.msra.mxu0 %v1581
        %2011 = vmatprep.subr.mxu0 0.0
        %2012 = vmatpush1.msra.mxu0 %v1582
        %2013 = vmatprep.subr.mxu0 0.0
        %2014 = vmatpush1.msra.mxu0 %v1583
        %2015 = vmatprep.subr.mxu0 0.0
        %2016 = vmatpush1.msra.mxu0 %v1584
        %2017 = vmatprep.subr.mxu0 0.0
        %2018 = vmatpush1.msra.mxu0 %v2007
        %2019 = vmatprep.subr.mxu0 0.0
        %2020 = vmatpush1.msra.mxu0 0.0
        %2021 = vmatprep.subr.mxu0 0.0
        %2022 = vmatpush1.msra.mxu0 0.0
        %2023 = vmatprep.subr.mxu0 0.0
        %2024 = vmatpush1.msra.mxu0 0.0
        %2025 = vmatprep.subr.mxu0 0.0
        %2026 = vmatpush1.msra.mxu0 0.0
        %2027 = vmatprep.subr.mxu0 0.0
        %2028 = vmatpush1.msra.mxu0 0.0
        %2029 = vmatprep.subr.mxu0 0.0
        %2030 = vmatpush1.msra.mxu0 0.0
        %2031 = vmatprep.subr.mxu0 0.0
        %2032 = vmatpush1.msra.mxu0 0.0
        %2033 = vmatprep.subr.mxu0 0.0
        %2034 = vmatpush1.msra.mxu0 0.0
        %2035 = vmatprep.subr.mxu0 0.0
        %2036 = vmatpush1.msra.mxu0 0.0
        %2037 = vmatprep.subr.mxu0 0.0
        %2038 = vmatpush1.msra.mxu0 0.0
        %2039 = vmatprep.subr.mxu0 0.0
        %2040 = vmatpush1.msra.mxu0 0.0
        %2041 = vmatprep.subr.mxu0 0.0
        %2042 = vmatpush1.msra.mxu0 0.0
        %2043 = vmatprep.subr.mxu0 0.0
        %2044 = vmatpush1.msra.mxu0 0.0
        %2045 = vmatprep.subr.mxu0 0.0
        %2046 = vmatpush1.msra.mxu0 0.0
        %2047 = vmatprep.subr.mxu0 0.0
        %2048 = vmatpush1.msra.mxu0 0.0
        %2049 = vmatprep.subr.mxu0 0.0
        %2050 = vmatpush1.msra.mxu0 0.0
        %2051 = vmatprep.subr.mxu0 0.0
        %2052 = vmatpush1.msra.mxu0 0.0
        %2053 = vmatprep.subr.mxu0 0.0
        %2054 = vmatpush1.msra.mxu0 0.0
        %2055 = vmatprep.subr.mxu0 0.0
        %2056 = vmatpush1.msra.mxu0 0.0
        %2057 = vmatprep.subr.mxu0 0.0
        %2058 = vmatpush1.msra.mxu0 0.0
        %2059 = vmatprep.subr.mxu0 0.0
        %2060 = vmatpush1.msra.mxu0 0.0
        %2061 = vmatprep.subr.mxu0 0.0
        %2062 = vmatpush1.msra.mxu0 0.0
        %2063 = vmatprep.subr.mxu0 0.0
        %2064 = vmatpush1.msra.mxu0 0.0
        %2065 = vmatprep.subr.mxu0 0.0
        %2066 = vmatpush1.msra.mxu0 0.0
        %2067 = vmatprep.subr.mxu0 0.0
        %2068 = vmatpush1.msra.mxu0 0.0
        %2069 = vmatprep.subr.mxu0 0.0
        %2070 = vmatpush1.msra.mxu0 0.0
        %2071 = vmatprep.subr.mxu0 0.0
        %2072 = vmatpush1.msra.mxu0 0.0
        %2073 = vmatprep.mubr.f32.mxu0 0.0
        %2074 = vmatmul.mubr.f32.gmra.mrb[0].mxu0 %v1983
        %v2075 = vpop.f32.mrb[0].mxu0
        %v2076 = vadd.f32 %v1979, %v2075
        %v2077 = vpop.f32.mrb[0].mxu0
        %2078 = vmatprep.mubr.f32.mxu0 0.0
        %2079 = vmatmul.mubr.f32.gmra.mrb[0].mxu0 %v1986
        %v2080 = vpop.f32.mrb[0].mxu0
        %v2081 = vadd.f32 %v1979, %v2080
        %v2082 = vpop.f32.mrb[0].mxu0
        %2083 = vmatprep.mubr.f32.mxu0 0.0
        %2084 = vmatmul.mubr.f32.gmra.mrb[0].mxu0 %v1989
        %v2085 = vpop.f32.mrb[0].mxu0
        %v2086 = vadd.f32 %v1979, %v2085
        %v2087 = vpop.f32.mrb[0].mxu0
        %2088 = vmatprep.mubr.f32.mxu0 0.0
        %2089 = vmatmul.mubr.f32.gmra.mrb[0].mxu0 %v1992
        %v2090 = vpop.f32.mrb[0].mxu0
        %v2091 = vadd.f32 %v1979, %v2090
        %v2092 = vpop.f32.mrb[0].mxu0
        %2093 = vmatprep.mubr.f32.mxu0 0.0
        %2094 = vmatmul.mubr.f32.gmra.mrb[0].mxu0 %v1995
        %v2095 = vpop.f32.mrb[0].mxu0
        %v2096 = vadd.f32 %v1979, %v2095
        %v2097 = vpop.f32.mrb[0].mxu0
        %2098 = vmatprep.mubr.f32.mxu0 0.0
        %2099 = vmatmul.mubr.f32.gmra.mrb[0].mxu0 %v1998
        %v2100 = vpop.f32.mrb[0].mxu0
        %v2101 = vadd.f32 %v1979, %v2100
        %v2102 = vpop.f32.mrb[0].mxu0
        %2103 = vmatprep.mubr.f32.mxu0 0.0
        %2104 = vmatmul.mubr.f32.gmra.mrb[0].mxu0 %v2001
        %v2105 = vpop.f32.mrb[0].mxu0
        %v2106 = vadd.f32 %v1979, %v2105
        %v2107 = vpop.f32.mrb[0].mxu0
        %2108 = vmatprep.mubr.f32.mxu0 0.0
        %2109 = vmatmul.mubr.f32.gmra.mrb[0].mxu0 %v2004
        %v2110 = vpop.f32.mrb[0].mxu0
        %v2111 = vadd.f32 %v1979, %v2110
        %v2112 = vpop.f32.mrb[0].mxu0
        %2113 = vdwg.mxu0
        %v2114 = vmax.f32 %v2076, 0.0
        %v2115 = vmax.f32 %v2081, 0.0
        %v2116 = vmax.f32 %v2086, 0.0
        %v2117 = vmax.f32 %v2091, 0.0
        %v2118 = vmax.f32 %v2096, 0.0
        %v2119 = vmax.f32 %v2101, 0.0
        %v2120 = vmax.f32 %v2106, 0.0
        %v2121 = vmax.f32 %v2111, 0.0
        %v2122 = vld [vmem:[%s8] sm:$0xff]
        %v2123 = vld [vmem:[%s8 + $0x8] sm:$0xff]
        %v2124 = vld [vmem:[%s8 + $0x10] sm:$0xff]
        %v2125 = vld [vmem:[%s8 + $0x18] sm:$0xff]
        %v2126 = vld [vmem:[%s8 + $0x20] sm:$0xf]
        %v2127 = vld [vmem:[%s9] sm:$0x1]
        %2128 = vst.msk [vmem:[%s453 + $0x1] sm:$0xff] %vm995, %v2114
        %2129 = vst.msk [vmem:[%s453 + $0x11] sm:$0xff] %vm995, %v2115
        %2130 = vst.msk [vmem:[%s453 + $0x21] sm:$0xff] %vm995, %v2116
        %2131 = vst.msk [vmem:[%s453 + $0x31] sm:$0xff] %vm995, %v2117
        %2132 = vst.msk [vmem:[%s453 + $0x41] sm:$0xff] %vm995, %v2118
        %2133 = vst.msk [vmem:[%s453 + $0x51] sm:$0xff] %vm995, %v2119
        %2134 = vst.msk [vmem:[%s453 + $0x61] sm:$0xff] %vm995, %v2120
        %2135 = vst.msk [vmem:[%s453 + $0x71] sm:$0xff] %vm995, %v2121
        %v2136 = vld [vmem:[#allocation2] sm:$0xff]
        %v2137 = vld [vmem:[#allocation2 + $0x8] sm:$0x3]
        %v2138 = vld [vmem:[#allocation2 + $0x10] sm:$0xff]
        %v2139 = vld [vmem:[#allocation2 + $0x18] sm:$0x3]
        %v2140 = vld [vmem:[#allocation2 + $0x20] sm:$0xff]
        %v2141 = vld [vmem:[#allocation2 + $0x28] sm:$0x3]
        %v2142 = vld [vmem:[#allocation2 + $0x30] sm:$0xff]
        %v2143 = vld [vmem:[#allocation2 + $0x38] sm:$0x3]
        %v2144 = vld [vmem:[#allocation2 + $0x40] sm:$0xff]
        %v2145 = vld [vmem:[#allocation2 + $0x48] sm:$0x3]
        %v2146 = vld [vmem:[#allocation2 + $0x50] sm:$0xff]
        %v2147 = vld [vmem:[#allocation2 + $0x58] sm:$0x3]
        %v2148 = vld [vmem:[#allocation2 + $0x60] sm:$0xff]
        %v2149 = vld [vmem:[#allocation2 + $0x68] sm:$0x3]
        %v2150 = vld [vmem:[#allocation2 + $0x70] sm:$0xff]
        %v2151 = vld [vmem:[#allocation2 + $0x78] sm:$0x3]
        %v2152 = vld [vmem:[#allocation2 + $0x80] sm:$0xff]
        %v2153 = vld [vmem:[#allocation2 + $0x88] sm:$0x3]
        %v2154 = vld [vmem:[#allocation2 + $0x90] sm:$0xff]
        %v2155 = vld [vmem:[#allocation2 + $0x98] sm:$0x3]
        %2156 = vst.msk [vmem:[#allocation3] sm:$0xff] %vm995, %v2136
        %2157 = vst.msk [vmem:[#allocation3 + $0x8] sm:$0xff] %vm995, %v2138
        %2158 = vst.msk [vmem:[#allocation3 + $0x10] sm:$0xff] %vm995, %v2140
        %2159 = vst.msk [vmem:[#allocation3 + $0x18] sm:$0xff] %vm995, %v2142
        %2160 = vst.msk [vmem:[#allocation3 + $0x20] sm:$0xff] %vm995, %v2144
        %2161 = vst.msk [vmem:[#allocation3 + $0x28] sm:$0xff] %vm995, %v2146
        %2162 = vst.msk [vmem:[#allocation3 + $0x30] sm:$0xff] %vm995, %v2148
        %2163 = vst.msk [vmem:[#allocation3 + $0x38] sm:$0xff] %vm995, %v2150
        %v2180 = vrot.slane %v2136, 1
        %v2181 = vrot.slane %v2137, 1
        %v2182 = vsel %vm506, %v2180, %v2181
        %v2183 = vrot.slane %v2138, 1
        %v2184 = vrot.slane %v2139, 1
        %v2185 = vsel %vm506, %v2183, %v2184
        %v2186 = vrot.slane %v2140, 1
        %v2187 = vrot.slane %v2141, 1
        %v2188 = vsel %vm506, %v2186, %v2187
        %v2189 = vrot.slane %v2142, 1
        %v2190 = vrot.slane %v2143, 1
        %v2191 = vsel %vm506, %v2189, %v2190
        %v2192 = vrot.slane %v2144, 1
        %v2193 = vrot.slane %v2145, 1
        %v2194 = vsel %vm506, %v2192, %v2193
        %v2195 = vrot.slane %v2146, 1
        %v2196 = vrot.slane %v2147, 1
        %v2197 = vsel %vm506, %v2195, %v2196
        %v2198 = vrot.slane %v2148, 1
        %v2199 = vrot.slane %v2149, 1
        %v2200 = vsel %vm506, %v2198, %v2199
        %v2201 = vrot.slane %v2150, 1
        %v2202 = vrot.slane %v2151, 1
        %v2203 = vsel %vm506, %v2201, %v2202
        %2204 = vrot.lane.b32.xlu0 %v2182, 4
        %v2205 = vpop.permute.xlu0 %2204
        %2206 = vrot.lane.b32.xlu0 %v2185, 4
        %v2207 = vpop.permute.xlu0 %2206
        %2208 = vrot.lane.b32.xlu0 %v2188, 4
        %v2209 = vpop.permute.xlu0 %2208
        %2210 = vrot.lane.b32.xlu0 %v2191, 4
        %v2211 = vpop.permute.xlu0 %2210
        %2212 = vrot.lane.b32.xlu0 %v2194, 4
        %v2213 = vpop.permute.xlu0 %2212
        %2214 = vrot.lane.b32.xlu0 %v2197, 4
        %v2215 = vpop.permute.xlu0 %2214
        %2216 = vrot.lane.b32.xlu0 %v2200, 4
        %v2217 = vpop.permute.xlu0 %2216
        %2218 = vrot.lane.b32.xlu0 %v2203, 4
        %v2219 = vpop.permute.xlu0 %2218
        %2228 = vst.msk [vmem:[#allocation3] sm:$0xff] %vm1096, %v2205
        %2229 = vst.msk [vmem:[#allocation3 + $0x8] sm:$0xff] %vm1096, %v2207
        %2230 = vst.msk [vmem:[#allocation3 + $0x10] sm:$0xff] %vm1096, %v2209
        %2231 = vst.msk [vmem:[#allocation3 + $0x18] sm:$0xff] %vm1096, %v2211
        %2232 = vst.msk [vmem:[#allocation3 + $0x20] sm:$0xff] %vm1096, %v2213
        %2233 = vst.msk [vmem:[#allocation3 + $0x28] sm:$0xff] %vm1096, %v2215
        %2234 = vst.msk [vmem:[#allocation3 + $0x30] sm:$0xff] %vm1096, %v2217
        %2235 = vst.msk [vmem:[#allocation3 + $0x38] sm:$0xff] %vm1096, %v2219
        %v2236 = vrot.slane %v2136, 2
        %v2237 = vrot.slane %v2137, 2
        %v2238 = vsel %vm564, %v2236, %v2237
        %v2239 = vrot.slane %v2138, 2
        %v2240 = vrot.slane %v2139, 2
        %v2241 = vsel %vm564, %v2239, %v2240
        %v2242 = vrot.slane %v2140, 2
        %v2243 = vrot.slane %v2141, 2
        %v2244 = vsel %vm564, %v2242, %v2243
        %v2245 = vrot.slane %v2142, 2
        %v2246 = vrot.slane %v2143, 2
        %v2247 = vsel %vm564, %v2245, %v2246
        %v2248 = vrot.slane %v2144, 2
        %v2249 = vrot.slane %v2145, 2
        %v2250 = vsel %vm564, %v2248, %v2249
        %v2251 = vrot.slane %v2146, 2
        %v2252 = vrot.slane %v2147, 2
        %v2253 = vsel %vm564, %v2251, %v2252
        %v2254 = vrot.slane %v2148, 2
        %v2255 = vrot.slane %v2149, 2
        %v2256 = vsel %vm564, %v2254, %v2255
        %v2257 = vrot.slane %v2150, 2
        %v2258 = vrot.slane %v2151, 2
        %v2259 = vsel %vm564, %v2257, %v2258
        %2260 = vrot.lane.b32.xlu0 %v2238, 8
        %v2261 = vpop.permute.xlu0 %2260
        %2262 = vrot.lane.b32.xlu0 %v2241, 8
        %v2263 = vpop.permute.xlu0 %2262
        %2264 = vrot.lane.b32.xlu0 %v2244, 8
        %v2265 = vpop.permute.xlu0 %2264
        %2266 = vrot.lane.b32.xlu0 %v2247, 8
        %v2267 = vpop.permute.xlu0 %2266
        %2268 = vrot.lane.b32.xlu0 %v2250, 8
        %v2269 = vpop.permute.xlu0 %2268
        %2270 = vrot.lane.b32.xlu0 %v2253, 8
        %v2271 = vpop.permute.xlu0 %2270
        %2272 = vrot.lane.b32.xlu0 %v2256, 8
        %v2273 = vpop.permute.xlu0 %2272
        %2274 = vrot.lane.b32.xlu0 %v2259, 8
        %v2275 = vpop.permute.xlu0 %2274
        %2284 = vst.msk [vmem:[#allocation3] sm:$0xff] %vm1153, %v2261
        %2285 = vst.msk [vmem:[#allocation3 + $0x8] sm:$0xff] %vm1153, %v2263
        %2286 = vst.msk [vmem:[#allocation3 + $0x10] sm:$0xff] %vm1153, %v2265
        %2287 = vst.msk [vmem:[#allocation3 + $0x18] sm:$0xff] %vm1153, %v2267
        %2288 = vst.msk [vmem:[#allocation3 + $0x20] sm:$0xff] %vm1153, %v2269
        %2289 = vst.msk [vmem:[#allocation3 + $0x28] sm:$0xff] %vm1153, %v2271
        %2290 = vst.msk [vmem:[#allocation3 + $0x30] sm:$0xff] %vm1153, %v2273
        %2291 = vst.msk [vmem:[#allocation3 + $0x38] sm:$0xff] %vm1153, %v2275
        %2293 = vrot.lane.b32.xlu0 %v2138, 12
        %v2294 = vpop.permute.xlu0 %2293
        %2295 = vrot.lane.b32.xlu0 %v2140, 12
        %v2296 = vpop.permute.xlu0 %2295
        %2297 = vrot.lane.b32.xlu0 %v2142, 12
        %v2298 = vpop.permute.xlu0 %2297
        %2299 = vrot.lane.b32.xlu0 %v2144, 12
        %v2300 = vpop.permute.xlu0 %2299
        %2301 = vrot.lane.b32.xlu0 %v2146, 12
        %v2302 = vpop.permute.xlu0 %2301
        %2303 = vrot.lane.b32.xlu0 %v2148, 12
        %v2304 = vpop.permute.xlu0 %2303
        %2305 = vrot.lane.b32.xlu0 %v2150, 12
        %v2306 = vpop.permute.xlu0 %2305
        %2307 = vrot.lane.b32.xlu0 %v2152, 12
        %v2308 = vpop.permute.xlu0 %2307
        %2317 = vst.msk [vmem:[#allocation3] sm:$0xff] %vm1187, %v2294
        %2318 = vst.msk [vmem:[#allocation3 + $0x8] sm:$0xff] %vm1187, %v2296
        %2319 = vst.msk [vmem:[#allocation3 + $0x10] sm:$0xff] %vm1187, %v2298
        %2320 = vst.msk [vmem:[#allocation3 + $0x18] sm:$0xff] %vm1187, %v2300
        %2321 = vst.msk [vmem:[#allocation3 + $0x20] sm:$0xff] %vm1187, %v2302
        %2322 = vst.msk [vmem:[#allocation3 + $0x28] sm:$0xff] %vm1187, %v2304
        %2323 = vst.msk [vmem:[#allocation3 + $0x30] sm:$0xff] %vm1187, %v2306
        %2324 = vst.msk [vmem:[#allocation3 + $0x38] sm:$0xff] %vm1187, %v2308
        %v2326 = vrot.slane %v2152, 1
        %v2327 = vrot.slane %v2153, 1
        %v2328 = vsel %vm506, %v2326, %v2327
        %2329 = vrot.lane.b32.xlu0 %v2185, 16
        %v2330 = vpop.permute.xlu0 %2329
        %2331 = vrot.lane.b32.xlu0 %v2188, 16
        %v2332 = vpop.permute.xlu0 %2331
        %2333 = vrot.lane.b32.xlu0 %v2191, 16
        %v2334 = vpop.permute.xlu0 %2333
        %2335 = vrot.lane.b32.xlu0 %v2194, 16
        %v2336 = vpop.permute.xlu0 %2335
        %2337 = vrot.lane.b32.xlu0 %v2197, 16
        %v2338 = vpop.permute.xlu0 %2337
        %2339 = vrot.lane.b32.xlu0 %v2200, 16
        %v2340 = vpop.permute.xlu0 %2339
        %2341 = vrot.lane.b32.xlu0 %v2203, 16
        %v2342 = vpop.permute.xlu0 %2341
        %2343 = vrot.lane.b32.xlu0 %v2328, 16
        %v2344 = vpop.permute.xlu0 %2343
        %2353 = vst.msk [vmem:[#allocation3] sm:$0xff] %vm1224, %v2330
        %2354 = vst.msk [vmem:[#allocation3 + $0x8] sm:$0xff] %vm1224, %v2332
        %2355 = vst.msk [vmem:[#allocation3 + $0x10] sm:$0xff] %vm1224, %v2334
        %2356 = vst.msk [vmem:[#allocation3 + $0x18] sm:$0xff] %vm1224, %v2336
        %2357 = vst.msk [vmem:[#allocation3 + $0x20] sm:$0xff] %vm1224, %v2338
        %2358 = vst.msk [vmem:[#allocation3 + $0x28] sm:$0xff] %vm1224, %v2340
        %2359 = vst.msk [vmem:[#allocation3 + $0x30] sm:$0xff] %vm1224, %v2342
        %2360 = vst.msk [vmem:[#allocation3 + $0x38] sm:$0xff] %vm1224, %v2344
        %v2361 = vrot.slane %v2152, 2
        %v2362 = vrot.slane %v2153, 2
        %v2363 = vsel %vm564, %v2361, %v2362
        %2364 = vrot.lane.b32.xlu0 %v2241, 20
        %v2365 = vpop.permute.xlu0 %2364
        %2366 = vrot.lane.b32.xlu0 %v2244, 20
        %v2367 = vpop.permute.xlu0 %2366
        %2368 = vrot.lane.b32.xlu0 %v2247, 20
        %v2369 = vpop.permute.xlu0 %2368
        %2370 = vrot.lane.b32.xlu0 %v2250, 20
        %v2371 = vpop.permute.xlu0 %2370
        %2372 = vrot.lane.b32.xlu0 %v2253, 20
        %v2373 = vpop.permute.xlu0 %2372
        %2374 = vrot.lane.b32.xlu0 %v2256, 20
        %v2375 = vpop.permute.xlu0 %2374
        %2376 = vrot.lane.b32.xlu0 %v2259, 20
        %v2377 = vpop.permute.xlu0 %2376
        %2378 = vrot.lane.b32.xlu0 %v2363, 20
        %v2379 = vpop.permute.xlu0 %2378
        %2388 = vst.msk [vmem:[#allocation3] sm:$0xff] %vm1260, %v2365
        %2389 = vst.msk [vmem:[#allocation3 + $0x8] sm:$0xff] %vm1260, %v2367
        %2390 = vst.msk [vmem:[#allocation3 + $0x10] sm:$0xff] %vm1260, %v2369
        %2391 = vst.msk [vmem:[#allocation3 + $0x18] sm:$0xff] %vm1260, %v2371
        %2392 = vst.msk [vmem:[#allocation3 + $0x20] sm:$0xff] %vm1260, %v2373
        %2393 = vst.msk [vmem:[#allocation3 + $0x28] sm:$0xff] %vm1260, %v2375
        %2394 = vst.msk [vmem:[#allocation3 + $0x30] sm:$0xff] %vm1260, %v2377
        %2395 = vst.msk [vmem:[#allocation3 + $0x38] sm:$0xff] %vm1260, %v2379
        %2397 = vrot.lane.b32.xlu0 %v2140, 24
        %v2398 = vpop.permute.xlu0 %2397
        %2399 = vrot.lane.b32.xlu0 %v2142, 24
        %v2400 = vpop.permute.xlu0 %2399
        %2401 = vrot.lane.b32.xlu0 %v2144, 24
        %v2402 = vpop.permute.xlu0 %2401
        %2403 = vrot.lane.b32.xlu0 %v2146, 24
        %v2404 = vpop.permute.xlu0 %2403
        %2405 = vrot.lane.b32.xlu0 %v2148, 24
        %v2406 = vpop.permute.xlu0 %2405
        %2407 = vrot.lane.b32.xlu0 %v2150, 24
        %v2408 = vpop.permute.xlu0 %2407
        %2409 = vrot.lane.b32.xlu0 %v2152, 24
        %v2410 = vpop.permute.xlu0 %2409
        %2411 = vrot.lane.b32.xlu0 %v2154, 24
        %v2412 = vpop.permute.xlu0 %2411
        %2421 = vst.msk [vmem:[#allocation3] sm:$0xff] %vm1294, %v2398
        %2422 = vst.msk [vmem:[#allocation3 + $0x8] sm:$0xff] %vm1294, %v2400
        %2423 = vst.msk [vmem:[#allocation3 + $0x10] sm:$0xff] %vm1294, %v2402
        %2424 = vst.msk [vmem:[#allocation3 + $0x18] sm:$0xff] %vm1294, %v2404
        %2425 = vst.msk [vmem:[#allocation3 + $0x20] sm:$0xff] %vm1294, %v2406
        %2426 = vst.msk [vmem:[#allocation3 + $0x28] sm:$0xff] %vm1294, %v2408
        %2427 = vst.msk [vmem:[#allocation3 + $0x30] sm:$0xff] %vm1294, %v2410
        %2428 = vst.msk [vmem:[#allocation3 + $0x38] sm:$0xff] %vm1294, %v2412
        %v2430 = vrot.slane %v2154, 1
        %v2431 = vrot.slane %v2155, 1
        %v2432 = vsel %vm506, %v2430, %v2431
        %2433 = vrot.lane.b32.xlu0 %v2188, 28
        %v2434 = vpop.permute.xlu0 %2433
        %2435 = vrot.lane.b32.xlu0 %v2191, 28
        %v2436 = vpop.permute.xlu0 %2435
        %2437 = vrot.lane.b32.xlu0 %v2194, 28
        %v2438 = vpop.permute.xlu0 %2437
        %2439 = vrot.lane.b32.xlu0 %v2197, 28
        %v2440 = vpop.permute.xlu0 %2439
        %2441 = vrot.lane.b32.xlu0 %v2200, 28
        %v2442 = vpop.permute.xlu0 %2441
        %2443 = vrot.lane.b32.xlu0 %v2203, 28
        %v2444 = vpop.permute.xlu0 %2443
        %2445 = vrot.lane.b32.xlu0 %v2328, 28
        %v2446 = vpop.permute.xlu0 %2445
        %2447 = vrot.lane.b32.xlu0 %v2432, 28
        %v2448 = vpop.permute.xlu0 %2447
        %2457 = vst.msk [vmem:[#allocation3] sm:$0xff] %vm1331, %v2434
        %2458 = vst.msk [vmem:[#allocation3 + $0x8] sm:$0xff] %vm1331, %v2436
        %2459 = vst.msk [vmem:[#allocation3 + $0x10] sm:$0xff] %vm1331, %v2438
        %2460 = vst.msk [vmem:[#allocation3 + $0x18] sm:$0xff] %vm1331, %v2440
        %2461 = vst.msk [vmem:[#allocation3 + $0x20] sm:$0xff] %vm1331, %v2442
        %2462 = vst.msk [vmem:[#allocation3 + $0x28] sm:$0xff] %vm1331, %v2444
        %2463 = vst.msk [vmem:[#allocation3 + $0x30] sm:$0xff] %vm1331, %v2446
        %2464 = vst.msk [vmem:[#allocation3 + $0x38] sm:$0xff] %vm1331, %v2448
        %v2465 = vrot.slane %v2154, 2
        %v2466 = vrot.slane %v2155, 2
        %v2467 = vsel %vm564, %v2465, %v2466
        %2468 = vrot.lane.b32.xlu0 %v2244, 32
        %v2469 = vpop.permute.xlu0 %2468
        %2470 = vrot.lane.b32.xlu0 %v2247, 32
        %v2471 = vpop.permute.xlu0 %2470
        %2472 = vrot.lane.b32.xlu0 %v2250, 32
        %v2473 = vpop.permute.xlu0 %2472
        %2474 = vrot.lane.b32.xlu0 %v2253, 32
        %v2475 = vpop.permute.xlu0 %2474
        %2476 = vrot.lane.b32.xlu0 %v2256, 32
        %v2477 = vpop.permute.xlu0 %2476
        %2478 = vrot.lane.b32.xlu0 %v2259, 32
        %v2479 = vpop.permute.xlu0 %2478
        %2480 = vrot.lane.b32.xlu0 %v2363, 32
        %v2481 = vpop.permute.xlu0 %2480
        %2482 = vrot.lane.b32.xlu0 %v2467, 32
        %v2483 = vpop.permute.xlu0 %2482
        %2492 = vst.msk [vmem:[#allocation3] sm:$0xff] %vm1367, %v2469
        %2493 = vst.msk [vmem:[#allocation3 + $0x8] sm:$0xff] %vm1367, %v2471
        %2494 = vst.msk [vmem:[#allocation3 + $0x10] sm:$0xff] %vm1367, %v2473
        %2495 = vst.msk [vmem:[#allocation3 + $0x18] sm:$0xff] %vm1367, %v2475
        %2496 = vst.msk [vmem:[#allocation3 + $0x20] sm:$0xff] %vm1367, %v2477
        %2497 = vst.msk [vmem:[#allocation3 + $0x28] sm:$0xff] %vm1367, %v2479
        %2498 = vst.msk [vmem:[#allocation3 + $0x30] sm:$0xff] %vm1367, %v2481
        %2499 = vst.msk [vmem:[#allocation3 + $0x38] sm:$0xff] %vm1367, %v2483
        %v2500 = vld [vmem:[#allocation3] sm:$0xff]
        %v2501 = vld [vmem:[#allocation3 + $0x8] sm:$0xff]
        %v2502 = vld [vmem:[#allocation3 + $0x10] sm:$0xff]
        %v2503 = vld [vmem:[#allocation3 + $0x18] sm:$0xff]
        %v2504 = vld [vmem:[#allocation3 + $0x20] sm:$0xff]
        %v2505 = vld [vmem:[#allocation3 + $0x28] sm:$0xff]
        %v2506 = vld [vmem:[#allocation3 + $0x30] sm:$0xff]
        %v2507 = vld [vmem:[#allocation3 + $0x38] sm:$0xff]
        %v2509 = vlaneseq
        %v2510 = vshrl.u32 %v2509, 7
        %v2511 = vsub.s32 0, %v2510
        %v2512 = vrot.slane %v2127, %v2511
        %v2515 = vsel %vm1981, %v2500, 0
        %v2518 = vsel %vm1981, %v2501, 0
        %v2521 = vsel %vm1981, %v2502, 0
        %v2524 = vsel %vm1981, %v2503, 0
        %v2527 = vsel %vm1981, %v2504, 0
        %v2530 = vsel %vm1981, %v2505, 0
        %v2533 = vsel %vm1981, %v2506, 0
        %v2536 = vsel %vm1981, %v2507, 0
        %v2539 = vsel %vm1456, %v2126, 0
        %2541 = vmatprep.subr.mxu0 0.0
        %2542 = vmatpush1.msra.mxu0 %v2122
        %2543 = vmatprep.subr.mxu0 0.0
        %2544 = vmatpush1.msra.mxu0 %v2123
        %2545 = vmatprep.subr.mxu0 0.0
        %2546 = vmatpush1.msra.mxu0 %v2124
        %2547 = vmatprep.subr.mxu0 0.0
        %2548 = vmatpush1.msra.mxu0 %v2125
        %2549 = vmatprep.subr.mxu0 0.0
        %2550 = vmatpush1.msra.mxu0 %v2539
        %2551 = vmatprep.subr.mxu0 0.0
        %2552 = vmatpush1.msra.mxu0 0.0
        %2553 = vmatprep.subr.mxu0 0.0
        %2554 = vmatpush1.msra.mxu0 0.0
        %2555 = vmatprep.subr.mxu0 0.0
        %2556 = vmatpush1.msra.mxu0 0.0
        %2557 = vmatprep.subr.mxu0 0.0
        %2558 = vmatpush1.msra.mxu0 0.0
        %2559 = vmatprep.subr.mxu0 0.0
        %2560 = vmatpush1.msra.mxu0 0.0
        %2561 = vmatprep.subr.mxu0 0.0
        %2562 = vmatpush1.msra.mxu0 0.0
        %2563 = vmatprep.subr.mxu0 0.0
        %2564 = vmatpush1.msra.mxu0 0.0
        %2565 = vmatprep.subr.mxu0 0.0
        %2566 = vmatpush1.msra.mxu0 0.0
        %2567 = vmatprep.subr.mxu0 0.0
        %2568 = vmatpush1.msra.mxu0 0.0
        %2569 = vmatprep.subr.mxu0 0.0
        %2570 = vmatpush1.msra.mxu0 0.0
        %2571 = vmatprep.subr.mxu0 0.0
        %2572 = vmatpush1.msra.mxu0 0.0
        %2573 = vmatprep.subr.mxu0 0.0
        %2574 = vmatpush1.msra.mxu0 0.0
        %2575 = vmatprep.subr.mxu0 0.0
        %2576 = vmatpush1.msra.mxu0 0.0
        %2577 = vmatprep.subr.mxu0 0.0
        %2578 = vmatpush1.msra.mxu0 0.0
        %2579 = vmatprep.subr.mxu0 0.0
        %2580 = vmatpush1.msra.mxu0 0.0
        %2581 = vmatprep.subr.mxu0 0.0
        %2582 = vmatpush1.msra.mxu0 0.0
        %2583 = vmatprep.subr.mxu0 0.0
        %2584 = vmatpush1.msra.mxu0 0.0
        %2585 = vmatprep.subr.mxu0 0.0
        %2586 = vmatpush1.msra.mxu0 0.0
        %2587 = vmatprep.subr.mxu0 0.0
        %2588 = vmatpush1.msra.mxu0 0.0
        %2589 = vmatprep.subr.mxu0 0.0
        %2590 = vmatpush1.msra.mxu0 0.0
        %2591 = vmatprep.subr.mxu0 0.0
        %2592 = vmatpush1.msra.mxu0 0.0
        %2593 = vmatprep.subr.mxu0 0.0
        %2594 = vmatpush1.msra.mxu0 0.0
        %2595 = vmatprep.subr.mxu0 0.0
        %2596 = vmatpush1.msra.mxu0 0.0
        %2597 = vmatprep.subr.mxu0 0.0
        %2598 = vmatpush1.msra.mxu0 0.0
        %2599 = vmatprep.subr.mxu0 0.0
        %2600 = vmatpush1.msra.mxu0 0.0
        %2601 = vmatprep.subr.mxu0 0.0
        %2602 = vmatpush1.msra.mxu0 0.0
        %2603 = vmatprep.subr.mxu0 0.0
        %2604 = vmatpush1.msra.mxu0 0.0
        %2605 = vmatprep.mubr.f32.mxu0 0.0
        %2606 = vmatmul.mubr.f32.gmra.mrb[0].mxu0 %v2515
        %v2607 = vpop.f32.mrb[0].mxu0
        %v2608 = vadd.f32 %v2512, %v2607
        %v2609 = vpop.f32.mrb[0].mxu0
        %2610 = vmatprep.mubr.f32.mxu0 0.0
        %2611 = vmatmul.mubr.f32.gmra.mrb[0].mxu0 %v2518
        %v2612 = vpop.f32.mrb[0].mxu0
        %v2613 = vadd.f32 %v2512, %v2612
        %v2614 = vpop.f32.mrb[0].mxu0
        %2615 = vmatprep.mubr.f32.mxu0 0.0
        %2616 = vmatmul.mubr.f32.gmra.mrb[0].mxu0 %v2521
        %v2617 = vpop.f32.mrb[0].mxu0
        %v2618 = vadd.f32 %v2512, %v2617
        %v2619 = vpop.f32.mrb[0].mxu0
        %2620 = vmatprep.mubr.f32.mxu0 0.0
        %2621 = vmatmul.mubr.f32.gmra.mrb[0].mxu0 %v2524
        %v2622 = vpop.f32.mrb[0].mxu0
        %v2623 = vadd.f32 %v2512, %v2622
        %v2624 = vpop.f32.mrb[0].mxu0
        %2625 = vmatprep.mubr.f32.mxu0 0.0
        %2626 = vmatmul.mubr.f32.gmra.mrb[0].mxu0 %v2527
        %v2627 = vpop.f32.mrb[0].mxu0
        %v2628 = vadd.f32 %v2512, %v2627
        %v2629 = vpop.f32.mrb[0].mxu0
        %2630 = vmatprep.mubr.f32.mxu0 0.0
        %2631 = vmatmul.mubr.f32.gmra.mrb[0].mxu0 %v2530
        %v2632 = vpop.f32.mrb[0].mxu0
        %v2633 = vadd.f32 %v2512, %v2632
        %v2634 = vpop.f32.mrb[0].mxu0
        %2635 = vmatprep.mubr.f32.mxu0 0.0
        %2636 = vmatmul.mubr.f32.gmra.mrb[0].mxu0 %v2533
        %v2637 = vpop.f32.mrb[0].mxu0
        %v2638 = vadd.f32 %v2512, %v2637
        %v2639 = vpop.f32.mrb[0].mxu0
        %2640 = vmatprep.mubr.f32.mxu0 0.0
        %2641 = vmatmul.mubr.f32.gmra.mrb[0].mxu0 %v2536
        %v2642 = vpop.f32.mrb[0].mxu0
        %v2643 = vadd.f32 %v2512, %v2642
        %v2644 = vpop.f32.mrb[0].mxu0
        %2645 = vdwg.mxu0
        %v2646 = vadd.f32 %v2608, %v1573
        %v2647 = vadd.f32 %v2613, %v1574
        %v2648 = vadd.f32 %v2618, %v1575
        %v2649 = vadd.f32 %v2623, %v1576
        %v2650 = vadd.f32 %v2628, %v1577
        %v2651 = vadd.f32 %v2633, %v1578
        %v2652 = vadd.f32 %v2638, %v1579
        %v2653 = vadd.f32 %v2643, %v1580
        %2654 = vxpose.xlu0.b32.start [1/16] %v2646, 128
        %2655 = vxpose.xlu0.b32.cont [2/16] %v2647, 128
        %2656 = vxpose.xlu0.b32.cont [3/16] %v2648, 128
        %2657 = vxpose.xlu0.b32.cont [4/16] %v2649, 128
        %2658 = vxpose.xlu0.b32.cont [5/16] %v2650, 128
        %2659 = vxpose.xlu0.b32.cont [6/16] %v2651, 128
        %2660 = vxpose.xlu0.b32.cont [7/16] %v2652, 128
        %2661 = vxpose.xlu0.b32.cont [8/16] %v2653, 128
        %2662 = vxpose.xlu0.b32.cont [9/16] 0.0, 128
        %2663 = vxpose.xlu0.b32.cont [10/16] 0.0, 128
        %2664 = vxpose.xlu0.b32.cont [11/16] 0.0, 128
        %2665 = vxpose.xlu0.b32.cont [12/16] 0.0, 128
        %2666 = vxpose.xlu0.b32.cont [13/16] 0.0, 128
        %2667 = vxpose.xlu0.b32.cont [14/16] 0.0, 128
        %2668 = vxpose.xlu0.b32.cont [15/16] 0.0, 128
        %2669 = vxpose.xlu0.b32.end [16/16] 0.0, 128
        %v2670 = vpop.trf.xlu0
        %v2671 = vpop.trf.xlu0
        %v2672 = vpop.trf.xlu0
        %v2673 = vpop.trf.xlu0
        %v2674 = vpop.trf.xlu0
        %v2675 = vpop.trf.xlu0
        %v2676 = vpop.trf.xlu0
        %v2677 = vpop.trf.xlu0
        %v2678 = vpop.trf.xlu0
        %v2679 = vpop.trf.xlu0
        %v2680 = vpop.trf.xlu0
        %v2681 = vpop.trf.xlu0
        %v2682 = vpop.trf.xlu0
        %v2683 = vpop.trf.xlu0
        %v2684 = vpop.trf.xlu0
        %v2685 = vpop.trf.xlu0
        %v2686 = vld [vmem:[%s10] sm:$0xff]
        %v2687 = vld [vmem:[%s10 + $0x8] sm:$0xff]
        %v2688 = vld [vmem:[%s10 + $0x10] sm:$0xff]
        %v2689 = vld [vmem:[%s10 + $0x18] sm:$0xff]
        %v2690 = vld [vmem:[%s10 + $0x20] sm:$0xff]
        %v2691 = vld [vmem:[%s10 + $0x28] sm:$0xff]
        %v2692 = vld [vmem:[%s10 + $0x30] sm:$0xff]
        %v2693 = vld [vmem:[%s10 + $0x38] sm:$0xff]
        %v2694 = vld [vmem:[%s10 + $0x40] sm:$0xff]
        %v2695 = vld [vmem:[%s10 + $0x48] sm:$0xff]
        %v2696 = vld [vmem:[%s10 + $0x50] sm:$0xff]
        %v2697 = vld [vmem:[%s10 + $0x58] sm:$0xff]
        %v2698 = vld [vmem:[%s10 + $0x60] sm:$0xff]
        %v2699 = vld [vmem:[%s10 + $0x68] sm:$0xff]
        %v2700 = vld [vmem:[%s10 + $0x70] sm:$0xff]
        %v2701 = vld [vmem:[%s10 + $0x78] sm:$0xff]
        %vm2702 = vcmask 523264
        %v2704 = vsel %vm2702, %v2670, 0
        %2706 = vmatprep.subr.mxu0 %v2687
        %2707 = vmatpush1.msra.mxu0 %v2686
        %2708 = vmatprep.subr.mxu0 %v2689
        %2709 = vmatpush1.msra.mxu0 %v2688
        %2710 = vmatprep.subr.mxu0 %v2691
        %2711 = vmatpush1.msra.mxu0 %v2690
        %2712 = vmatprep.subr.mxu0 %v2693
        %2713 = vmatpush1.msra.mxu0 %v2692
        %2714 = vmatprep.subr.mxu0 %v2695
        %2715 = vmatpush1.msra.mxu0 %v2694
        %2716 = vmatprep.subr.mxu0 %v2697
        %2717 = vmatpush1.msra.mxu0 %v2696
        %2718 = vmatprep.subr.mxu0 %v2699
        %2719 = vmatpush1.msra.mxu0 %v2698
        %2720 = vmatprep.subr.mxu0 %v2701
        %2721 = vmatpush1.msra.mxu0 %v2700
        %2722 = vmatprep.subr.mxu0 0.0
        %2723 = vmatpush1.msra.mxu0 0.0
        %2724 = vmatprep.subr.mxu0 0.0
        %2725 = vmatpush1.msra.mxu0 0.0
        %2726 = vmatprep.subr.mxu0 0.0
        %2727 = vmatpush1.msra.mxu0 0.0
        %2728 = vmatprep.subr.mxu0 0.0
        %2729 = vmatpush1.msra.mxu0 0.0
        %2730 = vmatprep.subr.mxu0 0.0
        %2731 = vmatpush1.msra.mxu0 0.0
        %2732 = vmatprep.subr.mxu0 0.0
        %2733 = vmatpush1.msra.mxu0 0.0
        %2734 = vmatprep.subr.mxu0 0.0
        %2735 = vmatpush1.msra.mxu0 0.0
        %2736 = vmatprep.subr.mxu0 0.0
        %2737 = vmatpush1.msra.mxu0 0.0
        %2738 = vmatprep.subr.mxu0 0.0
        %2739 = vmatpush1.msra.mxu0 0.0
        %2740 = vmatprep.subr.mxu0 0.0
        %2741 = vmatpush1.msra.mxu0 0.0
        %2742 = vmatprep.subr.mxu0 0.0
        %2743 = vmatpush1.msra.mxu0 0.0
        %2744 = vmatprep.subr.mxu0 0.0
        %2745 = vmatpush1.msra.mxu0 0.0
        %2746 = vmatprep.subr.mxu0 0.0
        %2747 = vmatpush1.msra.mxu0 0.0
        %2748 = vmatprep.subr.mxu0 0.0
        %2749 = vmatpush1.msra.mxu0 0.0
        %2750 = vmatprep.subr.mxu0 0.0
        %2751 = vmatpush1.msra.mxu0 0.0
        %2752 = vmatprep.subr.mxu0 0.0
        %2753 = vmatpush1.msra.mxu0 0.0
        %2754 = vmatprep.subr.mxu0 0.0
        %2755 = vmatpush1.msra.mxu0 0.0
        %2756 = vmatprep.subr.mxu0 0.0
        %2757 = vmatpush1.msra.mxu0 0.0
        %2758 = vmatprep.subr.mxu0 0.0
        %2759 = vmatpush1.msra.mxu0 0.0
        %2760 = vmatprep.subr.mxu0 0.0
        %2761 = vmatpush1.msra.mxu0 0.0
        %2762 = vmatprep.subr.mxu0 0.0
        %2763 = vmatpush1.msra.mxu0 0.0
        %2764 = vmatprep.subr.mxu0 0.0
        %2765 = vmatpush1.msra.mxu0 0.0
        %2766 = vmatprep.subr.mxu0 0.0
        %2767 = vmatpush1.msra.mxu0 0.0
        %2768 = vmatprep.subr.mxu0 0.0
        %2769 = vmatpush1.msra.mxu0 0.0
        %2770 = vmatprep.mubr.f32.mxu0 0.0
        %2771 = vmatmul.mubr.f32.gmra.mrb[0].mxu0 %v2704
        %v2772 = vpop.f32.mrb[0].mxu0
        %v2773 = vadd.f32 0.0, %v2772
        %v2774 = vpop.f32.mrb[0].mxu0
        %v2775 = vadd.f32 0.0, %v2774
        %2776 = vdwg.mxu0
        %v2779 = vcombine.low %v2773, %v2775
        %vm2781 = vcmask 523268
        %vm2782 = vmor %vm2781, %vm1456
        %2783 = vst.msk [vmem:[%s394] sm:$0xff] %vm2782, %v2779
        %s2784 = sand.u32 %s274, 1
        %s2785 = scalar_lea.sflag [#allocation5], %s2784
        %s2786 = sand.u32 %s274, 1
        %s2787 = smul.addr %s2786, 8
        %s2788 = scalar_lea.vmem [#allocation4], %s2787
        // Predicated region
        $region65: #{tpu_custom_call.1} parent=63 // pred_check
          %p2789 = pneg %p284
        $region66: #{tpu_custom_call.1} parent=63 // pred_check_branch
          %2791 = sbr.rel (%p2789) target = $region68
        $region67: #{tpu_custom_call.1} parent=63 // pred_region
          %s2793 = ssub.s32 128, 128
          %2794 = vsyncadd %s2785, %s2793
          %s2795 = smul.addr %s25, 2
          %s2796 = smul.addr %s2795, 64
          %s2797 = scalar_lea.hbm %s11, %s2796
          %s2799 = sshll.u32 %s2788, 4
          %s2800 = int_to_ptr.vmem [resolvable:$true] %s2799
          %2802 = dma.vmem_to_hbm [thread:$0]  %s2800, 128, %s2797, %s2785
        $region68: #{tpu_custom_call.1} parent=63 // pred_fallthru
          _
      $region64: #{tpu_custom_call.1} parent=5 // pred_fallthru
        _
      %p2803 = scmp.le.s32.totalorder 2, %s20
      // Predicated region
      $region69: #{tpu_custom_call.1} parent=5 // pred_check
        %p2804 = pneg %p2803
      $region70: #{tpu_custom_call.1} parent=5 // pred_check_branch
        %2806 = sbr.rel (%p2804) target = $region72
      $region71: #{tpu_custom_call.1} parent=5 // pred_region
        %s2807 = ssub.s32 %s20, 2
        // Predicated region
        $region73: #{tpu_custom_call.1} parent=71 // pred_check
          %p2808 = pneg %p290
        $region74: #{tpu_custom_call.1} parent=71 // pred_check_branch
          %2810 = sbr.rel (%p2808) target = $region76
        $region75: #{tpu_custom_call.1} parent=71 // pred_region
          %s2811 = sand.u32 %s275, 1
          %s2812 = scalar_lea.sflag [#allocation5], %s2811
          %s2813 = sand.u32 %s275, 1
          %s2814 = smul.addr %s2813, 8
          %s2815 = scalar_lea.vmem [#allocation4], %s2814
          %2816 = dma.done %s2812, 128
        $region76: #{tpu_custom_call.1} parent=71 // pred_fallthru
          _
      $region72: #{tpu_custom_call.1} parent=5 // pred_fallthru
        _
    $region6: #{tpu_custom_call.1} parent=1 // loop_footer
      %s24 = sadd.s32 1, %s20
    $region7: #{tpu_custom_call.1} parent=1 // loop_footer_branch
      %19 = sbr.rel target = $region3
    $region8: #{tpu_custom_call.1} parent=1 // loop_exit
      _
    %2817 = vsyncpa [#allocation5], 1
    %s2818 = scalar_lea.sflag [#allocation5], 1
    %2819 = vsyncpa %s2818, 1

</llo_original>
